<compile_context>
chip_gen: v5e
topology: v5e:2x2
jax: 0.10.0
libtpu: 0.0.40
codegen_flags: <defaults>
</compile_context>

<pallas_src>
import functools
import math

import jax
import jax.numpy as jnp
from jax.experimental import pallas as pl
from jax.experimental.pallas import tpu as pltpu

_LANE = 128
_VMEM_LIMIT = 32 * 1024 * 1024


def _round_up(x, m):
    return -(-x // m) * m


def _pick_tm(m):
    m_aligned = _round_up(max(m, 8), 8)
    return m_aligned if m_aligned <= 512 else 512


# ----------------------------- Pallas kernels ---------------------------------
def _down_bottle_kernel(a_ref, w1_ref, b1_ref, wb_ref, bb_ref, o_ref, *, slope):
    """stride-conv matmul + bias + LeakyReLU(slope), then 1x1 bottle matmul + bias.

    Single K block for both matmuls; bottle weight stays resident in VMEM."""
    h = jnp.dot(a_ref[...], w1_ref[...],
                preferred_element_type=jnp.float32) + b1_ref[...]
    h = jnp.where(h >= 0, h, slope * h)
    o = jnp.dot(h.astype(jnp.bfloat16), wb_ref[...],
                preferred_element_type=jnp.float32) + bb_ref[...]
    o_ref[...] = o.astype(o_ref.dtype)


def _mm_kernel(a_ref, w_ref, b_ref, o_ref, *, act, slope):
    """Single-K-block matmul + bias (+ optional LeakyReLU)."""
    r = jnp.dot(a_ref[...], w_ref[...],
                preferred_element_type=jnp.float32) + b_ref[...]
    if act == "leaky":
        r = jnp.where(r >= 0, r, slope * r)
    o_ref[...] = r.astype(o_ref.dtype)


def _mm_res_kernel(a_ref, w_ref, b_ref, res_ref, o_ref, *, scale):
    """Single-K-block matmul + bias + residual add + scale (ResBlock tail)."""
    r = jnp.dot(a_ref[...], w_ref[...],
                preferred_element_type=jnp.float32) + b_ref[...]
    o_ref[...] = ((r + res_ref[...]) * scale).astype(o_ref.dtype)


# ------------------------------ pallas wrappers --------------------------------
def _compiler_params():
    return pltpu.CompilerParams(dimension_semantics=("parallel",),
                                vmem_limit_bytes=_VMEM_LIMIT)


def _pad_cols(cols, mp, kp):
    m, k = cols.shape
    a = cols.astype(jnp.bfloat16)
    if (mp, kp) != (m, k):
        a = jnp.pad(a, ((0, mp - m), (0, kp - k)))
    return a


def fused_down_bottle(cols, w1, b1, wb, bb, slope):
    """leaky(cols @ w1 + b1, slope) @ wb + bb, one kernel. Returns (Mp, C2p) f32."""
    m, _ = cols.shape
    k1p, c1p = w1.shape
    _, c2p = wb.shape
    assert k1p <= 4096, "K-tiling not implemented"  # TODO(synk)
    tm = _pick_tm(m)
    mp = _round_up(m, tm)
    a = _pad_cols(cols, mp, k1p)
    return pl.pallas_call(
        functools.partial(_down_bottle_kernel, slope=slope),
        out_shape=jax.ShapeDtypeStruct((mp, c2p), jnp.float32),
        grid=(mp // tm,),
        in_specs=[
            pl.BlockSpec((tm, k1p), lambda i: (i, 0)),
            pl.BlockSpec((k1p, c1p), lambda i: (0, 0)),
            pl.BlockSpec((1, c1p), lambda i: (0, 0)),
            pl.BlockSpec((c1p, c2p), lambda i: (0, 0)),
            pl.BlockSpec((1, c2p), lambda i: (0, 0)),
        ],
        out_specs=pl.BlockSpec((tm, c2p), lambda i: (i, 0)),
        compiler_params=_compiler_params(),
    )(a, w1, b1, wb, bb)


def matmul_bias(cols, wp, bp, act=None, slope=0.0, residual=None, scale=1.0):
    """cols (M,K) @ prepped wp (Kp,Np) bf16 + bp, fused leaky / residual / scale.

    Single full-extent K block (every conv in this model has K <= 1152)."""
    m, _ = cols.shape
    kp, np_ = wp.shape
    assert kp <= 4096, "K-tiling not implemented"  # TODO(synk)
    tm = _pick_tm(m)
    mp = _round_up(m, tm)
    a = _pad_cols(cols, mp, kp)

    in_specs = [
        pl.BlockSpec((tm, kp), lambda i: (i, 0)),
        pl.BlockSpec((kp, np_), lambda i: (0, 0)),
        pl.BlockSpec((1, np_), lambda i: (0, 0)),
    ]
    args = [a, wp, bp]
    if residual is not None:
        res = residual.astype(jnp.float32)
        if res.shape != (mp, np_):
            res = jnp.pad(res, ((0, mp - res.shape[0]), (0, np_ - res.shape[1])))
        in_specs.append(pl.BlockSpec((tm, np_), lambda i: (i, 0)))
        args.append(res)
        kernel = functools.partial(_mm_res_kernel, scale=scale)
    else:
        kernel = functools.partial(_mm_kernel, act=act, slope=slope)

    return pl.pallas_call(
        kernel,
        out_shape=jax.ShapeDtypeStruct((mp, np_), jnp.float32),
        grid=(mp // tm,),
        in_specs=in_specs,
        out_specs=pl.BlockSpec((tm, np_), lambda i: (i, 0)),
        compiler_params=_compiler_params(),
    )(*args)


# --------------------------- layout-preserving im2col --------------------------
def im2col_nhwc(x, kh, kw, stride, pad):
    """NHWC im2col: concat shifted slices along channels (K order = kh, kw, C)."""
    b, h, w, c = x.shape
    xp = jnp.pad(x, ((0, 0), (pad, pad), (pad, pad), (0, 0)))
    ho = (h + 2 * pad - kh) // stride + 1
    wo = (w + 2 * pad - kw) // stride + 1
    slices = []
    for i in range(kh):
        for j in range(kw):
            slices.append(xp[:, i:i + stride * ho:stride,
                             j:j + stride * wo:stride, :])
    cols = jnp.concatenate(slices, axis=-1)          # (B, Ho, Wo, kh*kw*C)
    return cols.reshape(b * ho * wo, kh * kw * c), ho, wo


# ---------------------------- parameter construction ---------------------------
def prep_conv_weight(w, b, k_pad=None, n_pad=None):
    """PyTorch (O,I,kh,kw) -> bf16 (Kp,Np), K order (kh,kw,I); f32 (1,Np) bias."""
    o, i, kh, kw = w.shape
    k = kh * kw * i
    wm = jnp.transpose(w, (2, 3, 1, 0)).reshape(k, o)
    kp = k_pad if k_pad is not None else _round_up(k, _LANE)
    np_ = n_pad if n_pad is not None else _round_up(o, _LANE)
    wm = jnp.pad(wm, ((0, kp - k), (0, np_ - o))).astype(jnp.bfloat16)
    bm = jnp.pad(b.reshape(1, o), ((0, 0), (0, np_ - o))).astype(jnp.float32)
    return wm, bm


def _init_conv(key, out_c, in_c, k):
    w = jax.random.normal(key, (out_c, in_c, k, k),
                          jnp.float32) / math.sqrt(in_c * k * k)
    return w, jnp.zeros((out_c,), jnp.float32)


def init_down_params(key, in_c, out_c):
    ks = jax.random.split(key, 4)
    w_s, b_s = _init_conv(ks[0], in_c, in_c, 4)        # stride conv 4x4/2
    w_b, b_b = _init_conv(ks[1], out_c, in_c, 1)       # bottle 1x1
    w_1, b_1 = _init_conv(ks[2], out_c, out_c, 3)      # 3x3 conv 1
    w_2, b_2 = _init_conv(ks[3], out_c, out_c, 3)      # 3x3 conv 2

    c1p = _round_up(in_c, _LANE)   # padded channel width of stride-conv output
    ws, bs = prep_conv_weight(w_s, b_s, n_pad=c1p)
    wb, bb = prep_conv_weight(w_b, b_b, k_pad=c1p)
    w1p, b1p = prep_conv_weight(w_1, b_1)
    w2p, b2p = prep_conv_weight(w_2, b_2)
    return {
        "w_stride": ws, "b_stride": bs,
        "w_bottle": wb, "b_bottle": bb,
        "w_conv1": w1p, "b_conv1": b1p,
        "w_conv2": w2p, "b_conv2": b2p,
        "bn_gamma": jnp.ones((1, out_c), jnp.float32),
        "bn_beta": jnp.zeros((1, out_c), jnp.float32),
    }


# -------------------------------- forward pass ---------------------------------
def down_fwd(params, x_nchw):
    b, _, h, w = x_nchw.shape
    c_out = params["bn_gamma"].shape[1]
    x = jnp.transpose(x_nchw, (0, 2, 3, 1))            # NHWC once

    # stride conv 4x4/2 + LeakyReLU(0.1) + 1x1 bottle conv, one fused kernel
    cols, ho, wo = im2col_nhwc(x, 4, 4, 2, 1)
    m = b * ho * wo
    bottle = fused_down_bottle(cols, params["w_stride"], params["b_stride"],
                               params["w_bottle"], params["b_bottle"], 0.1)
    if bottle.shape != (m, c_out):                      # only if padding was needed
        bottle = bottle[:m, :c_out]

    # 3x3 conv 1
    cols1, _, _ = im2col_nhwc(bottle.reshape(b, ho, wo, c_out), 3, 3, 1, 1)
    y = matmul_bias(cols1, params["w_conv1"], params["b_conv1"])
    if y.shape != (m, c_out):
        y = y[:m, :c_out]

    # BatchNorm2d (training-mode batch stats over N,H,W) + LeakyReLU(0.2).
    # NOTE: matches PyTorch train(); eval()-mode running stats would differ.
    mean = jnp.mean(y, axis=0, keepdims=True)
    var = jnp.var(y, axis=0, keepdims=True)
    y = params["bn_gamma"] * (y - mean) * jax.lax.rsqrt(var + 1e-5) + params["bn_beta"]
    y = jnp.where(y >= 0, y, 0.2 * y)

    # 3x3 conv 2 with residual add + /sqrt(2) fused into the epilogue
    cols2, _, _ = im2col_nhwc(y.reshape(b, ho, wo, c_out), 3, 3, 1, 1)
    out = matmul_bias(cols2, params["w_conv2"], params["b_conv2"],
                      residual=bottle, scale=1.0 / math.sqrt(2))
    if out.shape != (m, c_out):
        out = out[:m, :c_out]

    return jnp.transpose(out.reshape(b, ho, wo, c_out), (0, 3, 1, 2))  # NCHW out


# ----------------------------------- main ---------------------------------------
if __name__ == "__main__":
    B, IN_C, OUT_C, H, W = 2, 64, 128, 16, 16

    key = jax.random.PRNGKey(0)
    k_x, k_p = jax.random.split(key)
    params = init_down_params(k_p, IN_C, OUT_C)
    x = jax.random.normal(k_x, (B, IN_C, H, W), jnp.float32)

    fwd = jax.jit(down_fwd)
    out = jax.block_until_ready(fwd(params, x))

    assert out.shape == (B, OUT_C, H // 2, W // 2), out.shape
    assert bool(jnp.all(jnp.isfinite(out)))
    print("KERNEL_OK")
</pallas_src>

<mosaic_0001>
module attributes {stable_mosaic.version = 11 : i64} {
  func.func @_down_bottle_kernel(%arg0: i32, %arg1: memref<128x1024xbf16, #tpu.memory_space<vmem>>, %arg2: memref<1024x128xbf16, #tpu.memory_space<vmem>>, %arg3: memref<1x128xf32, #tpu.memory_space<vmem>>, %arg4: memref<128x128xbf16, #tpu.memory_space<vmem>>, %arg5: memref<1x128xf32, #tpu.memory_space<vmem>>, %arg6: memref<128x128xf32, #tpu.memory_space<vmem>>) attributes {dimension_semantics = [#tpu.dimension_semantics<parallel>], iteration_bounds = array<i64: 1>, scalar_prefetch = 0 : i64, scratch_operands = 0 : i64, tpu.core_type = #tpu.core_type<tc>, window_params = [{transform_indices = @transform_0, window_bounds = array<i64: 128, 1024>}, {pipeline_mode = #tpu.pipeline_mode<synchronous>, transform_indices = @transform_1, window_bounds = array<i64: 1024, 128>}, {pipeline_mode = #tpu.pipeline_mode<synchronous>, transform_indices = @transform_2, window_bounds = array<i64: 1, 128>}, {pipeline_mode = #tpu.pipeline_mode<synchronous>, transform_indices = @transform_3, window_bounds = array<i64: 128, 128>}, {pipeline_mode = #tpu.pipeline_mode<synchronous>, transform_indices = @transform_4, window_bounds = array<i64: 1, 128>}, {transform_indices = @transform_5, window_bounds = array<i64: 128, 128>}]} {
    %c0 = arith.constant 0 : index
    %c0_0 = arith.constant 0 : index
    %0 = vector.load %arg1[%c0, %c0_0] : memref<128x1024xbf16, #tpu.memory_space<vmem>>, vector<128x1024xbf16>
    %c0_1 = arith.constant 0 : index
    %c0_2 = arith.constant 0 : index
    %1 = vector.load %arg2[%c0_1, %c0_2] : memref<1024x128xbf16, #tpu.memory_space<vmem>>, vector<1024x128xbf16>
    %cst = arith.constant dense<0.000000e+00> : vector<128x128xf32>
    %2 = tpu.matmul %0, %1, %cst {dimension_numbers = #tpu.dot_dimension_numbers<[1], [0], [0], [1], [0, 0, 1, 1], [], []>} : vector<128x1024xbf16>, vector<1024x128xbf16>, vector<128x128xf32> -> vector<128x128xf32>
    %c0_3 = arith.constant 0 : index
    %c0_4 = arith.constant 0 : index
    %3 = vector.load %arg3[%c0_3, %c0_4] : memref<1x128xf32, #tpu.memory_space<vmem>>, vector<1x128xf32>
    %4 = vector.broadcast %3 : vector<1x128xf32> to vector<128x128xf32>
    %5 = arith.addf %2, %4 : vector<128x128xf32>
    %cst_5 = arith.constant 0.000000e+00 : f32
    %6 = vector.broadcast %cst_5 : f32 to vector<128x128xf32>
    %7 = arith.cmpf oge, %5, %6 : vector<128x128xf32>
    %cst_6 = arith.constant 1.000000e-01 : f32
    %8 = vector.broadcast %cst_6 : f32 to vector<128x128xf32>
    %9 = arith.mulf %8, %5 : vector<128x128xf32>
    %10 = arith.select %7, %5, %9 : vector<128x128xi1>, vector<128x128xf32>
    %11 = arith.truncf %10 : vector<128x128xf32> to vector<128x128xbf16>
    %c0_7 = arith.constant 0 : index
    %c0_8 = arith.constant 0 : index
    %12 = vector.load %arg4[%c0_7, %c0_8] : memref<128x128xbf16, #tpu.memory_space<vmem>>, vector<128x128xbf16>
    %cst_9 = arith.constant dense<0.000000e+00> : vector<128x128xf32>
    %13 = tpu.matmul %11, %12, %cst_9 {dimension_numbers = #tpu.dot_dimension_numbers<[1], [0], [0], [1], [0, 0, 1, 1], [], []>} : vector<128x128xbf16>, vector<128x128xbf16>, vector<128x128xf32> -> vector<128x128xf32>
    %c0_10 = arith.constant 0 : index
    %c0_11 = arith.constant 0 : index
    %14 = vector.load %arg5[%c0_10, %c0_11] : memref<1x128xf32, #tpu.memory_space<vmem>>, vector<1x128xf32>
    %15 = vector.broadcast %14 : vector<1x128xf32> to vector<128x128xf32>
    %16 = arith.addf %13, %15 : vector<128x128xf32>
    %c0_12 = arith.constant 0 : index
    %c0_13 = arith.constant 0 : index
    %17 = vector.load %arg6[%c0_12, %c0_13] : memref<128x128xf32, #tpu.memory_space<vmem>>, vector<128x128xf32>
    tpu.vector_store %arg6[%c0_12, %c0_13], %16 {strides = array<i32>} : memref<128x128xf32, #tpu.memory_space<vmem>>, vector<128x128xf32>,
    return
  }
  func.func @transform_0(%arg0: i32) -> (i32, i32) {
    %c0_i32 = arith.constant 0 : i32
    %c0_i32_0 = arith.constant 0 : i32
    return %arg0, %c0_i32 : i32, i32
  }
  func.func @transform_1(%arg0: i32) -> (i32, i32) {
    %c0_i32 = arith.constant 0 : i32
    %c0_i32_0 = arith.constant 0 : i32
    %c0_i32_1 = arith.constant 0 : i32
    return %c0_i32, %c0_i32_0 : i32, i32
  }
  func.func @transform_2(%arg0: i32) -> (i32, i32) {
    %c0_i32 = arith.constant 0 : i32
    %c0_i32_0 = arith.constant 0 : i32
    %c0_i32_1 = arith.constant 0 : i32
    return %c0_i32, %c0_i32_0 : i32, i32
  }
  func.func @transform_3(%arg0: i32) -> (i32, i32) {
    %c0_i32 = arith.constant 0 : i32
    %c0_i32_0 = arith.constant 0 : i32
    %c0_i32_1 = arith.constant 0 : i32
    return %c0_i32, %c0_i32_0 : i32, i32
  }
  func.func @transform_4(%arg0: i32) -> (i32, i32) {
    %c0_i32 = arith.constant 0 : i32
    %c0_i32_0 = arith.constant 0 : i32
    %c0_i32_1 = arith.constant 0 : i32
    return %c0_i32, %c0_i32_0 : i32, i32
  }
  func.func @transform_5(%arg0: i32) -> (i32, i32) {
    %c0_i32 = arith.constant 0 : i32
    %c0_i32_0 = arith.constant 0 : i32
    return %arg0, %c0_i32 : i32, i32
  }
}

module attributes {stable_mosaic.version = 11 : i64} {
  func.func @_mm_kernel(%arg0: i32, %arg1: memref<128x1152xbf16, #tpu.memory_space<vmem>>, %arg2: memref<1152x128xbf16, #tpu.memory_space<vmem>>, %arg3: memref<1x128xf32, #tpu.memory_space<vmem>>, %arg4: memref<128x128xf32, #tpu.memory_space<vmem>>) attributes {dimension_semantics = [#tpu.dimension_semantics<parallel>], iteration_bounds = array<i64: 1>, scalar_prefetch = 0 : i64, scratch_operands = 0 : i64, tpu.core_type = #tpu.core_type<tc>, window_params = [{transform_indices = @transform_0, window_bounds = array<i64: 128, 1152>}, {pipeline_mode = #tpu.pipeline_mode<synchronous>, transform_indices = @transform_1, window_bounds = array<i64: 1152, 128>}, {pipeline_mode = #tpu.pipeline_mode<synchronous>, transform_indices = @transform_2, window_bounds = array<i64: 1, 128>}, {transform_indices = @transform_3, window_bounds = array<i64: 128, 128>}]} {
    %c0 = arith.constant 0 : index
    %c0_0 = arith.constant 0 : index
    %0 = vector.load %arg1[%c0, %c0_0] : memref<128x1152xbf16, #tpu.memory_space<vmem>>, vector<128x1152xbf16>
    %c0_1 = arith.constant 0 : index
    %c0_2 = arith.constant 0 : index
    %1 = vector.load %arg2[%c0_1, %c0_2] : memref<1152x128xbf16, #tpu.memory_space<vmem>>, vector<1152x128xbf16>
    %cst = arith.constant dense<0.000000e+00> : vector<128x128xf32>
    %2 = tpu.matmul %0, %1, %cst {dimension_numbers = #tpu.dot_dimension_numbers<[1], [0], [0], [1], [0, 0, 1, 1], [], []>} : vector<128x1152xbf16>, vector<1152x128xbf16>, vector<128x128xf32> -> vector<128x128xf32>
    %c0_3 = arith.constant 0 : index
    %c0_4 = arith.constant 0 : index
    %3 = vector.load %arg3[%c0_3, %c0_4] : memref<1x128xf32, #tpu.memory_space<vmem>>, vector<1x128xf32>
    %4 = vector.broadcast %3 : vector<1x128xf32> to vector<128x128xf32>
    %5 = arith.addf %2, %4 : vector<128x128xf32>
    %c0_5 = arith.constant 0 : index
    %c0_6 = arith.constant 0 : index
    %6 = vector.load %arg4[%c0_5, %c0_6] : memref<128x128xf32, #tpu.memory_space<vmem>>, vector<128x128xf32>
    tpu.vector_store %arg4[%c0_5, %c0_6], %5 {strides = array<i32>} : memref<128x128xf32, #tpu.memory_space<vmem>>, vector<128x128xf32>,
    return
  }
  func.func @transform_0(%arg0: i32) -> (i32, i32) {
    %c0_i32 = arith.constant 0 : i32
    %c0_i32_0 = arith.constant 0 : i32
    return %arg0, %c0_i32 : i32, i32
  }
  func.func @transform_1(%arg0: i32) -> (i32, i32) {
    %c0_i32 = arith.constant 0 : i32
    %c0_i32_0 = arith.constant 0 : i32
    %c0_i32_1 = arith.constant 0 : i32
    return %c0_i32, %c0_i32_0 : i32, i32
  }
  func.func @transform_2(%arg0: i32) -> (i32, i32) {
    %c0_i32 = arith.constant 0 : i32
    %c0_i32_0 = arith.constant 0 : i32
    %c0_i32_1 = arith.constant 0 : i32
    return %c0_i32, %c0_i32_0 : i32, i32
  }
  func.func @transform_3(%arg0: i32) -> (i32, i32) {
    %c0_i32 = arith.constant 0 : i32
    %c0_i32_0 = arith.constant 0 : i32
    return %arg0, %c0_i32 : i32, i32
  }
}

module attributes {stable_mosaic.version = 11 : i64} {
  func.func @_mm_res_kernel(%arg0: i32, %arg1: memref<128x1152xbf16, #tpu.memory_space<vmem>>, %arg2: memref<1152x128xbf16, #tpu.memory_space<vmem>>, %arg3: memref<1x128xf32, #tpu.memory_space<vmem>>, %arg4: memref<128x128xf32, #tpu.memory_space<vmem>>, %arg5: memref<128x128xf32, #tpu.memory_space<vmem>>) attributes {dimension_semantics = [#tpu.dimension_semantics<parallel>], iteration_bounds = array<i64: 1>, scalar_prefetch = 0 : i64, scratch_operands = 0 : i64, tpu.core_type = #tpu.core_type<tc>, window_params = [{transform_indices = @transform_0, window_bounds = array<i64: 128, 1152>}, {pipeline_mode = #tpu.pipeline_mode<synchronous>, transform_indices = @transform_1, window_bounds = array<i64: 1152, 128>}, {pipeline_mode = #tpu.pipeline_mode<synchronous>, transform_indices = @transform_2, window_bounds = array<i64: 1, 128>}, {transform_indices = @transform_3, window_bounds = array<i64: 128, 128>}, {transform_indices = @transform_4, window_bounds = array<i64: 128, 128>}]} {
    %c0 = arith.constant 0 : index
    %c0_0 = arith.constant 0 : index
    %0 = vector.load %arg1[%c0, %c0_0] : memref<128x1152xbf16, #tpu.memory_space<vmem>>, vector<128x1152xbf16>
    %c0_1 = arith.constant 0 : index
    %c0_2 = arith.constant 0 : index
    %1 = vector.load %arg2[%c0_1, %c0_2] : memref<1152x128xbf16, #tpu.memory_space<vmem>>, vector<1152x128xbf16>
    %cst = arith.constant dense<0.000000e+00> : vector<128x128xf32>
    %2 = tpu.matmul %0, %1, %cst {dimension_numbers = #tpu.dot_dimension_numbers<[1], [0], [0], [1], [0, 0, 1, 1], [], []>} : vector<128x1152xbf16>, vector<1152x128xbf16>, vector<128x128xf32> -> vector<128x128xf32>
    %c0_3 = arith.constant 0 : index
    %c0_4 = arith.constant 0 : index
    %3 = vector.load %arg3[%c0_3, %c0_4] : memref<1x128xf32, #tpu.memory_space<vmem>>, vector<1x128xf32>
    %4 = vector.broadcast %3 : vector<1x128xf32> to vector<128x128xf32>
    %5 = arith.addf %2, %4 : vector<128x128xf32>
    %c0_5 = arith.constant 0 : index
    %c0_6 = arith.constant 0 : index
    %6 = vector.load %arg4[%c0_5, %c0_6] : memref<128x128xf32, #tpu.memory_space<vmem>>, vector<128x128xf32>
    %7 = arith.addf %5, %6 : vector<128x128xf32>
    %cst_7 = arith.constant 0.707106769 : f32
    %8 = vector.broadcast %cst_7 : f32 to vector<128x128xf32>
    %9 = arith.mulf %7, %8 : vector<128x128xf32>
    %c0_8 = arith.constant 0 : index
    %c0_9 = arith.constant 0 : index
    %10 = vector.load %arg5[%c0_8, %c0_9] : memref<128x128xf32, #tpu.memory_space<vmem>>, vector<128x128xf32>
    tpu.vector_store %arg5[%c0_8, %c0_9], %9 {strides = array<i32>} : memref<128x128xf32, #tpu.memory_space<vmem>>, vector<128x128xf32>,
    return
  }
  func.func @transform_0(%arg0: i32) -> (i32, i32) {
    %c0_i32 = arith.constant 0 : i32
    %c0_i32_0 = arith.constant 0 : i32
    return %arg0, %c0_i32 : i32, i32
  }
  func.func @transform_1(%arg0: i32) -> (i32, i32) {
    %c0_i32 = arith.constant 0 : i32
    %c0_i32_0 = arith.constant 0 : i32
    %c0_i32_1 = arith.constant 0 : i32
    return %c0_i32, %c0_i32_0 : i32, i32
  }
  func.func @transform_2(%arg0: i32) -> (i32, i32) {
    %c0_i32 = arith.constant 0 : i32
    %c0_i32_0 = arith.constant 0 : i32
    %c0_i32_1 = arith.constant 0 : i32
    return %c0_i32, %c0_i32_0 : i32, i32
  }
  func.func @transform_3(%arg0: i32) -> (i32, i32) {
    %c0_i32 = arith.constant 0 : i32
    %c0_i32_0 = arith.constant 0 : i32
    return %arg0, %c0_i32 : i32, i32
  }
  func.func @transform_4(%arg0: i32) -> (i32, i32) {
    %c0_i32 = arith.constant 0 : i32
    %c0_i32_0 = arith.constant 0 : i32
    return %arg0, %c0_i32 : i32, i32
  }
}

</mosaic_0001>

<llo_original>
// kernel: down_fwd.3
$region0: #{down_fwd.3}
  #allocation0 [shape = 'u32[]', space=smem, size = 0x4, offset = 0x4, fixed_abs, tag = 'smem constant byte address 0x4 - core index']
  #allocation1 [shape = 'u32[72,128]{1,0:T(1,128)}', space=vmem, size = 0x9000, scoped, tag = 'internal scratch']
  %s0 = inlined_call_operand.vmem [shape: bf16[128,1024], index: 0, kind: input, shape index: {}]
  %s1 = inlined_call_operand.vmem [shape: bf16[1024,128], index: 1, kind: input, shape index: {}]
  %s2 = inlined_call_operand.vmem [shape: f32[1,128], index: 2, kind: input, shape index: {}]
  %s3 = inlined_call_operand.vmem [shape: bf16[128,128], index: 3, kind: input, shape index: {}]
  %s4 = inlined_call_operand.vmem [shape: f32[1,128], index: 4, kind: input, shape index: {}]
  %s5 = inlined_call_operand.vmem [shape: f32[128,128], index: 5, kind: output, shape index: {}]
  %s6 = sld [smem:[#allocation0]]
  $region30: #{down_fwd.3} parent=0
    _
  %s8 = ssub.s32 1, %s6
  %s9 = scalar_select 0, %s8, %s6
  // Predicated region
  $region2: #{down_fwd.3} parent=0 // pred_check
    _
  $region3: #{down_fwd.3} parent=0 // pred_check_branch
    %11 = sbr.rel (0) target = $region5
  $region4: #{down_fwd.3} parent=0 // pred_region
    _
  $region5: #{down_fwd.3} parent=0 // pred_fallthru
    _
  // Predicated region
  $region6: #{down_fwd.3} parent=0 // pred_check
    _
  $region7: #{down_fwd.3} parent=0 // pred_check_branch
    %13 = sbr.rel (0) target = $region9
  $region8: #{down_fwd.3} parent=0 // pred_region
    _
  $region9: #{down_fwd.3} parent=0 // pred_fallthru
    _
  // Predicated region
  $region10: #{down_fwd.3} parent=0 // pred_check
    _
  $region11: #{down_fwd.3} parent=0 // pred_check_branch
    %15 = sbr.rel (0) target = $region13
  $region12: #{down_fwd.3} parent=0 // pred_region
    _
  $region13: #{down_fwd.3} parent=0 // pred_fallthru
    _
  // Predicated region
  $region14: #{down_fwd.3} parent=0 // pred_check
    _
  $region15: #{down_fwd.3} parent=0 // pred_check_branch
    %17 = sbr.rel (0) target = $region17
  $region16: #{down_fwd.3} parent=0 // pred_region
    _
  $region17: #{down_fwd.3} parent=0 // pred_fallthru
    _
  // Predicated region
  $region18: #{down_fwd.3} parent=0 // pred_check
    _
  $region19: #{down_fwd.3} parent=0 // pred_check_branch
    %19 = sbr.rel (0) target = $region21
  $region20: #{down_fwd.3} parent=0 // pred_region
    _
  $region21: #{down_fwd.3} parent=0 // pred_fallthru
    _
  %v20 = vld [vmem:[%s0] sm:$0xff]
  %v21 = vld [vmem:[%s0 + $0x8] sm:$0xff]
  %v22 = vld [vmem:[%s0 + $0x10] sm:$0xff]
  %v23 = vld [vmem:[%s0 + $0x18] sm:$0xff]
  %v24 = vld [vmem:[%s0 + $0x20] sm:$0xff]
  %v25 = vld [vmem:[%s0 + $0x28] sm:$0xff]
  %v26 = vld [vmem:[%s0 + $0x30] sm:$0xff]
  %v27 = vld [vmem:[%s0 + $0x38] sm:$0xff]
  %v28 = vld [vmem:[%s0 + $0x40] sm:$0xff]
  %v29 = vld [vmem:[%s0 + $0x48] sm:$0xff]
  %v30 = vld [vmem:[%s0 + $0x50] sm:$0xff]
  %v31 = vld [vmem:[%s0 + $0x58] sm:$0xff]
  %v32 = vld [vmem:[%s0 + $0x60] sm:$0xff]
  %v33 = vld [vmem:[%s0 + $0x68] sm:$0xff]
  %v34 = vld [vmem:[%s0 + $0x70] sm:$0xff]
  %v35 = vld [vmem:[%s0 + $0x78] sm:$0xff]
  %v36 = vld [vmem:[%s0 + $0x80] sm:$0xff]
  %v37 = vld [vmem:[%s0 + $0x88] sm:$0xff]
  %v38 = vld [vmem:[%s0 + $0x90] sm:$0xff]
  %v39 = vld [vmem:[%s0 + $0x98] sm:$0xff]
  %v40 = vld [vmem:[%s0 + $0xa0] sm:$0xff]
  %v41 = vld [vmem:[%s0 + $0xa8] sm:$0xff]
  %v42 = vld [vmem:[%s0 + $0xb0] sm:$0xff]
  %v43 = vld [vmem:[%s0 + $0xb8] sm:$0xff]
  %v44 = vld [vmem:[%s0 + $0xc0] sm:$0xff]
  %v45 = vld [vmem:[%s0 + $0xc8] sm:$0xff]
  %v46 = vld [vmem:[%s0 + $0xd0] sm:$0xff]
  %v47 = vld [vmem:[%s0 + $0xd8] sm:$0xff]
  %v48 = vld [vmem:[%s0 + $0xe0] sm:$0xff]
  %v49 = vld [vmem:[%s0 + $0xe8] sm:$0xff]
  %v50 = vld [vmem:[%s0 + $0xf0] sm:$0xff]
  %v51 = vld [vmem:[%s0 + $0xf8] sm:$0xff]
  %v52 = vld [vmem:[%s0 + $0x100] sm:$0xff]
  %v53 = vld [vmem:[%s0 + $0x108] sm:$0xff]
  %v54 = vld [vmem:[%s0 + $0x110] sm:$0xff]
  %v55 = vld [vmem:[%s0 + $0x118] sm:$0xff]
  %v56 = vld [vmem:[%s0 + $0x120] sm:$0xff]
  %v57 = vld [vmem:[%s0 + $0x128] sm:$0xff]
  %v58 = vld [vmem:[%s0 + $0x130] sm:$0xff]
  %v59 = vld [vmem:[%s0 + $0x138] sm:$0xff]
  %v60 = vld [vmem:[%s0 + $0x140] sm:$0xff]
  %v61 = vld [vmem:[%s0 + $0x148] sm:$0xff]
  %v62 = vld [vmem:[%s0 + $0x150] sm:$0xff]
  %v63 = vld [vmem:[%s0 + $0x158] sm:$0xff]
  %v64 = vld [vmem:[%s0 + $0x160] sm:$0xff]
  %v65 = vld [vmem:[%s0 + $0x168] sm:$0xff]
  %v66 = vld [vmem:[%s0 + $0x170] sm:$0xff]
  %v67 = vld [vmem:[%s0 + $0x178] sm:$0xff]
  %v68 = vld [vmem:[%s0 + $0x180] sm:$0xff]
  %v69 = vld [vmem:[%s0 + $0x188] sm:$0xff]
  %v70 = vld [vmem:[%s0 + $0x190] sm:$0xff]
  %v71 = vld [vmem:[%s0 + $0x198] sm:$0xff]
  %v72 = vld [vmem:[%s0 + $0x1a0] sm:$0xff]
  %v73 = vld [vmem:[%s0 + $0x1a8] sm:$0xff]
  %v74 = vld [vmem:[%s0 + $0x1b0] sm:$0xff]
  %v75 = vld [vmem:[%s0 + $0x1b8] sm:$0xff]
  %v76 = vld [vmem:[%s0 + $0x1c0] sm:$0xff]
  %v77 = vld [vmem:[%s0 + $0x1c8] sm:$0xff]
  %v78 = vld [vmem:[%s0 + $0x1d0] sm:$0xff]
  %v79 = vld [vmem:[%s0 + $0x1d8] sm:$0xff]
  %v80 = vld [vmem:[%s0 + $0x1e0] sm:$0xff]
  %v81 = vld [vmem:[%s0 + $0x1e8] sm:$0xff]
  %v82 = vld [vmem:[%s0 + $0x1f0] sm:$0xff]
  %v83 = vld [vmem:[%s0 + $0x1f8] sm:$0xff]
  %v84 = vld [vmem:[%s1] sm:$0xf]
  %v85 = vld [vmem:[%s1 + $0x4] sm:$0xf]
  %v86 = vld [vmem:[%s1 + $0x8] sm:$0xf]
  %v87 = vld [vmem:[%s1 + $0xc] sm:$0xf]
  %v88 = vld [vmem:[%s1 + $0x10] sm:$0xf]
  %v89 = vld [vmem:[%s1 + $0x14] sm:$0xf]
  %v90 = vld [vmem:[%s1 + $0x18] sm:$0xf]
  %v91 = vld [vmem:[%s1 + $0x1c] sm:$0xf]
  %v92 = vld [vmem:[%s1 + $0x20] sm:$0xf]
  %v93 = vld [vmem:[%s1 + $0x24] sm:$0xf]
  %v94 = vld [vmem:[%s1 + $0x28] sm:$0xf]
  %v95 = vld [vmem:[%s1 + $0x2c] sm:$0xf]
  %v96 = vld [vmem:[%s1 + $0x30] sm:$0xf]
  %v97 = vld [vmem:[%s1 + $0x34] sm:$0xf]
  %v98 = vld [vmem:[%s1 + $0x38] sm:$0xf]
  %v99 = vld [vmem:[%s1 + $0x3c] sm:$0xf]
  %v100 = vld [vmem:[%s1 + $0x40] sm:$0xf]
  %v101 = vld [vmem:[%s1 + $0x44] sm:$0xf]
  %v102 = vld [vmem:[%s1 + $0x48] sm:$0xf]
  %v103 = vld [vmem:[%s1 + $0x4c] sm:$0xf]
  %v104 = vld [vmem:[%s1 + $0x50] sm:$0xf]
  %v105 = vld [vmem:[%s1 + $0x54] sm:$0xf]
  %v106 = vld [vmem:[%s1 + $0x58] sm:$0xf]
  %v107 = vld [vmem:[%s1 + $0x5c] sm:$0xf]
  %v108 = vld [vmem:[%s1 + $0x60] sm:$0xf]
  %v109 = vld [vmem:[%s1 + $0x64] sm:$0xf]
  %v110 = vld [vmem:[%s1 + $0x68] sm:$0xf]
  %v111 = vld [vmem:[%s1 + $0x6c] sm:$0xf]
  %v112 = vld [vmem:[%s1 + $0x70] sm:$0xf]
  %v113 = vld [vmem:[%s1 + $0x74] sm:$0xf]
  %v114 = vld [vmem:[%s1 + $0x78] sm:$0xf]
  %v115 = vld [vmem:[%s1 + $0x7c] sm:$0xf]
  %v116 = vld [vmem:[%s1 + $0x80] sm:$0xf]
  %v117 = vld [vmem:[%s1 + $0x84] sm:$0xf]
  %v118 = vld [vmem:[%s1 + $0x88] sm:$0xf]
  %v119 = vld [vmem:[%s1 + $0x8c] sm:$0xf]
  %v120 = vld [vmem:[%s1 + $0x90] sm:$0xf]
  %v121 = vld [vmem:[%s1 + $0x94] sm:$0xf]
  %v122 = vld [vmem:[%s1 + $0x98] sm:$0xf]
  %v123 = vld [vmem:[%s1 + $0x9c] sm:$0xf]
  %v124 = vld [vmem:[%s1 + $0xa0] sm:$0xf]
  %v125 = vld [vmem:[%s1 + $0xa4] sm:$0xf]
  %v126 = vld [vmem:[%s1 + $0xa8] sm:$0xf]
  %v127 = vld [vmem:[%s1 + $0xac] sm:$0xf]
  %v128 = vld [vmem:[%s1 + $0xb0] sm:$0xf]
  %v129 = vld [vmem:[%s1 + $0xb4] sm:$0xf]
  %v130 = vld [vmem:[%s1 + $0xb8] sm:$0xf]
  %v131 = vld [vmem:[%s1 + $0xbc] sm:$0xf]
  %v132 = vld [vmem:[%s1 + $0xc0] sm:$0xf]
  %v133 = vld [vmem:[%s1 + $0xc4] sm:$0xf]
  %v134 = vld [vmem:[%s1 + $0xc8] sm:$0xf]
  %v135 = vld [vmem:[%s1 + $0xcc] sm:$0xf]
  %v136 = vld [vmem:[%s1 + $0xd0] sm:$0xf]
  %v137 = vld [vmem:[%s1 + $0xd4] sm:$0xf]
  %v138 = vld [vmem:[%s1 + $0xd8] sm:$0xf]
  %v139 = vld [vmem:[%s1 + $0xdc] sm:$0xf]
  %v140 = vld [vmem:[%s1 + $0xe0] sm:$0xf]
  %v141 = vld [vmem:[%s1 + $0xe4] sm:$0xf]
  %v142 = vld [vmem:[%s1 + $0xe8] sm:$0xf]
  %v143 = vld [vmem:[%s1 + $0xec] sm:$0xf]
  %v144 = vld [vmem:[%s1 + $0xf0] sm:$0xf]
  %v145 = vld [vmem:[%s1 + $0xf4] sm:$0xf]
  %v146 = vld [vmem:[%s1 + $0xf8] sm:$0xf]
  %v147 = vld [vmem:[%s1 + $0xfc] sm:$0xf]
  %v148 = vld [vmem:[%s1 + $0x100] sm:$0xf]
  %v149 = vld [vmem:[%s1 + $0x104] sm:$0xf]
  %v150 = vld [vmem:[%s1 + $0x108] sm:$0xf]
  %v151 = vld [vmem:[%s1 + $0x10c] sm:$0xf]
  %v152 = vld [vmem:[%s1 + $0x110] sm:$0xf]
  %v153 = vld [vmem:[%s1 + $0x114] sm:$0xf]
  %v154 = vld [vmem:[%s1 + $0x118] sm:$0xf]
  %v155 = vld [vmem:[%s1 + $0x11c] sm:$0xf]
  %v156 = vld [vmem:[%s1 + $0x120] sm:$0xf]
  %v157 = vld [vmem:[%s1 + $0x124] sm:$0xf]
  %v158 = vld [vmem:[%s1 + $0x128] sm:$0xf]
  %v159 = vld [vmem:[%s1 + $0x12c] sm:$0xf]
  %v160 = vld [vmem:[%s1 + $0x130] sm:$0xf]
  %v161 = vld [vmem:[%s1 + $0x134] sm:$0xf]
  %v162 = vld [vmem:[%s1 + $0x138] sm:$0xf]
  %v163 = vld [vmem:[%s1 + $0x13c] sm:$0xf]
  %v164 = vld [vmem:[%s1 + $0x140] sm:$0xf]
  %v165 = vld [vmem:[%s1 + $0x144] sm:$0xf]
  %v166 = vld [vmem:[%s1 + $0x148] sm:$0xf]
  %v167 = vld [vmem:[%s1 + $0x14c] sm:$0xf]
  %v168 = vld [vmem:[%s1 + $0x150] sm:$0xf]
  %v169 = vld [vmem:[%s1 + $0x154] sm:$0xf]
  %v170 = vld [vmem:[%s1 + $0x158] sm:$0xf]
  %v171 = vld [vmem:[%s1 + $0x15c] sm:$0xf]
  %v172 = vld [vmem:[%s1 + $0x160] sm:$0xf]
  %v173 = vld [vmem:[%s1 + $0x164] sm:$0xf]
  %v174 = vld [vmem:[%s1 + $0x168] sm:$0xf]
  %v175 = vld [vmem:[%s1 + $0x16c] sm:$0xf]
  %v176 = vld [vmem:[%s1 + $0x170] sm:$0xf]
  %v177 = vld [vmem:[%s1 + $0x174] sm:$0xf]
  %v178 = vld [vmem:[%s1 + $0x178] sm:$0xf]
  %v179 = vld [vmem:[%s1 + $0x17c] sm:$0xf]
  %v180 = vld [vmem:[%s1 + $0x180] sm:$0xf]
  %v181 = vld [vmem:[%s1 + $0x184] sm:$0xf]
  %v182 = vld [vmem:[%s1 + $0x188] sm:$0xf]
  %v183 = vld [vmem:[%s1 + $0x18c] sm:$0xf]
  %v184 = vld [vmem:[%s1 + $0x190] sm:$0xf]
  %v185 = vld [vmem:[%s1 + $0x194] sm:$0xf]
  %v186 = vld [vmem:[%s1 + $0x198] sm:$0xf]
  %v187 = vld [vmem:[%s1 + $0x19c] sm:$0xf]
  %v188 = vld [vmem:[%s1 + $0x1a0] sm:$0xf]
  %v189 = vld [vmem:[%s1 + $0x1a4] sm:$0xf]
  %v190 = vld [vmem:[%s1 + $0x1a8] sm:$0xf]
  %v191 = vld [vmem:[%s1 + $0x1ac] sm:$0xf]
  %v192 = vld [vmem:[%s1 + $0x1b0] sm:$0xf]
  %v193 = vld [vmem:[%s1 + $0x1b4] sm:$0xf]
  %v194 = vld [vmem:[%s1 + $0x1b8] sm:$0xf]
  %v195 = vld [vmem:[%s1 + $0x1bc] sm:$0xf]
  %v196 = vld [vmem:[%s1 + $0x1c0] sm:$0xf]
  %v197 = vld [vmem:[%s1 + $0x1c4] sm:$0xf]
  %v198 = vld [vmem:[%s1 + $0x1c8] sm:$0xf]
  %v199 = vld [vmem:[%s1 + $0x1cc] sm:$0xf]
  %v200 = vld [vmem:[%s1 + $0x1d0] sm:$0xf]
  %v201 = vld [vmem:[%s1 + $0x1d4] sm:$0xf]
  %v202 = vld [vmem:[%s1 + $0x1d8] sm:$0xf]
  %v203 = vld [vmem:[%s1 + $0x1dc] sm:$0xf]
  %v204 = vld [vmem:[%s1 + $0x1e0] sm:$0xf]
  %v205 = vld [vmem:[%s1 + $0x1e4] sm:$0xf]
  %v206 = vld [vmem:[%s1 + $0x1e8] sm:$0xf]
  %v207 = vld [vmem:[%s1 + $0x1ec] sm:$0xf]
  %v208 = vld [vmem:[%s1 + $0x1f0] sm:$0xf]
  %v209 = vld [vmem:[%s1 + $0x1f4] sm:$0xf]
  %v210 = vld [vmem:[%s1 + $0x1f8] sm:$0xf]
  %v211 = vld [vmem:[%s1 + $0x1fc] sm:$0xf]
  %v212 = vld [vmem:[%s2] sm:$0x1]
  %v214 = vperm.slane %v212, 0
  %v280 = vunpack.c.l.b16 %v20
  %v281 = vunpack.c.h.b16 %v20
  %v282 = vunpack.c.l.b16 %v21
  %v283 = vunpack.c.h.b16 %v21
  %v284 = vunpack.c.l.b16 %v22
  %v285 = vunpack.c.h.b16 %v22
  %v286 = vunpack.c.l.b16 %v23
  %v287 = vunpack.c.h.b16 %v23
  %v288 = vunpack.c.l.b16 %v24
  %v289 = vunpack.c.h.b16 %v24
  %v290 = vunpack.c.l.b16 %v25
  %v291 = vunpack.c.h.b16 %v25
  %v292 = vunpack.c.l.b16 %v26
  %v293 = vunpack.c.h.b16 %v26
  %v294 = vunpack.c.l.b16 %v27
  %v295 = vunpack.c.h.b16 %v27
  %v296 = vunpack.c.l.b16 %v28
  %v297 = vunpack.c.h.b16 %v28
  %v298 = vunpack.c.l.b16 %v29
  %v299 = vunpack.c.h.b16 %v29
  %v300 = vunpack.c.l.b16 %v30
  %v301 = vunpack.c.h.b16 %v30
  %v302 = vunpack.c.l.b16 %v31
  %v303 = vunpack.c.h.b16 %v31
  %v304 = vunpack.c.l.b16 %v32
  %v305 = vunpack.c.h.b16 %v32
  %v306 = vunpack.c.l.b16 %v33
  %v307 = vunpack.c.h.b16 %v33
  %v308 = vunpack.c.l.b16 %v34
  %v309 = vunpack.c.h.b16 %v34
  %v310 = vunpack.c.l.b16 %v35
  %v311 = vunpack.c.h.b16 %v35
  %v312 = vunpack.c.l.b16 %v36
  %v313 = vunpack.c.h.b16 %v36
  %v314 = vunpack.c.l.b16 %v37
  %v315 = vunpack.c.h.b16 %v37
  %v316 = vunpack.c.l.b16 %v38
  %v317 = vunpack.c.h.b16 %v38
  %v318 = vunpack.c.l.b16 %v39
  %v319 = vunpack.c.h.b16 %v39
  %v320 = vunpack.c.l.b16 %v40
  %v321 = vunpack.c.h.b16 %v40
  %v322 = vunpack.c.l.b16 %v41
  %v323 = vunpack.c.h.b16 %v41
  %v324 = vunpack.c.l.b16 %v42
  %v325 = vunpack.c.h.b16 %v42
  %v326 = vunpack.c.l.b16 %v43
  %v327 = vunpack.c.h.b16 %v43
  %v328 = vunpack.c.l.b16 %v44
  %v329 = vunpack.c.h.b16 %v44
  %v330 = vunpack.c.l.b16 %v45
  %v331 = vunpack.c.h.b16 %v45
  %v332 = vunpack.c.l.b16 %v46
  %v333 = vunpack.c.h.b16 %v46
  %v334 = vunpack.c.l.b16 %v47
  %v335 = vunpack.c.h.b16 %v47
  %v336 = vunpack.c.l.b16 %v48
  %v337 = vunpack.c.h.b16 %v48
  %v338 = vunpack.c.l.b16 %v49
  %v339 = vunpack.c.h.b16 %v49
  %v340 = vunpack.c.l.b16 %v50
  %v341 = vunpack.c.h.b16 %v50
  %v342 = vunpack.c.l.b16 %v51
  %v343 = vunpack.c.h.b16 %v51
  %v344 = vunpack.c.l.b16 %v52
  %v345 = vunpack.c.h.b16 %v52
  %v346 = vunpack.c.l.b16 %v53
  %v347 = vunpack.c.h.b16 %v53
  %v348 = vunpack.c.l.b16 %v54
  %v349 = vunpack.c.h.b16 %v54
  %v350 = vunpack.c.l.b16 %v55
  %v351 = vunpack.c.h.b16 %v55
  %v352 = vunpack.c.l.b16 %v56
  %v353 = vunpack.c.h.b16 %v56
  %v354 = vunpack.c.l.b16 %v57
  %v355 = vunpack.c.h.b16 %v57
  %v356 = vunpack.c.l.b16 %v58
  %v357 = vunpack.c.h.b16 %v58
  %v358 = vunpack.c.l.b16 %v59
  %v359 = vunpack.c.h.b16 %v59
  %v360 = vunpack.c.l.b16 %v60
  %v361 = vunpack.c.h.b16 %v60
  %v362 = vunpack.c.l.b16 %v61
  %v363 = vunpack.c.h.b16 %v61
  %v364 = vunpack.c.l.b16 %v62
  %v365 = vunpack.c.h.b16 %v62
  %v366 = vunpack.c.l.b16 %v63
  %v367 = vunpack.c.h.b16 %v63
  %v368 = vunpack.c.l.b16 %v64
  %v369 = vunpack.c.h.b16 %v64
  %v370 = vunpack.c.l.b16 %v65
  %v371 = vunpack.c.h.b16 %v65
  %v372 = vunpack.c.l.b16 %v66
  %v373 = vunpack.c.h.b16 %v66
  %v374 = vunpack.c.l.b16 %v67
  %v375 = vunpack.c.h.b16 %v67
  %v376 = vunpack.c.l.b16 %v68
  %v377 = vunpack.c.h.b16 %v68
  %v378 = vunpack.c.l.b16 %v69
  %v379 = vunpack.c.h.b16 %v69
  %v380 = vunpack.c.l.b16 %v70
  %v381 = vunpack.c.h.b16 %v70
  %v382 = vunpack.c.l.b16 %v71
  %v383 = vunpack.c.h.b16 %v71
  %v384 = vunpack.c.l.b16 %v72
  %v385 = vunpack.c.h.b16 %v72
  %v386 = vunpack.c.l.b16 %v73
  %v387 = vunpack.c.h.b16 %v73
  %v388 = vunpack.c.l.b16 %v74
  %v389 = vunpack.c.h.b16 %v74
  %v390 = vunpack.c.l.b16 %v75
  %v391 = vunpack.c.h.b16 %v75
  %v392 = vunpack.c.l.b16 %v76
  %v393 = vunpack.c.h.b16 %v76
  %v394 = vunpack.c.l.b16 %v77
  %v395 = vunpack.c.h.b16 %v77
  %v396 = vunpack.c.l.b16 %v78
  %v397 = vunpack.c.h.b16 %v78
  %v398 = vunpack.c.l.b16 %v79
  %v399 = vunpack.c.h.b16 %v79
  %v400 = vunpack.c.l.b16 %v80
  %v401 = vunpack.c.h.b16 %v80
  %v402 = vunpack.c.l.b16 %v81
  %v403 = vunpack.c.h.b16 %v81
  %v404 = vunpack.c.l.b16 %v82
  %v405 = vunpack.c.h.b16 %v82
  %v406 = vunpack.c.l.b16 %v83
  %v407 = vunpack.c.h.b16 %v83
  %v408 = vpack.c.b16 %v288, %v280
  %v409 = vpack.c.b16 %v289, %v281
  %v410 = vpack.c.b16 %v290, %v282
  %v411 = vpack.c.b16 %v291, %v283
  %v412 = vpack.c.b16 %v292, %v284
  %v413 = vpack.c.b16 %v293, %v285
  %v414 = vpack.c.b16 %v294, %v286
  %v415 = vpack.c.b16 %v295, %v287
  %v416 = vpack.c.b16 %v304, %v296
  %v417 = vpack.c.b16 %v305, %v297
  %v418 = vpack.c.b16 %v306, %v298
  %v419 = vpack.c.b16 %v307, %v299
  %v420 = vpack.c.b16 %v308, %v300
  %v421 = vpack.c.b16 %v309, %v301
  %v422 = vpack.c.b16 %v310, %v302
  %v423 = vpack.c.b16 %v311, %v303
  %v424 = vpack.c.b16 %v320, %v312
  %v425 = vpack.c.b16 %v321, %v313
  %v426 = vpack.c.b16 %v322, %v314
  %v427 = vpack.c.b16 %v323, %v315
  %v428 = vpack.c.b16 %v324, %v316
  %v429 = vpack.c.b16 %v325, %v317
  %v430 = vpack.c.b16 %v326, %v318
  %v431 = vpack.c.b16 %v327, %v319
  %v432 = vpack.c.b16 %v336, %v328
  %v433 = vpack.c.b16 %v337, %v329
  %v434 = vpack.c.b16 %v338, %v330
  %v435 = vpack.c.b16 %v339, %v331
  %v436 = vpack.c.b16 %v340, %v332
  %v437 = vpack.c.b16 %v341, %v333
  %v438 = vpack.c.b16 %v342, %v334
  %v439 = vpack.c.b16 %v343, %v335
  %v440 = vpack.c.b16 %v352, %v344
  %v441 = vpack.c.b16 %v353, %v345
  %v442 = vpack.c.b16 %v354, %v346
  %v443 = vpack.c.b16 %v355, %v347
  %v444 = vpack.c.b16 %v356, %v348
  %v445 = vpack.c.b16 %v357, %v349
  %v446 = vpack.c.b16 %v358, %v350
  %v447 = vpack.c.b16 %v359, %v351
  %v448 = vpack.c.b16 %v368, %v360
  %v449 = vpack.c.b16 %v369, %v361
  %v450 = vpack.c.b16 %v370, %v362
  %v451 = vpack.c.b16 %v371, %v363
  %v452 = vpack.c.b16 %v372, %v364
  %v453 = vpack.c.b16 %v373, %v365
  %v454 = vpack.c.b16 %v374, %v366
  %v455 = vpack.c.b16 %v375, %v367
  %v456 = vpack.c.b16 %v384, %v376
  %v457 = vpack.c.b16 %v385, %v377
  %v458 = vpack.c.b16 %v386, %v378
  %v459 = vpack.c.b16 %v387, %v379
  %v460 = vpack.c.b16 %v388, %v380
  %v461 = vpack.c.b16 %v389, %v381
  %v462 = vpack.c.b16 %v390, %v382
  %v463 = vpack.c.b16 %v391, %v383
  %v464 = vpack.c.b16 %v400, %v392
  %v465 = vpack.c.b16 %v401, %v393
  %v466 = vpack.c.b16 %v402, %v394
  %v467 = vpack.c.b16 %v403, %v395
  %v468 = vpack.c.b16 %v404, %v396
  %v469 = vpack.c.b16 %v405, %v397
  %v470 = vpack.c.b16 %v406, %v398
  %v471 = vpack.c.b16 %v407, %v399
  %v664 = vunpack.c.l.b16 %v84
  %v665 = vunpack.c.l.b16 %v85
  %v666 = vunpack.c.l.b16 %v86
  %v667 = vunpack.c.l.b16 %v87
  %v668 = vunpack.c.l.b16 %v88
  %v669 = vunpack.c.l.b16 %v89
  %v670 = vunpack.c.l.b16 %v90
  %v671 = vunpack.c.l.b16 %v91
  %v672 = vunpack.c.l.b16 %v92
  %v673 = vunpack.c.l.b16 %v93
  %v674 = vunpack.c.l.b16 %v94
  %v675 = vunpack.c.l.b16 %v95
  %v676 = vunpack.c.l.b16 %v96
  %v677 = vunpack.c.l.b16 %v97
  %v678 = vunpack.c.l.b16 %v98
  %v679 = vunpack.c.l.b16 %v99
  %v680 = vunpack.c.l.b16 %v100
  %v681 = vunpack.c.l.b16 %v101
  %v682 = vunpack.c.l.b16 %v102
  %v683 = vunpack.c.l.b16 %v103
  %v684 = vunpack.c.l.b16 %v104
  %v685 = vunpack.c.l.b16 %v105
  %v686 = vunpack.c.l.b16 %v106
  %v687 = vunpack.c.l.b16 %v107
  %v688 = vunpack.c.l.b16 %v108
  %v689 = vunpack.c.l.b16 %v109
  %v690 = vunpack.c.l.b16 %v110
  %v691 = vunpack.c.l.b16 %v111
  %v692 = vunpack.c.l.b16 %v112
  %v693 = vunpack.c.l.b16 %v113
  %v694 = vunpack.c.l.b16 %v114
  %v695 = vunpack.c.l.b16 %v115
  %v696 = vunpack.c.l.b16 %v116
  %v697 = vunpack.c.l.b16 %v117
  %v698 = vunpack.c.l.b16 %v118
  %v699 = vunpack.c.l.b16 %v119
  %v700 = vunpack.c.l.b16 %v120
  %v701 = vunpack.c.l.b16 %v121
  %v702 = vunpack.c.l.b16 %v122
  %v703 = vunpack.c.l.b16 %v123
  %v704 = vunpack.c.l.b16 %v124
  %v705 = vunpack.c.l.b16 %v125
  %v706 = vunpack.c.l.b16 %v126
  %v707 = vunpack.c.l.b16 %v127
  %v708 = vunpack.c.l.b16 %v128
  %v709 = vunpack.c.l.b16 %v129
  %v710 = vunpack.c.l.b16 %v130
  %v711 = vunpack.c.l.b16 %v131
  %v712 = vunpack.c.l.b16 %v132
  %v713 = vunpack.c.l.b16 %v133
  %v714 = vunpack.c.l.b16 %v134
  %v715 = vunpack.c.l.b16 %v135
  %v716 = vunpack.c.l.b16 %v136
  %v717 = vunpack.c.l.b16 %v137
  %v718 = vunpack.c.l.b16 %v138
  %v719 = vunpack.c.l.b16 %v139
  %v720 = vunpack.c.l.b16 %v140
  %v721 = vunpack.c.l.b16 %v141
  %v722 = vunpack.c.l.b16 %v142
  %v723 = vunpack.c.l.b16 %v143
  %v724 = vunpack.c.l.b16 %v144
  %v725 = vunpack.c.l.b16 %v145
  %v726 = vunpack.c.l.b16 %v146
  %v727 = vunpack.c.l.b16 %v147
  %v728 = vunpack.c.l.b16 %v148
  %v729 = vunpack.c.l.b16 %v149
  %v730 = vunpack.c.l.b16 %v150
  %v731 = vunpack.c.l.b16 %v151
  %v732 = vunpack.c.l.b16 %v152
  %v733 = vunpack.c.l.b16 %v153
  %v734 = vunpack.c.l.b16 %v154
  %v735 = vunpack.c.l.b16 %v155
  %v736 = vunpack.c.l.b16 %v156
  %v737 = vunpack.c.l.b16 %v157
  %v738 = vunpack.c.l.b16 %v158
  %v739 = vunpack.c.l.b16 %v159
  %v740 = vunpack.c.l.b16 %v160
  %v741 = vunpack.c.l.b16 %v161
  %v742 = vunpack.c.l.b16 %v162
  %v743 = vunpack.c.l.b16 %v163
  %v744 = vunpack.c.l.b16 %v164
  %v745 = vunpack.c.l.b16 %v165
  %v746 = vunpack.c.l.b16 %v166
  %v747 = vunpack.c.l.b16 %v167
  %v748 = vunpack.c.l.b16 %v168
  %v749 = vunpack.c.l.b16 %v169
  %v750 = vunpack.c.l.b16 %v170
  %v751 = vunpack.c.l.b16 %v171
  %v752 = vunpack.c.l.b16 %v172
  %v753 = vunpack.c.l.b16 %v173
  %v754 = vunpack.c.l.b16 %v174
  %v755 = vunpack.c.l.b16 %v175
  %v756 = vunpack.c.l.b16 %v176
  %v757 = vunpack.c.l.b16 %v177
  %v758 = vunpack.c.l.b16 %v178
  %v759 = vunpack.c.l.b16 %v179
  %v760 = vunpack.c.l.b16 %v180
  %v761 = vunpack.c.l.b16 %v181
  %v762 = vunpack.c.l.b16 %v182
  %v763 = vunpack.c.l.b16 %v183
  %v764 = vunpack.c.l.b16 %v184
  %v765 = vunpack.c.l.b16 %v185
  %v766 = vunpack.c.l.b16 %v186
  %v767 = vunpack.c.l.b16 %v187
  %v768 = vunpack.c.l.b16 %v188
  %v769 = vunpack.c.l.b16 %v189
  %v770 = vunpack.c.l.b16 %v190
  %v771 = vunpack.c.l.b16 %v191
  %v772 = vunpack.c.l.b16 %v192
  %v773 = vunpack.c.l.b16 %v193
  %v774 = vunpack.c.l.b16 %v194
  %v775 = vunpack.c.l.b16 %v195
  %v776 = vunpack.c.l.b16 %v196
  %v777 = vunpack.c.l.b16 %v197
  %v778 = vunpack.c.l.b16 %v198
  %v779 = vunpack.c.l.b16 %v199
  %v780 = vunpack.c.l.b16 %v200
  %v781 = vunpack.c.l.b16 %v201
  %v782 = vunpack.c.l.b16 %v202
  %v783 = vunpack.c.l.b16 %v203
  %v784 = vunpack.c.l.b16 %v204
  %v785 = vunpack.c.l.b16 %v205
  %v786 = vunpack.c.l.b16 %v206
  %v787 = vunpack.c.l.b16 %v207
  %v788 = vunpack.c.l.b16 %v208
  %v789 = vunpack.c.l.b16 %v209
  %v790 = vunpack.c.l.b16 %v210
  %v791 = vunpack.c.l.b16 %v211
  %v792 = vpack.c.b16 %v665, %v664
  %v793 = vpack.c.b16 %v667, %v666
  %v794 = vpack.c.b16 %v669, %v668
  %v795 = vpack.c.b16 %v671, %v670
  %v796 = vpack.c.b16 %v673, %v672
  %v797 = vpack.c.b16 %v675, %v674
  %v798 = vpack.c.b16 %v677, %v676
  %v799 = vpack.c.b16 %v679, %v678
  %v800 = vpack.c.b16 %v681, %v680
  %v801 = vpack.c.b16 %v683, %v682
  %v802 = vpack.c.b16 %v685, %v684
  %v803 = vpack.c.b16 %v687, %v686
  %v804 = vpack.c.b16 %v689, %v688
  %v805 = vpack.c.b16 %v691, %v690
  %v806 = vpack.c.b16 %v693, %v692
  %v807 = vpack.c.b16 %v695, %v694
  %v808 = vpack.c.b16 %v697, %v696
  %v809 = vpack.c.b16 %v699, %v698
  %v810 = vpack.c.b16 %v701, %v700
  %v811 = vpack.c.b16 %v703, %v702
  %v812 = vpack.c.b16 %v705, %v704
  %v813 = vpack.c.b16 %v707, %v706
  %v814 = vpack.c.b16 %v709, %v708
  %v815 = vpack.c.b16 %v711, %v710
  %v816 = vpack.c.b16 %v713, %v712
  %v817 = vpack.c.b16 %v715, %v714
  %v818 = vpack.c.b16 %v717, %v716
  %v819 = vpack.c.b16 %v719, %v718
  %v820 = vpack.c.b16 %v721, %v720
  %v821 = vpack.c.b16 %v723, %v722
  %v822 = vpack.c.b16 %v725, %v724
  %v823 = vpack.c.b16 %v727, %v726
  %v824 = vpack.c.b16 %v729, %v728
  %v825 = vpack.c.b16 %v731, %v730
  %v826 = vpack.c.b16 %v733, %v732
  %v827 = vpack.c.b16 %v735, %v734
  %v828 = vpack.c.b16 %v737, %v736
  %v829 = vpack.c.b16 %v739, %v738
  %v830 = vpack.c.b16 %v741, %v740
  %v831 = vpack.c.b16 %v743, %v742
  %v832 = vpack.c.b16 %v745, %v744
  %v833 = vpack.c.b16 %v747, %v746
  %v834 = vpack.c.b16 %v749, %v748
  %v835 = vpack.c.b16 %v751, %v750
  %v836 = vpack.c.b16 %v753, %v752
  %v837 = vpack.c.b16 %v755, %v754
  %v838 = vpack.c.b16 %v757, %v756
  %v839 = vpack.c.b16 %v759, %v758
  %v840 = vpack.c.b16 %v761, %v760
  %v841 = vpack.c.b16 %v763, %v762
  %v842 = vpack.c.b16 %v765, %v764
  %v843 = vpack.c.b16 %v767, %v766
  %v844 = vpack.c.b16 %v769, %v768
  %v845 = vpack.c.b16 %v771, %v770
  %v846 = vpack.c.b16 %v773, %v772
  %v847 = vpack.c.b16 %v775, %v774
  %v848 = vpack.c.b16 %v777, %v776
  %v849 = vpack.c.b16 %v779, %v778
  %v850 = vpack.c.b16 %v781, %v780
  %v851 = vpack.c.b16 %v783, %v782
  %v852 = vpack.c.b16 %v785, %v784
  %v853 = vpack.c.b16 %v787, %v786
  %v854 = vpack.c.b16 %v789, %v788
  %v855 = vpack.c.b16 %v791, %v790
  %920 = vmatpush.bf16.msra.mxu0 %v799
  %921 = vmatpush.bf16.msra.mxu0 %v798
  %922 = vmatpush.bf16.msra.mxu0 %v797
  %923 = vmatpush.bf16.msra.mxu0 %v796
  %924 = vmatpush.bf16.msra.mxu0 %v795
  %925 = vmatpush.bf16.msra.mxu0 %v794
  %926 = vmatpush.bf16.msra.mxu0 %v793
  %927 = vmatpush.bf16.msra.mxu0 %v792
  %928 = vmatmul.bf16.gmra.mxu0 %v408
  %v929 = vpop.f32.mrf.mxu0
  %v930 = vadd.f32 %v214, %v929
  %v931 = vpop.f32.mrf.mxu0
  %v932 = vadd.f32 %v214, %v931
  %933 = vmatmul.bf16.gmra.mxu0 %v416
  %v934 = vpop.f32.mrf.mxu0
  %v935 = vadd.f32 %v214, %v934
  %v936 = vpop.f32.mrf.mxu0
  %v937 = vadd.f32 %v214, %v936
  %938 = vmatmul.bf16.gmra.mxu0 %v424
  %v939 = vpop.f32.mrf.mxu0
  %v940 = vadd.f32 %v214, %v939
  %v941 = vpop.f32.mrf.mxu0
  %v942 = vadd.f32 %v214, %v941
  %943 = vmatmul.bf16.gmra.mxu0 %v432
  %v944 = vpop.f32.mrf.mxu0
  %v945 = vadd.f32 %v214, %v944
  %v946 = vpop.f32.mrf.mxu0
  %v947 = vadd.f32 %v214, %v946
  %948 = vmatmul.bf16.gmra.mxu0 %v440
  %v949 = vpop.f32.mrf.mxu0
  %v950 = vadd.f32 %v214, %v949
  %v951 = vpop.f32.mrf.mxu0
  %v952 = vadd.f32 %v214, %v951
  %953 = vmatmul.bf16.gmra.mxu0 %v448
  %v954 = vpop.f32.mrf.mxu0
  %v955 = vadd.f32 %v214, %v954
  %v956 = vpop.f32.mrf.mxu0
  %v957 = vadd.f32 %v214, %v956
  %958 = vmatmul.bf16.gmra.mxu0 %v456
  %v959 = vpop.f32.mrf.mxu0
  %v960 = vadd.f32 %v214, %v959
  %v961 = vpop.f32.mrf.mxu0
  %v962 = vadd.f32 %v214, %v961
  %963 = vmatmul.bf16.gmra.mxu0 %v464
  %v964 = vpop.f32.mrf.mxu0
  %v965 = vadd.f32 %v214, %v964
  %v966 = vpop.f32.mrf.mxu0
  %v967 = vadd.f32 %v214, %v966
  %968 = vdwg.mxu0
  %969 = vmatpush.bf16.msra.mxu0 %v807
  %970 = vmatpush.bf16.msra.mxu0 %v806
  %971 = vmatpush.bf16.msra.mxu0 %v805
  %972 = vmatpush.bf16.msra.mxu0 %v804
  %973 = vmatpush.bf16.msra.mxu0 %v803
  %974 = vmatpush.bf16.msra.mxu0 %v802
  %975 = vmatpush.bf16.msra.mxu0 %v801
  %976 = vmatpush.bf16.msra.mxu0 %v800
  %977 = vmatmul.bf16.gmra.mxu0 %v409
  %v978 = vpop.f32.mrf.mxu0
  %v979 = vadd.f32 %v930, %v978
  %v980 = vpop.f32.mrf.mxu0
  %v981 = vadd.f32 %v932, %v980
  %982 = vmatmul.bf16.gmra.mxu0 %v417
  %v983 = vpop.f32.mrf.mxu0
  %v984 = vadd.f32 %v935, %v983
  %v985 = vpop.f32.mrf.mxu0
  %v986 = vadd.f32 %v937, %v985
  %987 = vmatmul.bf16.gmra.mxu0 %v425
  %v988 = vpop.f32.mrf.mxu0
  %v989 = vadd.f32 %v940, %v988
  %v990 = vpop.f32.mrf.mxu0
  %v991 = vadd.f32 %v942, %v990
  %992 = vmatmul.bf16.gmra.mxu0 %v433
  %v993 = vpop.f32.mrf.mxu0
  %v994 = vadd.f32 %v945, %v993
  %v995 = vpop.f32.mrf.mxu0
  %v996 = vadd.f32 %v947, %v995
  %997 = vmatmul.bf16.gmra.mxu0 %v441
  %v998 = vpop.f32.mrf.mxu0
  %v999 = vadd.f32 %v950, %v998
  %v1000 = vpop.f32.mrf.mxu0
  %v1001 = vadd.f32 %v952, %v1000
  %1002 = vmatmul.bf16.gmra.mxu0 %v449
  %v1003 = vpop.f32.mrf.mxu0
  %v1004 = vadd.f32 %v955, %v1003
  %v1005 = vpop.f32.mrf.mxu0
  %v1006 = vadd.f32 %v957, %v1005
  %1007 = vmatmul.bf16.gmra.mxu0 %v457
  %v1008 = vpop.f32.mrf.mxu0
  %v1009 = vadd.f32 %v960, %v1008
  %v1010 = vpop.f32.mrf.mxu0
  %v1011 = vadd.f32 %v962, %v1010
  %1012 = vmatmul.bf16.gmra.mxu0 %v465
  %v1013 = vpop.f32.mrf.mxu0
  %v1014 = vadd.f32 %v965, %v1013
  %v1015 = vpop.f32.mrf.mxu0
  %v1016 = vadd.f32 %v967, %v1015
  %1017 = vdwg.mxu0
  %1018 = vmatpush.bf16.msra.mxu0 %v815
  %1019 = vmatpush.bf16.msra.mxu0 %v814
  %1020 = vmatpush.bf16.msra.mxu0 %v813
  %1021 = vmatpush.bf16.msra.mxu0 %v812
  %1022 = vmatpush.bf16.msra.mxu0 %v811
  %1023 = vmatpush.bf16.msra.mxu0 %v810
  %1024 = vmatpush.bf16.msra.mxu0 %v809
  %1025 = vmatpush.bf16.msra.mxu0 %v808
  %1026 = vmatmul.bf16.gmra.mxu0 %v410
  %v1027 = vpop.f32.mrf.mxu0
  %v1028 = vadd.f32 %v979, %v1027
  %v1029 = vpop.f32.mrf.mxu0
  %v1030 = vadd.f32 %v981, %v1029
  %1031 = vmatmul.bf16.gmra.mxu0 %v418
  %v1032 = vpop.f32.mrf.mxu0
  %v1033 = vadd.f32 %v984, %v1032
  %v1034 = vpop.f32.mrf.mxu0
  %v1035 = vadd.f32 %v986, %v1034
  %1036 = vmatmul.bf16.gmra.mxu0 %v426
  %v1037 = vpop.f32.mrf.mxu0
  %v1038 = vadd.f32 %v989, %v1037
  %v1039 = vpop.f32.mrf.mxu0
  %v1040 = vadd.f32 %v991, %v1039
  %1041 = vmatmul.bf16.gmra.mxu0 %v434
  %v1042 = vpop.f32.mrf.mxu0
  %v1043 = vadd.f32 %v994, %v1042
  %v1044 = vpop.f32.mrf.mxu0
  %v1045 = vadd.f32 %v996, %v1044
  %1046 = vmatmul.bf16.gmra.mxu0 %v442
  %v1047 = vpop.f32.mrf.mxu0
  %v1048 = vadd.f32 %v999, %v1047
  %v1049 = vpop.f32.mrf.mxu0
  %v1050 = vadd.f32 %v1001, %v1049
  %1051 = vmatmul.bf16.gmra.mxu0 %v450
  %v1052 = vpop.f32.mrf.mxu0
  %v1053 = vadd.f32 %v1004, %v1052
  %v1054 = vpop.f32.mrf.mxu0
  %v1055 = vadd.f32 %v1006, %v1054
  %1056 = vmatmul.bf16.gmra.mxu0 %v458
  %v1057 = vpop.f32.mrf.mxu0
  %v1058 = vadd.f32 %v1009, %v1057
  %v1059 = vpop.f32.mrf.mxu0
  %v1060 = vadd.f32 %v1011, %v1059
  %1061 = vmatmul.bf16.gmra.mxu0 %v466
  %v1062 = vpop.f32.mrf.mxu0
  %v1063 = vadd.f32 %v1014, %v1062
  %v1064 = vpop.f32.mrf.mxu0
  %v1065 = vadd.f32 %v1016, %v1064
  %1066 = vdwg.mxu0
  %1067 = vmatpush.bf16.msra.mxu0 %v823
  %1068 = vmatpush.bf16.msra.mxu0 %v822
  %1069 = vmatpush.bf16.msra.mxu0 %v821
  %1070 = vmatpush.bf16.msra.mxu0 %v820
  %1071 = vmatpush.bf16.msra.mxu0 %v819
  %1072 = vmatpush.bf16.msra.mxu0 %v818
  %1073 = vmatpush.bf16.msra.mxu0 %v817
  %1074 = vmatpush.bf16.msra.mxu0 %v816
  %1075 = vmatmul.bf16.gmra.mxu0 %v411
  %v1076 = vpop.f32.mrf.mxu0
  %v1077 = vadd.f32 %v1028, %v1076
  %v1078 = vpop.f32.mrf.mxu0
  %v1079 = vadd.f32 %v1030, %v1078
  %1080 = vmatmul.bf16.gmra.mxu0 %v419
  %v1081 = vpop.f32.mrf.mxu0
  %v1082 = vadd.f32 %v1033, %v1081
  %v1083 = vpop.f32.mrf.mxu0
  %v1084 = vadd.f32 %v1035, %v1083
  %1085 = vmatmul.bf16.gmra.mxu0 %v427
  %v1086 = vpop.f32.mrf.mxu0
  %v1087 = vadd.f32 %v1038, %v1086
  %v1088 = vpop.f32.mrf.mxu0
  %v1089 = vadd.f32 %v1040, %v1088
  %1090 = vmatmul.bf16.gmra.mxu0 %v435
  %v1091 = vpop.f32.mrf.mxu0
  %v1092 = vadd.f32 %v1043, %v1091
  %v1093 = vpop.f32.mrf.mxu0
  %v1094 = vadd.f32 %v1045, %v1093
  %1095 = vmatmul.bf16.gmra.mxu0 %v443
  %v1096 = vpop.f32.mrf.mxu0
  %v1097 = vadd.f32 %v1048, %v1096
  %v1098 = vpop.f32.mrf.mxu0
  %v1099 = vadd.f32 %v1050, %v1098
  %1100 = vmatmul.bf16.gmra.mxu0 %v451
  %v1101 = vpop.f32.mrf.mxu0
  %v1102 = vadd.f32 %v1053, %v1101
  %v1103 = vpop.f32.mrf.mxu0
  %v1104 = vadd.f32 %v1055, %v1103
  %1105 = vmatmul.bf16.gmra.mxu0 %v459
  %v1106 = vpop.f32.mrf.mxu0
  %v1107 = vadd.f32 %v1058, %v1106
  %v1108 = vpop.f32.mrf.mxu0
  %v1109 = vadd.f32 %v1060, %v1108
  %1110 = vmatmul.bf16.gmra.mxu0 %v467
  %v1111 = vpop.f32.mrf.mxu0
  %v1112 = vadd.f32 %v1063, %v1111
  %v1113 = vpop.f32.mrf.mxu0
  %v1114 = vadd.f32 %v1065, %v1113
  %1115 = vdwg.mxu0
  %1116 = vmatpush.bf16.msra.mxu0 %v831
  %1117 = vmatpush.bf16.msra.mxu0 %v830
  %1118 = vmatpush.bf16.msra.mxu0 %v829
  %1119 = vmatpush.bf16.msra.mxu0 %v828
  %1120 = vmatpush.bf16.msra.mxu0 %v827
  %1121 = vmatpush.bf16.msra.mxu0 %v826
  %1122 = vmatpush.bf16.msra.mxu0 %v825
  %1123 = vmatpush.bf16.msra.mxu0 %v824
  %1124 = vmatmul.bf16.gmra.mxu0 %v412
  %v1125 = vpop.f32.mrf.mxu0
  %v1126 = vadd.f32 %v1077, %v1125
  %v1127 = vpop.f32.mrf.mxu0
  %v1128 = vadd.f32 %v1079, %v1127
  %1129 = vmatmul.bf16.gmra.mxu0 %v420
  %v1130 = vpop.f32.mrf.mxu0
  %v1131 = vadd.f32 %v1082, %v1130
  %v1132 = vpop.f32.mrf.mxu0
  %v1133 = vadd.f32 %v1084, %v1132
  %1134 = vmatmul.bf16.gmra.mxu0 %v428
  %v1135 = vpop.f32.mrf.mxu0
  %v1136 = vadd.f32 %v1087, %v1135
  %v1137 = vpop.f32.mrf.mxu0
  %v1138 = vadd.f32 %v1089, %v1137
  %1139 = vmatmul.bf16.gmra.mxu0 %v436
  %v1140 = vpop.f32.mrf.mxu0
  %v1141 = vadd.f32 %v1092, %v1140
  %v1142 = vpop.f32.mrf.mxu0
  %v1143 = vadd.f32 %v1094, %v1142
  %1144 = vmatmul.bf16.gmra.mxu0 %v444
  %v1145 = vpop.f32.mrf.mxu0
  %v1146 = vadd.f32 %v1097, %v1145
  %v1147 = vpop.f32.mrf.mxu0
  %v1148 = vadd.f32 %v1099, %v1147
  %1149 = vmatmul.bf16.gmra.mxu0 %v452
  %v1150 = vpop.f32.mrf.mxu0
  %v1151 = vadd.f32 %v1102, %v1150
  %v1152 = vpop.f32.mrf.mxu0
  %v1153 = vadd.f32 %v1104, %v1152
  %1154 = vmatmul.bf16.gmra.mxu0 %v460
  %v1155 = vpop.f32.mrf.mxu0
  %v1156 = vadd.f32 %v1107, %v1155
  %v1157 = vpop.f32.mrf.mxu0
  %v1158 = vadd.f32 %v1109, %v1157
  %1159 = vmatmul.bf16.gmra.mxu0 %v468
  %v1160 = vpop.f32.mrf.mxu0
  %v1161 = vadd.f32 %v1112, %v1160
  %v1162 = vpop.f32.mrf.mxu0
  %v1163 = vadd.f32 %v1114, %v1162
  %1164 = vdwg.mxu0
  %1165 = vmatpush.bf16.msra.mxu0 %v839
  %1166 = vmatpush.bf16.msra.mxu0 %v838
  %1167 = vmatpush.bf16.msra.mxu0 %v837
  %1168 = vmatpush.bf16.msra.mxu0 %v836
  %1169 = vmatpush.bf16.msra.mxu0 %v835
  %1170 = vmatpush.bf16.msra.mxu0 %v834
  %1171 = vmatpush.bf16.msra.mxu0 %v833
  %1172 = vmatpush.bf16.msra.mxu0 %v832
  %1173 = vmatmul.bf16.gmra.mxu0 %v413
  %v1174 = vpop.f32.mrf.mxu0
  %v1175 = vadd.f32 %v1126, %v1174
  %v1176 = vpop.f32.mrf.mxu0
  %v1177 = vadd.f32 %v1128, %v1176
  %1178 = vmatmul.bf16.gmra.mxu0 %v421
  %v1179 = vpop.f32.mrf.mxu0
  %v1180 = vadd.f32 %v1131, %v1179
  %v1181 = vpop.f32.mrf.mxu0
  %v1182 = vadd.f32 %v1133, %v1181
  %1183 = vmatmul.bf16.gmra.mxu0 %v429
  %v1184 = vpop.f32.mrf.mxu0
  %v1185 = vadd.f32 %v1136, %v1184
  %v1186 = vpop.f32.mrf.mxu0
  %v1187 = vadd.f32 %v1138, %v1186
  %1188 = vmatmul.bf16.gmra.mxu0 %v437
  %v1189 = vpop.f32.mrf.mxu0
  %v1190 = vadd.f32 %v1141, %v1189
  %v1191 = vpop.f32.mrf.mxu0
  %v1192 = vadd.f32 %v1143, %v1191
  %1193 = vmatmul.bf16.gmra.mxu0 %v445
  %v1194 = vpop.f32.mrf.mxu0
  %v1195 = vadd.f32 %v1146, %v1194
  %v1196 = vpop.f32.mrf.mxu0
  %v1197 = vadd.f32 %v1148, %v1196
  %1198 = vmatmul.bf16.gmra.mxu0 %v453
  %v1199 = vpop.f32.mrf.mxu0
  %v1200 = vadd.f32 %v1151, %v1199
  %v1201 = vpop.f32.mrf.mxu0
  %v1202 = vadd.f32 %v1153, %v1201
  %1203 = vmatmul.bf16.gmra.mxu0 %v461
  %v1204 = vpop.f32.mrf.mxu0
  %v1205 = vadd.f32 %v1156, %v1204
  %v1206 = vpop.f32.mrf.mxu0
  %v1207 = vadd.f32 %v1158, %v1206
  %1208 = vmatmul.bf16.gmra.mxu0 %v469
  %v1209 = vpop.f32.mrf.mxu0
  %v1210 = vadd.f32 %v1161, %v1209
  %v1211 = vpop.f32.mrf.mxu0
  %v1212 = vadd.f32 %v1163, %v1211
  %1213 = vdwg.mxu0
  %1214 = vmatpush.bf16.msra.mxu0 %v847
  %1215 = vmatpush.bf16.msra.mxu0 %v846
  %1216 = vmatpush.bf16.msra.mxu0 %v845
  %1217 = vmatpush.bf16.msra.mxu0 %v844
  %1218 = vmatpush.bf16.msra.mxu0 %v843
  %1219 = vmatpush.bf16.msra.mxu0 %v842
  %1220 = vmatpush.bf16.msra.mxu0 %v841
  %1221 = vmatpush.bf16.msra.mxu0 %v840
  %1222 = vmatmul.bf16.gmra.mxu0 %v414
  %v1223 = vpop.f32.mrf.mxu0
  %v1224 = vadd.f32 %v1175, %v1223
  %v1225 = vpop.f32.mrf.mxu0
  %v1226 = vadd.f32 %v1177, %v1225
  %1227 = vmatmul.bf16.gmra.mxu0 %v422
  %v1228 = vpop.f32.mrf.mxu0
  %v1229 = vadd.f32 %v1180, %v1228
  %v1230 = vpop.f32.mrf.mxu0
  %v1231 = vadd.f32 %v1182, %v1230
  %1232 = vmatmul.bf16.gmra.mxu0 %v430
  %v1233 = vpop.f32.mrf.mxu0
  %v1234 = vadd.f32 %v1185, %v1233
  %v1235 = vpop.f32.mrf.mxu0
  %v1236 = vadd.f32 %v1187, %v1235
  %1237 = vmatmul.bf16.gmra.mxu0 %v438
  %v1238 = vpop.f32.mrf.mxu0
  %v1239 = vadd.f32 %v1190, %v1238
  %v1240 = vpop.f32.mrf.mxu0
  %v1241 = vadd.f32 %v1192, %v1240
  %1242 = vmatmul.bf16.gmra.mxu0 %v446
  %v1243 = vpop.f32.mrf.mxu0
  %v1244 = vadd.f32 %v1195, %v1243
  %v1245 = vpop.f32.mrf.mxu0
  %v1246 = vadd.f32 %v1197, %v1245
  %1247 = vmatmul.bf16.gmra.mxu0 %v454
  %v1248 = vpop.f32.mrf.mxu0
  %v1249 = vadd.f32 %v1200, %v1248
  %v1250 = vpop.f32.mrf.mxu0
  %v1251 = vadd.f32 %v1202, %v1250
  %1252 = vmatmul.bf16.gmra.mxu0 %v462
  %v1253 = vpop.f32.mrf.mxu0
  %v1254 = vadd.f32 %v1205, %v1253
  %v1255 = vpop.f32.mrf.mxu0
  %v1256 = vadd.f32 %v1207, %v1255
  %1257 = vmatmul.bf16.gmra.mxu0 %v470
  %v1258 = vpop.f32.mrf.mxu0
  %v1259 = vadd.f32 %v1210, %v1258
  %v1260 = vpop.f32.mrf.mxu0
  %v1261 = vadd.f32 %v1212, %v1260
  %1262 = vdwg.mxu0
  %1263 = vmatpush.bf16.msra.mxu0 %v855
  %1264 = vmatpush.bf16.msra.mxu0 %v854
  %1265 = vmatpush.bf16.msra.mxu0 %v853
  %1266 = vmatpush.bf16.msra.mxu0 %v852
  %1267 = vmatpush.bf16.msra.mxu0 %v851
  %1268 = vmatpush.bf16.msra.mxu0 %v850
  %1269 = vmatpush.bf16.msra.mxu0 %v849
  %1270 = vmatpush.bf16.msra.mxu0 %v848
  %1271 = vmatmul.bf16.gmra.mxu0 %v415
  %v1272 = vpop.f32.mrf.mxu0
  %v1273 = vadd.f32 %v1224, %v1272
  %v1274 = vpop.f32.mrf.mxu0
  %v1275 = vadd.f32 %v1226, %v1274
  %1276 = vmatmul.bf16.gmra.mxu0 %v423
  %v1277 = vpop.f32.mrf.mxu0
  %v1278 = vadd.f32 %v1229, %v1277
  %v1279 = vpop.f32.mrf.mxu0
  %v1280 = vadd.f32 %v1231, %v1279
  %1281 = vmatmul.bf16.gmra.mxu0 %v431
  %v1282 = vpop.f32.mrf.mxu0
  %v1283 = vadd.f32 %v1234, %v1282
  %v1284 = vpop.f32.mrf.mxu0
  %v1285 = vadd.f32 %v1236, %v1284
  %1286 = vmatmul.bf16.gmra.mxu0 %v439
  %v1287 = vpop.f32.mrf.mxu0
  %v1288 = vadd.f32 %v1239, %v1287
  %v1289 = vpop.f32.mrf.mxu0
  %v1290 = vadd.f32 %v1241, %v1289
  %1291 = vmatmul.bf16.gmra.mxu0 %v447
  %v1292 = vpop.f32.mrf.mxu0
  %v1293 = vadd.f32 %v1244, %v1292
  %v1294 = vpop.f32.mrf.mxu0
  %v1295 = vadd.f32 %v1246, %v1294
  %1296 = vmatmul.bf16.gmra.mxu0 %v455
  %v1297 = vpop.f32.mrf.mxu0
  %v1298 = vadd.f32 %v1249, %v1297
  %v1299 = vpop.f32.mrf.mxu0
  %v1300 = vadd.f32 %v1251, %v1299
  %1301 = vmatmul.bf16.gmra.mxu0 %v463
  %v1302 = vpop.f32.mrf.mxu0
  %v1303 = vadd.f32 %v1254, %v1302
  %v1304 = vpop.f32.mrf.mxu0
  %v1305 = vadd.f32 %v1256, %v1304
  %1306 = vmatmul.bf16.gmra.mxu0 %v471
  %v1307 = vpop.f32.mrf.mxu0
  %v1308 = vadd.f32 %v1259, %v1307
  %v1309 = vpop.f32.mrf.mxu0
  %v1310 = vadd.f32 %v1261, %v1309
  %1311 = vdwg.mxu0
  %vm1312 = vcmp.ge.f32.partialorder %v1273, 0.0
  %vm1313 = vcmp.ge.f32.partialorder %v1275, 0.0
  %vm1314 = vcmp.ge.f32.partialorder %v1278, 0.0
  %vm1315 = vcmp.ge.f32.partialorder %v1280, 0.0
  %vm1316 = vcmp.ge.f32.partialorder %v1283, 0.0
  %vm1317 = vcmp.ge.f32.partialorder %v1285, 0.0
  %vm1318 = vcmp.ge.f32.partialorder %v1288, 0.0
  %vm1319 = vcmp.ge.f32.partialorder %v1290, 0.0
  %vm1320 = vcmp.ge.f32.partialorder %v1293, 0.0
  %vm1321 = vcmp.ge.f32.partialorder %v1295, 0.0
  %vm1322 = vcmp.ge.f32.partialorder %v1298, 0.0
  %vm1323 = vcmp.ge.f32.partialorder %v1300, 0.0
  %vm1324 = vcmp.ge.f32.partialorder %v1303, 0.0
  %vm1325 = vcmp.ge.f32.partialorder %v1305, 0.0
  %vm1326 = vcmp.ge.f32.partialorder %v1308, 0.0
  %vm1327 = vcmp.ge.f32.partialorder %v1310, 0.0
  %v1328 = vmul.f32 %v1273, 0.1
  %v1329 = vmul.f32 %v1275, 0.1
  %v1330 = vmul.f32 %v1278, 0.1
  %v1331 = vmul.f32 %v1280, 0.1
  %v1332 = vmul.f32 %v1283, 0.1
  %v1333 = vmul.f32 %v1285, 0.1
  %v1334 = vmul.f32 %v1288, 0.1
  %v1335 = vmul.f32 %v1290, 0.1
  %v1336 = vmul.f32 %v1293, 0.1
  %v1337 = vmul.f32 %v1295, 0.1
  %v1338 = vmul.f32 %v1298, 0.1
  %v1339 = vmul.f32 %v1300, 0.1
  %v1340 = vmul.f32 %v1303, 0.1
  %v1341 = vmul.f32 %v1305, 0.1
  %v1342 = vmul.f32 %v1308, 0.1
  %v1343 = vmul.f32 %v1310, 0.1
  %v1344 = vsel %vm1312, %v1273, %v1328
  %v1345 = vsel %vm1313, %v1275, %v1329
  %v1346 = vsel %vm1314, %v1278, %v1330
  %v1347 = vsel %vm1315, %v1280, %v1331
  %v1348 = vsel %vm1316, %v1283, %v1332
  %v1349 = vsel %vm1317, %v1285, %v1333
  %v1350 = vsel %vm1318, %v1288, %v1334
  %v1351 = vsel %vm1319, %v1290, %v1335
  %v1352 = vsel %vm1320, %v1293, %v1336
  %v1353 = vsel %vm1321, %v1295, %v1337
  %v1354 = vsel %vm1322, %v1298, %v1338
  %v1355 = vsel %vm1323, %v1300, %v1339
  %v1356 = vsel %vm1324, %v1303, %v1340
  %v1357 = vsel %vm1325, %v1305, %v1341
  %v1358 = vsel %vm1326, %v1308, %v1342
  %v1359 = vsel %vm1327, %v1310, %v1343
  %v1360 = vpack.c.bf16 %v1345, %v1344
  %v1361 = vpack.c.bf16 %v1347, %v1346
  %v1362 = vpack.c.bf16 %v1349, %v1348
  %v1363 = vpack.c.bf16 %v1351, %v1350
  %v1364 = vpack.c.bf16 %v1353, %v1352
  %v1365 = vpack.c.bf16 %v1355, %v1354
  %v1366 = vpack.c.bf16 %v1357, %v1356
  %v1367 = vpack.c.bf16 %v1359, %v1358
  %v1368 = vld [vmem:[%s3] sm:$0xf]
  %v1369 = vld [vmem:[%s3 + $0x4] sm:$0xf]
  %v1370 = vld [vmem:[%s3 + $0x8] sm:$0xf]
  %v1371 = vld [vmem:[%s3 + $0xc] sm:$0xf]
  %v1372 = vld [vmem:[%s3 + $0x10] sm:$0xf]
  %v1373 = vld [vmem:[%s3 + $0x14] sm:$0xf]
  %v1374 = vld [vmem:[%s3 + $0x18] sm:$0xf]
  %v1375 = vld [vmem:[%s3 + $0x1c] sm:$0xf]
  %v1376 = vld [vmem:[%s3 + $0x20] sm:$0xf]
  %v1377 = vld [vmem:[%s3 + $0x24] sm:$0xf]
  %v1378 = vld [vmem:[%s3 + $0x28] sm:$0xf]
  %v1379 = vld [vmem:[%s3 + $0x2c] sm:$0xf]
  %v1380 = vld [vmem:[%s3 + $0x30] sm:$0xf]
  %v1381 = vld [vmem:[%s3 + $0x34] sm:$0xf]
  %v1382 = vld [vmem:[%s3 + $0x38] sm:$0xf]
  %v1383 = vld [vmem:[%s3 + $0x3c] sm:$0xf]
  %v1384 = vld [vmem:[%s4] sm:$0x1]
  %v1386 = vperm.slane %v1384, 0
  %v1404 = vunpack.c.l.b16 %v1368
  %v1405 = vunpack.c.l.b16 %v1369
  %v1406 = vunpack.c.l.b16 %v1370
  %v1407 = vunpack.c.l.b16 %v1371
  %v1408 = vunpack.c.l.b16 %v1372
  %v1409 = vunpack.c.l.b16 %v1373
  %v1410 = vunpack.c.l.b16 %v1374
  %v1411 = vunpack.c.l.b16 %v1375
  %v1412 = vunpack.c.l.b16 %v1376
  %v1413 = vunpack.c.l.b16 %v1377
  %v1414 = vunpack.c.l.b16 %v1378
  %v1415 = vunpack.c.l.b16 %v1379
  %v1416 = vunpack.c.l.b16 %v1380
  %v1417 = vunpack.c.l.b16 %v1381
  %v1418 = vunpack.c.l.b16 %v1382
  %v1419 = vunpack.c.l.b16 %v1383
  %v1420 = vpack.c.b16 %v1405, %v1404
  %v1421 = vpack.c.b16 %v1407, %v1406
  %v1422 = vpack.c.b16 %v1409, %v1408
  %v1423 = vpack.c.b16 %v1411, %v1410
  %v1424 = vpack.c.b16 %v1413, %v1412
  %v1425 = vpack.c.b16 %v1415, %v1414
  %v1426 = vpack.c.b16 %v1417, %v1416
  %v1427 = vpack.c.b16 %v1419, %v1418
  %1436 = vmatpush.bf16.msra.mxu0 %v1427
  %1437 = vmatpush.bf16.msra.mxu0 %v1426
  %1438 = vmatpush.bf16.msra.mxu0 %v1425
  %1439 = vmatpush.bf16.msra.mxu0 %v1424
  %1440 = vmatpush.bf16.msra.mxu0 %v1423
  %1441 = vmatpush.bf16.msra.mxu0 %v1422
  %1442 = vmatpush.bf16.msra.mxu0 %v1421
  %1443 = vmatpush.bf16.msra.mxu0 %v1420
  %1444 = vmatmul.bf16.gmra.mxu0 %v1360
  %v1445 = vpop.f32.mrf.mxu0
  %v1446 = vadd.f32 %v1386, %v1445
  %v1447 = vpop.f32.mrf.mxu0
  %v1448 = vadd.f32 %v1386, %v1447
  %1449 = vmatmul.bf16.gmra.mxu0 %v1361
  %v1450 = vpop.f32.mrf.mxu0
  %v1451 = vadd.f32 %v1386, %v1450
  %v1452 = vpop.f32.mrf.mxu0
  %v1453 = vadd.f32 %v1386, %v1452
  %1454 = vmatmul.bf16.gmra.mxu0 %v1362
  %v1455 = vpop.f32.mrf.mxu0
  %v1456 = vadd.f32 %v1386, %v1455
  %v1457 = vpop.f32.mrf.mxu0
  %v1458 = vadd.f32 %v1386, %v1457
  %1459 = vmatmul.bf16.gmra.mxu0 %v1363
  %v1460 = vpop.f32.mrf.mxu0
  %v1461 = vadd.f32 %v1386, %v1460
  %v1462 = vpop.f32.mrf.mxu0
  %v1463 = vadd.f32 %v1386, %v1462
  %1464 = vmatmul.bf16.gmra.mxu0 %v1364
  %v1465 = vpop.f32.mrf.mxu0
  %v1466 = vadd.f32 %v1386, %v1465
  %v1467 = vpop.f32.mrf.mxu0
  %v1468 = vadd.f32 %v1386, %v1467
  %1469 = vmatmul.bf16.gmra.mxu0 %v1365
  %v1470 = vpop.f32.mrf.mxu0
  %v1471 = vadd.f32 %v1386, %v1470
  %v1472 = vpop.f32.mrf.mxu0
  %v1473 = vadd.f32 %v1386, %v1472
  %1474 = vmatmul.bf16.gmra.mxu0 %v1366
  %v1475 = vpop.f32.mrf.mxu0
  %v1476 = vadd.f32 %v1386, %v1475
  %v1477 = vpop.f32.mrf.mxu0
  %v1478 = vadd.f32 %v1386, %v1477
  %1479 = vmatmul.bf16.gmra.mxu0 %v1367
  %v1480 = vpop.f32.mrf.mxu0
  %v1481 = vadd.f32 %v1386, %v1480
  %v1482 = vpop.f32.mrf.mxu0
  %v1483 = vadd.f32 %v1386, %v1482
  %1484 = vdwg.mxu0
  %1485 = vst [vmem:[%s5] sm:$0xff] %v1446
  %1486 = vst [vmem:[%s5 + $0x8] sm:$0xff] %v1448
  %1487 = vst [vmem:[%s5 + $0x10] sm:$0xff] %v1451
  %1488 = vst [vmem:[%s5 + $0x18] sm:$0xff] %v1453
  %1489 = vst [vmem:[%s5 + $0x20] sm:$0xff] %v1456
  %1490 = vst [vmem:[%s5 + $0x28] sm:$0xff] %v1458
  %1491 = vst [vmem:[%s5 + $0x30] sm:$0xff] %v1461
  %1492 = vst [vmem:[%s5 + $0x38] sm:$0xff] %v1463
  %1493 = vst [vmem:[%s5 + $0x40] sm:$0xff] %v1466
  %1494 = vst [vmem:[%s5 + $0x48] sm:$0xff] %v1468
  %1495 = vst [vmem:[%s5 + $0x50] sm:$0xff] %v1471
  %1496 = vst [vmem:[%s5 + $0x58] sm:$0xff] %v1473
  %1497 = vst [vmem:[%s5 + $0x60] sm:$0xff] %v1476
  %1498 = vst [vmem:[%s5 + $0x68] sm:$0xff] %v1478
  %1499 = vst [vmem:[%s5 + $0x70] sm:$0xff] %v1481
  %1500 = vst [vmem:[%s5 + $0x78] sm:$0xff] %v1483
  // Predicated region
  $region22: #{down_fwd.3} parent=0 // pred_check
    _
  $region23: #{down_fwd.3} parent=0 // pred_check_branch
    %1502 = sbr.rel (0) target = $region25
  $region24: #{down_fwd.3} parent=0 // pred_region
    _
  $region25: #{down_fwd.3} parent=0 // pred_fallthru
    _
  // Predicated region
  $region26: #{down_fwd.3} parent=0 // pred_check
    _
  $region27: #{down_fwd.3} parent=0 // pred_check_branch
    %1504 = sbr.rel (0) target = $region29
  $region28: #{down_fwd.3} parent=0 // pred_region
    _
  $region29: #{down_fwd.3} parent=0 // pred_fallthru
    _

// kernel: down_fwd.4
$region0: #{down_fwd.4}
  #allocation0 [shape = 'u32[]', space=smem, size = 0x4, offset = 0x4, fixed_abs, tag = 'smem constant byte address 0x4 - core index']
  #allocation1 [shape = 'u32[72,128]{1,0:T(1,128)}', space=vmem, size = 0x9000, scoped, tag = 'internal scratch']
  %s0 = inlined_call_operand.vmem [shape: bf16[128,1152], index: 0, kind: input, shape index: {}]
  %s1 = inlined_call_operand.vmem [shape: bf16[1152,128], index: 1, kind: input, shape index: {}]
  %s2 = inlined_call_operand.vmem [shape: f32[1,128], index: 2, kind: input, shape index: {}]
  %s3 = inlined_call_operand.vmem [shape: f32[128,128], index: 3, kind: output, shape index: {}]
  %s4 = sld [smem:[#allocation0]]
  $region22: #{down_fwd.4} parent=0
    _
  %s6 = ssub.s32 1, %s4
  %s7 = scalar_select 0, %s6, %s4
  // Predicated region
  $region2: #{down_fwd.4} parent=0 // pred_check
    _
  $region3: #{down_fwd.4} parent=0 // pred_check_branch
    %9 = sbr.rel (0) target = $region5
  $region4: #{down_fwd.4} parent=0 // pred_region
    _
  $region5: #{down_fwd.4} parent=0 // pred_fallthru
    _
  // Predicated region
  $region6: #{down_fwd.4} parent=0 // pred_check
    _
  $region7: #{down_fwd.4} parent=0 // pred_check_branch
    %11 = sbr.rel (0) target = $region9
  $region8: #{down_fwd.4} parent=0 // pred_region
    _
  $region9: #{down_fwd.4} parent=0 // pred_fallthru
    _
  // Predicated region
  $region10: #{down_fwd.4} parent=0 // pred_check
    _
  $region11: #{down_fwd.4} parent=0 // pred_check_branch
    %13 = sbr.rel (0) target = $region13
  $region12: #{down_fwd.4} parent=0 // pred_region
    _
  $region13: #{down_fwd.4} parent=0 // pred_fallthru
    _
  %v14 = vld [vmem:[%s0] sm:$0xff]
  %v15 = vld [vmem:[%s0 + $0x8] sm:$0xff]
  %v16 = vld [vmem:[%s0 + $0x10] sm:$0xff]
  %v17 = vld [vmem:[%s0 + $0x18] sm:$0xff]
  %v18 = vld [vmem:[%s0 + $0x20] sm:$0xf]
  %v19 = vld [vmem:[%s0 + $0x24] sm:$0xff]
  %v20 = vld [vmem:[%s0 + $0x2c] sm:$0xff]
  %v21 = vld [vmem:[%s0 + $0x34] sm:$0xff]
  %v22 = vld [vmem:[%s0 + $0x3c] sm:$0xff]
  %v23 = vld [vmem:[%s0 + $0x44] sm:$0xf]
  %v24 = vld [vmem:[%s0 + $0x48] sm:$0xff]
  %v25 = vld [vmem:[%s0 + $0x50] sm:$0xff]
  %v26 = vld [vmem:[%s0 + $0x58] sm:$0xff]
  %v27 = vld [vmem:[%s0 + $0x60] sm:$0xff]
  %v28 = vld [vmem:[%s0 + $0x68] sm:$0xf]
  %v29 = vld [vmem:[%s0 + $0x6c] sm:$0xff]
  %v30 = vld [vmem:[%s0 + $0x74] sm:$0xff]
  %v31 = vld [vmem:[%s0 + $0x7c] sm:$0xff]
  %v32 = vld [vmem:[%s0 + $0x84] sm:$0xff]
  %v33 = vld [vmem:[%s0 + $0x8c] sm:$0xf]
  %v34 = vld [vmem:[%s0 + $0x90] sm:$0xff]
  %v35 = vld [vmem:[%s0 + $0x98] sm:$0xff]
  %v36 = vld [vmem:[%s0 + $0xa0] sm:$0xff]
  %v37 = vld [vmem:[%s0 + $0xa8] sm:$0xff]
  %v38 = vld [vmem:[%s0 + $0xb0] sm:$0xf]
  %v39 = vld [vmem:[%s0 + $0xb4] sm:$0xff]
  %v40 = vld [vmem:[%s0 + $0xbc] sm:$0xff]
  %v41 = vld [vmem:[%s0 + $0xc4] sm:$0xff]
  %v42 = vld [vmem:[%s0 + $0xcc] sm:$0xff]
  %v43 = vld [vmem:[%s0 + $0xd4] sm:$0xf]
  %v44 = vld [vmem:[%s0 + $0xd8] sm:$0xff]
  %v45 = vld [vmem:[%s0 + $0xe0] sm:$0xff]
  %v46 = vld [vmem:[%s0 + $0xe8] sm:$0xff]
  %v47 = vld [vmem:[%s0 + $0xf0] sm:$0xff]
  %v48 = vld [vmem:[%s0 + $0xf8] sm:$0xf]
  %v49 = vld [vmem:[%s0 + $0xfc] sm:$0xff]
  %v50 = vld [vmem:[%s0 + $0x104] sm:$0xff]
  %v51 = vld [vmem:[%s0 + $0x10c] sm:$0xff]
  %v52 = vld [vmem:[%s0 + $0x114] sm:$0xff]
  %v53 = vld [vmem:[%s0 + $0x11c] sm:$0xf]
  %v54 = vld [vmem:[%s0 + $0x120] sm:$0xff]
  %v55 = vld [vmem:[%s0 + $0x128] sm:$0xff]
  %v56 = vld [vmem:[%s0 + $0x130] sm:$0xff]
  %v57 = vld [vmem:[%s0 + $0x138] sm:$0xff]
  %v58 = vld [vmem:[%s0 + $0x140] sm:$0xf]
  %v59 = vld [vmem:[%s0 + $0x144] sm:$0xff]
  %v60 = vld [vmem:[%s0 + $0x14c] sm:$0xff]
  %v61 = vld [vmem:[%s0 + $0x154] sm:$0xff]
  %v62 = vld [vmem:[%s0 + $0x15c] sm:$0xff]
  %v63 = vld [vmem:[%s0 + $0x164] sm:$0xf]
  %v64 = vld [vmem:[%s0 + $0x168] sm:$0xff]
  %v65 = vld [vmem:[%s0 + $0x170] sm:$0xff]
  %v66 = vld [vmem:[%s0 + $0x178] sm:$0xff]
  %v67 = vld [vmem:[%s0 + $0x180] sm:$0xff]
  %v68 = vld [vmem:[%s0 + $0x188] sm:$0xf]
  %v69 = vld [vmem:[%s0 + $0x18c] sm:$0xff]
  %v70 = vld [vmem:[%s0 + $0x194] sm:$0xff]
  %v71 = vld [vmem:[%s0 + $0x19c] sm:$0xff]
  %v72 = vld [vmem:[%s0 + $0x1a4] sm:$0xff]
  %v73 = vld [vmem:[%s0 + $0x1ac] sm:$0xf]
  %v74 = vld [vmem:[%s0 + $0x1b0] sm:$0xff]
  %v75 = vld [vmem:[%s0 + $0x1b8] sm:$0xff]
  %v76 = vld [vmem:[%s0 + $0x1c0] sm:$0xff]
  %v77 = vld [vmem:[%s0 + $0x1c8] sm:$0xff]
  %v78 = vld [vmem:[%s0 + $0x1d0] sm:$0xf]
  %v79 = vld [vmem:[%s0 + $0x1d4] sm:$0xff]
  %v80 = vld [vmem:[%s0 + $0x1dc] sm:$0xff]
  %v81 = vld [vmem:[%s0 + $0x1e4] sm:$0xff]
  %v82 = vld [vmem:[%s0 + $0x1ec] sm:$0xff]
  %v83 = vld [vmem:[%s0 + $0x1f4] sm:$0xf]
  %v84 = vld [vmem:[%s0 + $0x1f8] sm:$0xff]
  %v85 = vld [vmem:[%s0 + $0x200] sm:$0xff]
  %v86 = vld [vmem:[%s0 + $0x208] sm:$0xff]
  %v87 = vld [vmem:[%s0 + $0x210] sm:$0xff]
  %v88 = vld [vmem:[%s0 + $0x218] sm:$0xf]
  %v89 = vld [vmem:[%s0 + $0x21c] sm:$0xff]
  %v90 = vld [vmem:[%s0 + $0x224] sm:$0xff]
  %v91 = vld [vmem:[%s0 + $0x22c] sm:$0xff]
  %v92 = vld [vmem:[%s0 + $0x234] sm:$0xff]
  %v93 = vld [vmem:[%s0 + $0x23c] sm:$0xf]
  %v94 = vld [vmem:[%s1] sm:$0xf]
  %v95 = vld [vmem:[%s1 + $0x4] sm:$0xf]
  %v96 = vld [vmem:[%s1 + $0x8] sm:$0xf]
  %v97 = vld [vmem:[%s1 + $0xc] sm:$0xf]
  %v98 = vld [vmem:[%s1 + $0x10] sm:$0xf]
  %v99 = vld [vmem:[%s1 + $0x14] sm:$0xf]
  %v100 = vld [vmem:[%s1 + $0x18] sm:$0xf]
  %v101 = vld [vmem:[%s1 + $0x1c] sm:$0xf]
  %v102 = vld [vmem:[%s1 + $0x20] sm:$0xf]
  %v103 = vld [vmem:[%s1 + $0x24] sm:$0xf]
  %v104 = vld [vmem:[%s1 + $0x28] sm:$0xf]
  %v105 = vld [vmem:[%s1 + $0x2c] sm:$0xf]
  %v106 = vld [vmem:[%s1 + $0x30] sm:$0xf]
  %v107 = vld [vmem:[%s1 + $0x34] sm:$0xf]
  %v108 = vld [vmem:[%s1 + $0x38] sm:$0xf]
  %v109 = vld [vmem:[%s1 + $0x3c] sm:$0xf]
  %v110 = vld [vmem:[%s1 + $0x40] sm:$0xf]
  %v111 = vld [vmem:[%s1 + $0x44] sm:$0xf]
  %v112 = vld [vmem:[%s1 + $0x48] sm:$0xf]
  %v113 = vld [vmem:[%s1 + $0x4c] sm:$0xf]
  %v114 = vld [vmem:[%s1 + $0x50] sm:$0xf]
  %v115 = vld [vmem:[%s1 + $0x54] sm:$0xf]
  %v116 = vld [vmem:[%s1 + $0x58] sm:$0xf]
  %v117 = vld [vmem:[%s1 + $0x5c] sm:$0xf]
  %v118 = vld [vmem:[%s1 + $0x60] sm:$0xf]
  %v119 = vld [vmem:[%s1 + $0x64] sm:$0xf]
  %v120 = vld [vmem:[%s1 + $0x68] sm:$0xf]
  %v121 = vld [vmem:[%s1 + $0x6c] sm:$0xf]
  %v122 = vld [vmem:[%s1 + $0x70] sm:$0xf]
  %v123 = vld [vmem:[%s1 + $0x74] sm:$0xf]
  %v124 = vld [vmem:[%s1 + $0x78] sm:$0xf]
  %v125 = vld [vmem:[%s1 + $0x7c] sm:$0xf]
  %v126 = vld [vmem:[%s1 + $0x80] sm:$0xf]
  %v127 = vld [vmem:[%s1 + $0x84] sm:$0xf]
  %v128 = vld [vmem:[%s1 + $0x88] sm:$0xf]
  %v129 = vld [vmem:[%s1 + $0x8c] sm:$0xf]
  %v130 = vld [vmem:[%s1 + $0x90] sm:$0xf]
  %v131 = vld [vmem:[%s1 + $0x94] sm:$0xf]
  %v132 = vld [vmem:[%s1 + $0x98] sm:$0xf]
  %v133 = vld [vmem:[%s1 + $0x9c] sm:$0xf]
  %v134 = vld [vmem:[%s1 + $0xa0] sm:$0xf]
  %v135 = vld [vmem:[%s1 + $0xa4] sm:$0xf]
  %v136 = vld [vmem:[%s1 + $0xa8] sm:$0xf]
  %v137 = vld [vmem:[%s1 + $0xac] sm:$0xf]
  %v138 = vld [vmem:[%s1 + $0xb0] sm:$0xf]
  %v139 = vld [vmem:[%s1 + $0xb4] sm:$0xf]
  %v140 = vld [vmem:[%s1 + $0xb8] sm:$0xf]
  %v141 = vld [vmem:[%s1 + $0xbc] sm:$0xf]
  %v142 = vld [vmem:[%s1 + $0xc0] sm:$0xf]
  %v143 = vld [vmem:[%s1 + $0xc4] sm:$0xf]
  %v144 = vld [vmem:[%s1 + $0xc8] sm:$0xf]
  %v145 = vld [vmem:[%s1 + $0xcc] sm:$0xf]
  %v146 = vld [vmem:[%s1 + $0xd0] sm:$0xf]
  %v147 = vld [vmem:[%s1 + $0xd4] sm:$0xf]
  %v148 = vld [vmem:[%s1 + $0xd8] sm:$0xf]
  %v149 = vld [vmem:[%s1 + $0xdc] sm:$0xf]
  %v150 = vld [vmem:[%s1 + $0xe0] sm:$0xf]
  %v151 = vld [vmem:[%s1 + $0xe4] sm:$0xf]
  %v152 = vld [vmem:[%s1 + $0xe8] sm:$0xf]
  %v153 = vld [vmem:[%s1 + $0xec] sm:$0xf]
  %v154 = vld [vmem:[%s1 + $0xf0] sm:$0xf]
  %v155 = vld [vmem:[%s1 + $0xf4] sm:$0xf]
  %v156 = vld [vmem:[%s1 + $0xf8] sm:$0xf]
  %v157 = vld [vmem:[%s1 + $0xfc] sm:$0xf]
  %v158 = vld [vmem:[%s1 + $0x100] sm:$0xf]
  %v159 = vld [vmem:[%s1 + $0x104] sm:$0xf]
  %v160 = vld [vmem:[%s1 + $0x108] sm:$0xf]
  %v161 = vld [vmem:[%s1 + $0x10c] sm:$0xf]
  %v162 = vld [vmem:[%s1 + $0x110] sm:$0xf]
  %v163 = vld [vmem:[%s1 + $0x114] sm:$0xf]
  %v164 = vld [vmem:[%s1 + $0x118] sm:$0xf]
  %v165 = vld [vmem:[%s1 + $0x11c] sm:$0xf]
  %v166 = vld [vmem:[%s1 + $0x120] sm:$0xf]
  %v167 = vld [vmem:[%s1 + $0x124] sm:$0xf]
  %v168 = vld [vmem:[%s1 + $0x128] sm:$0xf]
  %v169 = vld [vmem:[%s1 + $0x12c] sm:$0xf]
  %v170 = vld [vmem:[%s1 + $0x130] sm:$0xf]
  %v171 = vld [vmem:[%s1 + $0x134] sm:$0xf]
  %v172 = vld [vmem:[%s1 + $0x138] sm:$0xf]
  %v173 = vld [vmem:[%s1 + $0x13c] sm:$0xf]
  %v174 = vld [vmem:[%s1 + $0x140] sm:$0xf]
  %v175 = vld [vmem:[%s1 + $0x144] sm:$0xf]
  %v176 = vld [vmem:[%s1 + $0x148] sm:$0xf]
  %v177 = vld [vmem:[%s1 + $0x14c] sm:$0xf]
  %v178 = vld [vmem:[%s1 + $0x150] sm:$0xf]
  %v179 = vld [vmem:[%s1 + $0x154] sm:$0xf]
  %v180 = vld [vmem:[%s1 + $0x158] sm:$0xf]
  %v181 = vld [vmem:[%s1 + $0x15c] sm:$0xf]
  %v182 = vld [vmem:[%s1 + $0x160] sm:$0xf]
  %v183 = vld [vmem:[%s1 + $0x164] sm:$0xf]
  %v184 = vld [vmem:[%s1 + $0x168] sm:$0xf]
  %v185 = vld [vmem:[%s1 + $0x16c] sm:$0xf]
  %v186 = vld [vmem:[%s1 + $0x170] sm:$0xf]
  %v187 = vld [vmem:[%s1 + $0x174] sm:$0xf]
  %v188 = vld [vmem:[%s1 + $0x178] sm:$0xf]
  %v189 = vld [vmem:[%s1 + $0x17c] sm:$0xf]
  %v190 = vld [vmem:[%s1 + $0x180] sm:$0xf]
  %v191 = vld [vmem:[%s1 + $0x184] sm:$0xf]
  %v192 = vld [vmem:[%s1 + $0x188] sm:$0xf]
  %v193 = vld [vmem:[%s1 + $0x18c] sm:$0xf]
  %v194 = vld [vmem:[%s1 + $0x190] sm:$0xf]
  %v195 = vld [vmem:[%s1 + $0x194] sm:$0xf]
  %v196 = vld [vmem:[%s1 + $0x198] sm:$0xf]
  %v197 = vld [vmem:[%s1 + $0x19c] sm:$0xf]
  %v198 = vld [vmem:[%s1 + $0x1a0] sm:$0xf]
  %v199 = vld [vmem:[%s1 + $0x1a4] sm:$0xf]
  %v200 = vld [vmem:[%s1 + $0x1a8] sm:$0xf]
  %v201 = vld [vmem:[%s1 + $0x1ac] sm:$0xf]
  %v202 = vld [vmem:[%s1 + $0x1b0] sm:$0xf]
  %v203 = vld [vmem:[%s1 + $0x1b4] sm:$0xf]
  %v204 = vld [vmem:[%s1 + $0x1b8] sm:$0xf]
  %v205 = vld [vmem:[%s1 + $0x1bc] sm:$0xf]
  %v206 = vld [vmem:[%s1 + $0x1c0] sm:$0xf]
  %v207 = vld [vmem:[%s1 + $0x1c4] sm:$0xf]
  %v208 = vld [vmem:[%s1 + $0x1c8] sm:$0xf]
  %v209 = vld [vmem:[%s1 + $0x1cc] sm:$0xf]
  %v210 = vld [vmem:[%s1 + $0x1d0] sm:$0xf]
  %v211 = vld [vmem:[%s1 + $0x1d4] sm:$0xf]
  %v212 = vld [vmem:[%s1 + $0x1d8] sm:$0xf]
  %v213 = vld [vmem:[%s1 + $0x1dc] sm:$0xf]
  %v214 = vld [vmem:[%s1 + $0x1e0] sm:$0xf]
  %v215 = vld [vmem:[%s1 + $0x1e4] sm:$0xf]
  %v216 = vld [vmem:[%s1 + $0x1e8] sm:$0xf]
  %v217 = vld [vmem:[%s1 + $0x1ec] sm:$0xf]
  %v218 = vld [vmem:[%s1 + $0x1f0] sm:$0xf]
  %v219 = vld [vmem:[%s1 + $0x1f4] sm:$0xf]
  %v220 = vld [vmem:[%s1 + $0x1f8] sm:$0xf]
  %v221 = vld [vmem:[%s1 + $0x1fc] sm:$0xf]
  %v222 = vld [vmem:[%s1 + $0x200] sm:$0xf]
  %v223 = vld [vmem:[%s1 + $0x204] sm:$0xf]
  %v224 = vld [vmem:[%s1 + $0x208] sm:$0xf]
  %v225 = vld [vmem:[%s1 + $0x20c] sm:$0xf]
  %v226 = vld [vmem:[%s1 + $0x210] sm:$0xf]
  %v227 = vld [vmem:[%s1 + $0x214] sm:$0xf]
  %v228 = vld [vmem:[%s1 + $0x218] sm:$0xf]
  %v229 = vld [vmem:[%s1 + $0x21c] sm:$0xf]
  %v230 = vld [vmem:[%s1 + $0x220] sm:$0xf]
  %v231 = vld [vmem:[%s1 + $0x224] sm:$0xf]
  %v232 = vld [vmem:[%s1 + $0x228] sm:$0xf]
  %v233 = vld [vmem:[%s1 + $0x22c] sm:$0xf]
  %v234 = vld [vmem:[%s1 + $0x230] sm:$0xf]
  %v235 = vld [vmem:[%s1 + $0x234] sm:$0xf]
  %v236 = vld [vmem:[%s1 + $0x238] sm:$0xf]
  %v237 = vld [vmem:[%s1 + $0x23c] sm:$0xf]
  %v238 = vld [vmem:[%s2] sm:$0x1]
  %v240 = vperm.slane %v238, 0
  %v322 = vunpack.c.l.b16 %v14
  %v323 = vunpack.c.h.b16 %v14
  %v324 = vunpack.c.l.b16 %v15
  %v325 = vunpack.c.h.b16 %v15
  %v326 = vunpack.c.l.b16 %v16
  %v327 = vunpack.c.h.b16 %v16
  %v328 = vunpack.c.l.b16 %v17
  %v329 = vunpack.c.h.b16 %v17
  %v330 = vunpack.c.l.b16 %v18
  %v331 = vunpack.c.l.b16 %v19
  %v332 = vunpack.c.h.b16 %v19
  %v333 = vunpack.c.l.b16 %v20
  %v334 = vunpack.c.h.b16 %v20
  %v335 = vunpack.c.l.b16 %v21
  %v336 = vunpack.c.h.b16 %v21
  %v337 = vunpack.c.l.b16 %v22
  %v338 = vunpack.c.h.b16 %v22
  %v339 = vunpack.c.l.b16 %v23
  %v340 = vunpack.c.l.b16 %v24
  %v341 = vunpack.c.h.b16 %v24
  %v342 = vunpack.c.l.b16 %v25
  %v343 = vunpack.c.h.b16 %v25
  %v344 = vunpack.c.l.b16 %v26
  %v345 = vunpack.c.h.b16 %v26
  %v346 = vunpack.c.l.b16 %v27
  %v347 = vunpack.c.h.b16 %v27
  %v348 = vunpack.c.l.b16 %v28
  %v349 = vunpack.c.l.b16 %v29
  %v350 = vunpack.c.h.b16 %v29
  %v351 = vunpack.c.l.b16 %v30
  %v352 = vunpack.c.h.b16 %v30
  %v353 = vunpack.c.l.b16 %v31
  %v354 = vunpack.c.h.b16 %v31
  %v355 = vunpack.c.l.b16 %v32
  %v356 = vunpack.c.h.b16 %v32
  %v357 = vunpack.c.l.b16 %v33
  %v358 = vunpack.c.l.b16 %v34
  %v359 = vunpack.c.h.b16 %v34
  %v360 = vunpack.c.l.b16 %v35
  %v361 = vunpack.c.h.b16 %v35
  %v362 = vunpack.c.l.b16 %v36
  %v363 = vunpack.c.h.b16 %v36
  %v364 = vunpack.c.l.b16 %v37
  %v365 = vunpack.c.h.b16 %v37
  %v366 = vunpack.c.l.b16 %v38
  %v367 = vunpack.c.l.b16 %v39
  %v368 = vunpack.c.h.b16 %v39
  %v369 = vunpack.c.l.b16 %v40
  %v370 = vunpack.c.h.b16 %v40
  %v371 = vunpack.c.l.b16 %v41
  %v372 = vunpack.c.h.b16 %v41
  %v373 = vunpack.c.l.b16 %v42
  %v374 = vunpack.c.h.b16 %v42
  %v375 = vunpack.c.l.b16 %v43
  %v376 = vunpack.c.l.b16 %v44
  %v377 = vunpack.c.h.b16 %v44
  %v378 = vunpack.c.l.b16 %v45
  %v379 = vunpack.c.h.b16 %v45
  %v380 = vunpack.c.l.b16 %v46
  %v381 = vunpack.c.h.b16 %v46
  %v382 = vunpack.c.l.b16 %v47
  %v383 = vunpack.c.h.b16 %v47
  %v384 = vunpack.c.l.b16 %v48
  %v385 = vunpack.c.l.b16 %v49
  %v386 = vunpack.c.h.b16 %v49
  %v387 = vunpack.c.l.b16 %v50
  %v388 = vunpack.c.h.b16 %v50
  %v389 = vunpack.c.l.b16 %v51
  %v390 = vunpack.c.h.b16 %v51
  %v391 = vunpack.c.l.b16 %v52
  %v392 = vunpack.c.h.b16 %v52
  %v393 = vunpack.c.l.b16 %v53
  %v394 = vunpack.c.l.b16 %v54
  %v395 = vunpack.c.h.b16 %v54
  %v396 = vunpack.c.l.b16 %v55
  %v397 = vunpack.c.h.b16 %v55
  %v398 = vunpack.c.l.b16 %v56
  %v399 = vunpack.c.h.b16 %v56
  %v400 = vunpack.c.l.b16 %v57
  %v401 = vunpack.c.h.b16 %v57
  %v402 = vunpack.c.l.b16 %v58
  %v403 = vunpack.c.l.b16 %v59
  %v404 = vunpack.c.h.b16 %v59
  %v405 = vunpack.c.l.b16 %v60
  %v406 = vunpack.c.h.b16 %v60
  %v407 = vunpack.c.l.b16 %v61
  %v408 = vunpack.c.h.b16 %v61
  %v409 = vunpack.c.l.b16 %v62
  %v410 = vunpack.c.h.b16 %v62
  %v411 = vunpack.c.l.b16 %v63
  %v412 = vunpack.c.l.b16 %v64
  %v413 = vunpack.c.h.b16 %v64
  %v414 = vunpack.c.l.b16 %v65
  %v415 = vunpack.c.h.b16 %v65
  %v416 = vunpack.c.l.b16 %v66
  %v417 = vunpack.c.h.b16 %v66
  %v418 = vunpack.c.l.b16 %v67
  %v419 = vunpack.c.h.b16 %v67
  %v420 = vunpack.c.l.b16 %v68
  %v421 = vunpack.c.l.b16 %v69
  %v422 = vunpack.c.h.b16 %v69
  %v423 = vunpack.c.l.b16 %v70
  %v424 = vunpack.c.h.b16 %v70
  %v425 = vunpack.c.l.b16 %v71
  %v426 = vunpack.c.h.b16 %v71
  %v427 = vunpack.c.l.b16 %v72
  %v428 = vunpack.c.h.b16 %v72
  %v429 = vunpack.c.l.b16 %v73
  %v430 = vunpack.c.l.b16 %v74
  %v431 = vunpack.c.h.b16 %v74
  %v432 = vunpack.c.l.b16 %v75
  %v433 = vunpack.c.h.b16 %v75
  %v434 = vunpack.c.l.b16 %v76
  %v435 = vunpack.c.h.b16 %v76
  %v436 = vunpack.c.l.b16 %v77
  %v437 = vunpack.c.h.b16 %v77
  %v438 = vunpack.c.l.b16 %v78
  %v439 = vunpack.c.l.b16 %v79
  %v440 = vunpack.c.h.b16 %v79
  %v441 = vunpack.c.l.b16 %v80
  %v442 = vunpack.c.h.b16 %v80
  %v443 = vunpack.c.l.b16 %v81
  %v444 = vunpack.c.h.b16 %v81
  %v445 = vunpack.c.l.b16 %v82
  %v446 = vunpack.c.h.b16 %v82
  %v447 = vunpack.c.l.b16 %v83
  %v448 = vunpack.c.l.b16 %v84
  %v449 = vunpack.c.h.b16 %v84
  %v450 = vunpack.c.l.b16 %v85
  %v451 = vunpack.c.h.b16 %v85
  %v452 = vunpack.c.l.b16 %v86
  %v453 = vunpack.c.h.b16 %v86
  %v454 = vunpack.c.l.b16 %v87
  %v455 = vunpack.c.h.b16 %v87
  %v456 = vunpack.c.l.b16 %v88
  %v457 = vunpack.c.l.b16 %v89
  %v458 = vunpack.c.h.b16 %v89
  %v459 = vunpack.c.l.b16 %v90
  %v460 = vunpack.c.h.b16 %v90
  %v461 = vunpack.c.l.b16 %v91
  %v462 = vunpack.c.h.b16 %v91
  %v463 = vunpack.c.l.b16 %v92
  %v464 = vunpack.c.h.b16 %v92
  %v465 = vunpack.c.l.b16 %v93
  %v466 = vpack.c.b16 %v331, %v322
  %v467 = vpack.c.b16 %v332, %v323
  %v468 = vpack.c.b16 %v333, %v324
  %v469 = vpack.c.b16 %v334, %v325
  %v470 = vpack.c.b16 %v335, %v326
  %v471 = vpack.c.b16 %v336, %v327
  %v472 = vpack.c.b16 %v337, %v328
  %v473 = vpack.c.b16 %v338, %v329
  %v474 = vpack.c.b16 %v339, %v330
  %v475 = vpack.c.b16 %v349, %v340
  %v476 = vpack.c.b16 %v350, %v341
  %v477 = vpack.c.b16 %v351, %v342
  %v478 = vpack.c.b16 %v352, %v343
  %v479 = vpack.c.b16 %v353, %v344
  %v480 = vpack.c.b16 %v354, %v345
  %v481 = vpack.c.b16 %v355, %v346
  %v482 = vpack.c.b16 %v356, %v347
  %v483 = vpack.c.b16 %v357, %v348
  %v484 = vpack.c.b16 %v367, %v358
  %v485 = vpack.c.b16 %v368, %v359
  %v486 = vpack.c.b16 %v369, %v360
  %v487 = vpack.c.b16 %v370, %v361
  %v488 = vpack.c.b16 %v371, %v362
  %v489 = vpack.c.b16 %v372, %v363
  %v490 = vpack.c.b16 %v373, %v364
  %v491 = vpack.c.b16 %v374, %v365
  %v492 = vpack.c.b16 %v375, %v366
  %v493 = vpack.c.b16 %v385, %v376
  %v494 = vpack.c.b16 %v386, %v377
  %v495 = vpack.c.b16 %v387, %v378
  %v496 = vpack.c.b16 %v388, %v379
  %v497 = vpack.c.b16 %v389, %v380
  %v498 = vpack.c.b16 %v390, %v381
  %v499 = vpack.c.b16 %v391, %v382
  %v500 = vpack.c.b16 %v392, %v383
  %v501 = vpack.c.b16 %v393, %v384
  %v502 = vpack.c.b16 %v403, %v394
  %v503 = vpack.c.b16 %v404, %v395
  %v504 = vpack.c.b16 %v405, %v396
  %v505 = vpack.c.b16 %v406, %v397
  %v506 = vpack.c.b16 %v407, %v398
  %v507 = vpack.c.b16 %v408, %v399
  %v508 = vpack.c.b16 %v409, %v400
  %v509 = vpack.c.b16 %v410, %v401
  %v510 = vpack.c.b16 %v411, %v402
  %v511 = vpack.c.b16 %v421, %v412
  %v512 = vpack.c.b16 %v422, %v413
  %v513 = vpack.c.b16 %v423, %v414
  %v514 = vpack.c.b16 %v424, %v415
  %v515 = vpack.c.b16 %v425, %v416
  %v516 = vpack.c.b16 %v426, %v417
  %v517 = vpack.c.b16 %v427, %v418
  %v518 = vpack.c.b16 %v428, %v419
  %v519 = vpack.c.b16 %v429, %v420
  %v520 = vpack.c.b16 %v439, %v430
  %v521 = vpack.c.b16 %v440, %v431
  %v522 = vpack.c.b16 %v441, %v432
  %v523 = vpack.c.b16 %v442, %v433
  %v524 = vpack.c.b16 %v443, %v434
  %v525 = vpack.c.b16 %v444, %v435
  %v526 = vpack.c.b16 %v445, %v436
  %v527 = vpack.c.b16 %v446, %v437
  %v528 = vpack.c.b16 %v447, %v438
  %v529 = vpack.c.b16 %v457, %v448
  %v530 = vpack.c.b16 %v458, %v449
  %v531 = vpack.c.b16 %v459, %v450
  %v532 = vpack.c.b16 %v460, %v451
  %v533 = vpack.c.b16 %v461, %v452
  %v534 = vpack.c.b16 %v462, %v453
  %v535 = vpack.c.b16 %v463, %v454
  %v536 = vpack.c.b16 %v464, %v455
  %v537 = vpack.c.b16 %v465, %v456
  %v754 = vunpack.c.l.b16 %v94
  %v755 = vunpack.c.l.b16 %v95
  %v756 = vunpack.c.l.b16 %v96
  %v757 = vunpack.c.l.b16 %v97
  %v758 = vunpack.c.l.b16 %v98
  %v759 = vunpack.c.l.b16 %v99
  %v760 = vunpack.c.l.b16 %v100
  %v761 = vunpack.c.l.b16 %v101
  %v762 = vunpack.c.l.b16 %v102
  %v763 = vunpack.c.l.b16 %v103
  %v764 = vunpack.c.l.b16 %v104
  %v765 = vunpack.c.l.b16 %v105
  %v766 = vunpack.c.l.b16 %v106
  %v767 = vunpack.c.l.b16 %v107
  %v768 = vunpack.c.l.b16 %v108
  %v769 = vunpack.c.l.b16 %v109
  %v770 = vunpack.c.l.b16 %v110
  %v771 = vunpack.c.l.b16 %v111
  %v772 = vunpack.c.l.b16 %v112
  %v773 = vunpack.c.l.b16 %v113
  %v774 = vunpack.c.l.b16 %v114
  %v775 = vunpack.c.l.b16 %v115
  %v776 = vunpack.c.l.b16 %v116
  %v777 = vunpack.c.l.b16 %v117
  %v778 = vunpack.c.l.b16 %v118
  %v779 = vunpack.c.l.b16 %v119
  %v780 = vunpack.c.l.b16 %v120
  %v781 = vunpack.c.l.b16 %v121
  %v782 = vunpack.c.l.b16 %v122
  %v783 = vunpack.c.l.b16 %v123
  %v784 = vunpack.c.l.b16 %v124
  %v785 = vunpack.c.l.b16 %v125
  %v786 = vunpack.c.l.b16 %v126
  %v787 = vunpack.c.l.b16 %v127
  %v788 = vunpack.c.l.b16 %v128
  %v789 = vunpack.c.l.b16 %v129
  %v790 = vunpack.c.l.b16 %v130
  %v791 = vunpack.c.l.b16 %v131
  %v792 = vunpack.c.l.b16 %v132
  %v793 = vunpack.c.l.b16 %v133
  %v794 = vunpack.c.l.b16 %v134
  %v795 = vunpack.c.l.b16 %v135
  %v796 = vunpack.c.l.b16 %v136
  %v797 = vunpack.c.l.b16 %v137
  %v798 = vunpack.c.l.b16 %v138
  %v799 = vunpack.c.l.b16 %v139
  %v800 = vunpack.c.l.b16 %v140
  %v801 = vunpack.c.l.b16 %v141
  %v802 = vunpack.c.l.b16 %v142
  %v803 = vunpack.c.l.b16 %v143
  %v804 = vunpack.c.l.b16 %v144
  %v805 = vunpack.c.l.b16 %v145
  %v806 = vunpack.c.l.b16 %v146
  %v807 = vunpack.c.l.b16 %v147
  %v808 = vunpack.c.l.b16 %v148
  %v809 = vunpack.c.l.b16 %v149
  %v810 = vunpack.c.l.b16 %v150
  %v811 = vunpack.c.l.b16 %v151
  %v812 = vunpack.c.l.b16 %v152
  %v813 = vunpack.c.l.b16 %v153
  %v814 = vunpack.c.l.b16 %v154
  %v815 = vunpack.c.l.b16 %v155
  %v816 = vunpack.c.l.b16 %v156
  %v817 = vunpack.c.l.b16 %v157
  %v818 = vunpack.c.l.b16 %v158
  %v819 = vunpack.c.l.b16 %v159
  %v820 = vunpack.c.l.b16 %v160
  %v821 = vunpack.c.l.b16 %v161
  %v822 = vunpack.c.l.b16 %v162
  %v823 = vunpack.c.l.b16 %v163
  %v824 = vunpack.c.l.b16 %v164
  %v825 = vunpack.c.l.b16 %v165
  %v826 = vunpack.c.l.b16 %v166
  %v827 = vunpack.c.l.b16 %v167
  %v828 = vunpack.c.l.b16 %v168
  %v829 = vunpack.c.l.b16 %v169
  %v830 = vunpack.c.l.b16 %v170
  %v831 = vunpack.c.l.b16 %v171
  %v832 = vunpack.c.l.b16 %v172
  %v833 = vunpack.c.l.b16 %v173
  %v834 = vunpack.c.l.b16 %v174
  %v835 = vunpack.c.l.b16 %v175
  %v836 = vunpack.c.l.b16 %v176
  %v837 = vunpack.c.l.b16 %v177
  %v838 = vunpack.c.l.b16 %v178
  %v839 = vunpack.c.l.b16 %v179
  %v840 = vunpack.c.l.b16 %v180
  %v841 = vunpack.c.l.b16 %v181
  %v842 = vunpack.c.l.b16 %v182
  %v843 = vunpack.c.l.b16 %v183
  %v844 = vunpack.c.l.b16 %v184
  %v845 = vunpack.c.l.b16 %v185
  %v846 = vunpack.c.l.b16 %v186
  %v847 = vunpack.c.l.b16 %v187
  %v848 = vunpack.c.l.b16 %v188
  %v849 = vunpack.c.l.b16 %v189
  %v850 = vunpack.c.l.b16 %v190
  %v851 = vunpack.c.l.b16 %v191
  %v852 = vunpack.c.l.b16 %v192
  %v853 = vunpack.c.l.b16 %v193
  %v854 = vunpack.c.l.b16 %v194
  %v855 = vunpack.c.l.b16 %v195
  %v856 = vunpack.c.l.b16 %v196
  %v857 = vunpack.c.l.b16 %v197
  %v858 = vunpack.c.l.b16 %v198
  %v859 = vunpack.c.l.b16 %v199
  %v860 = vunpack.c.l.b16 %v200
  %v861 = vunpack.c.l.b16 %v201
  %v862 = vunpack.c.l.b16 %v202
  %v863 = vunpack.c.l.b16 %v203
  %v864 = vunpack.c.l.b16 %v204
  %v865 = vunpack.c.l.b16 %v205
  %v866 = vunpack.c.l.b16 %v206
  %v867 = vunpack.c.l.b16 %v207
  %v868 = vunpack.c.l.b16 %v208
  %v869 = vunpack.c.l.b16 %v209
  %v870 = vunpack.c.l.b16 %v210
  %v871 = vunpack.c.l.b16 %v211
  %v872 = vunpack.c.l.b16 %v212
  %v873 = vunpack.c.l.b16 %v213
  %v874 = vunpack.c.l.b16 %v214
  %v875 = vunpack.c.l.b16 %v215
  %v876 = vunpack.c.l.b16 %v216
  %v877 = vunpack.c.l.b16 %v217
  %v878 = vunpack.c.l.b16 %v218
  %v879 = vunpack.c.l.b16 %v219
  %v880 = vunpack.c.l.b16 %v220
  %v881 = vunpack.c.l.b16 %v221
  %v882 = vunpack.c.l.b16 %v222
  %v883 = vunpack.c.l.b16 %v223
  %v884 = vunpack.c.l.b16 %v224
  %v885 = vunpack.c.l.b16 %v225
  %v886 = vunpack.c.l.b16 %v226
  %v887 = vunpack.c.l.b16 %v227
  %v888 = vunpack.c.l.b16 %v228
  %v889 = vunpack.c.l.b16 %v229
  %v890 = vunpack.c.l.b16 %v230
  %v891 = vunpack.c.l.b16 %v231
  %v892 = vunpack.c.l.b16 %v232
  %v893 = vunpack.c.l.b16 %v233
  %v894 = vunpack.c.l.b16 %v234
  %v895 = vunpack.c.l.b16 %v235
  %v896 = vunpack.c.l.b16 %v236
  %v897 = vunpack.c.l.b16 %v237
  %v898 = vpack.c.b16 %v755, %v754
  %v899 = vpack.c.b16 %v757, %v756
  %v900 = vpack.c.b16 %v759, %v758
  %v901 = vpack.c.b16 %v761, %v760
  %v902 = vpack.c.b16 %v763, %v762
  %v903 = vpack.c.b16 %v765, %v764
  %v904 = vpack.c.b16 %v767, %v766
  %v905 = vpack.c.b16 %v769, %v768
  %v906 = vpack.c.b16 %v771, %v770
  %v907 = vpack.c.b16 %v773, %v772
  %v908 = vpack.c.b16 %v775, %v774
  %v909 = vpack.c.b16 %v777, %v776
  %v910 = vpack.c.b16 %v779, %v778
  %v911 = vpack.c.b16 %v781, %v780
  %v912 = vpack.c.b16 %v783, %v782
  %v913 = vpack.c.b16 %v785, %v784
  %v914 = vpack.c.b16 %v787, %v786
  %v915 = vpack.c.b16 %v789, %v788
  %v916 = vpack.c.b16 %v791, %v790
  %v917 = vpack.c.b16 %v793, %v792
  %v918 = vpack.c.b16 %v795, %v794
  %v919 = vpack.c.b16 %v797, %v796
  %v920 = vpack.c.b16 %v799, %v798
  %v921 = vpack.c.b16 %v801, %v800
  %v922 = vpack.c.b16 %v803, %v802
  %v923 = vpack.c.b16 %v805, %v804
  %v924 = vpack.c.b16 %v807, %v806
  %v925 = vpack.c.b16 %v809, %v808
  %v926 = vpack.c.b16 %v811, %v810
  %v927 = vpack.c.b16 %v813, %v812
  %v928 = vpack.c.b16 %v815, %v814
  %v929 = vpack.c.b16 %v817, %v816
  %v930 = vpack.c.b16 %v819, %v818
  %v931 = vpack.c.b16 %v821, %v820
  %v932 = vpack.c.b16 %v823, %v822
  %v933 = vpack.c.b16 %v825, %v824
  %v934 = vpack.c.b16 %v827, %v826
  %v935 = vpack.c.b16 %v829, %v828
  %v936 = vpack.c.b16 %v831, %v830
  %v937 = vpack.c.b16 %v833, %v832
  %v938 = vpack.c.b16 %v835, %v834
  %v939 = vpack.c.b16 %v837, %v836
  %v940 = vpack.c.b16 %v839, %v838
  %v941 = vpack.c.b16 %v841, %v840
  %v942 = vpack.c.b16 %v843, %v842
  %v943 = vpack.c.b16 %v845, %v844
  %v944 = vpack.c.b16 %v847, %v846
  %v945 = vpack.c.b16 %v849, %v848
  %v946 = vpack.c.b16 %v851, %v850
  %v947 = vpack.c.b16 %v853, %v852
  %v948 = vpack.c.b16 %v855, %v854
  %v949 = vpack.c.b16 %v857, %v856
  %v950 = vpack.c.b16 %v859, %v858
  %v951 = vpack.c.b16 %v861, %v860
  %v952 = vpack.c.b16 %v863, %v862
  %v953 = vpack.c.b16 %v865, %v864
  %v954 = vpack.c.b16 %v867, %v866
  %v955 = vpack.c.b16 %v869, %v868
  %v956 = vpack.c.b16 %v871, %v870
  %v957 = vpack.c.b16 %v873, %v872
  %v958 = vpack.c.b16 %v875, %v874
  %v959 = vpack.c.b16 %v877, %v876
  %v960 = vpack.c.b16 %v879, %v878
  %v961 = vpack.c.b16 %v881, %v880
  %v962 = vpack.c.b16 %v883, %v882
  %v963 = vpack.c.b16 %v885, %v884
  %v964 = vpack.c.b16 %v887, %v886
  %v965 = vpack.c.b16 %v889, %v888
  %v966 = vpack.c.b16 %v891, %v890
  %v967 = vpack.c.b16 %v893, %v892
  %v968 = vpack.c.b16 %v895, %v894
  %v969 = vpack.c.b16 %v897, %v896
  %1042 = vmatpush.bf16.msra.mxu0 %v905
  %1043 = vmatpush.bf16.msra.mxu0 %v904
  %1044 = vmatpush.bf16.msra.mxu0 %v903
  %1045 = vmatpush.bf16.msra.mxu0 %v902
  %1046 = vmatpush.bf16.msra.mxu0 %v901
  %1047 = vmatpush.bf16.msra.mxu0 %v900
  %1048 = vmatpush.bf16.msra.mxu0 %v899
  %1049 = vmatpush.bf16.msra.mxu0 %v898
  %1050 = vmatmul.bf16.gmra.mxu0 %v466
  %v1051 = vpop.f32.mrf.mxu0
  %v1052 = vadd.f32 %v240, %v1051
  %v1053 = vpop.f32.mrf.mxu0
  %v1054 = vadd.f32 %v240, %v1053
  %1055 = vmatmul.bf16.gmra.mxu0 %v475
  %v1056 = vpop.f32.mrf.mxu0
  %v1057 = vadd.f32 %v240, %v1056
  %v1058 = vpop.f32.mrf.mxu0
  %v1059 = vadd.f32 %v240, %v1058
  %1060 = vmatmul.bf16.gmra.mxu0 %v484
  %v1061 = vpop.f32.mrf.mxu0
  %v1062 = vadd.f32 %v240, %v1061
  %v1063 = vpop.f32.mrf.mxu0
  %v1064 = vadd.f32 %v240, %v1063
  %1065 = vmatmul.bf16.gmra.mxu0 %v493
  %v1066 = vpop.f32.mrf.mxu0
  %v1067 = vadd.f32 %v240, %v1066
  %v1068 = vpop.f32.mrf.mxu0
  %v1069 = vadd.f32 %v240, %v1068
  %1070 = vmatmul.bf16.gmra.mxu0 %v502
  %v1071 = vpop.f32.mrf.mxu0
  %v1072 = vadd.f32 %v240, %v1071
  %v1073 = vpop.f32.mrf.mxu0
  %v1074 = vadd.f32 %v240, %v1073
  %1075 = vmatmul.bf16.gmra.mxu0 %v511
  %v1076 = vpop.f32.mrf.mxu0
  %v1077 = vadd.f32 %v240, %v1076
  %v1078 = vpop.f32.mrf.mxu0
  %v1079 = vadd.f32 %v240, %v1078
  %1080 = vmatmul.bf16.gmra.mxu0 %v520
  %v1081 = vpop.f32.mrf.mxu0
  %v1082 = vadd.f32 %v240, %v1081
  %v1083 = vpop.f32.mrf.mxu0
  %v1084 = vadd.f32 %v240, %v1083
  %1085 = vmatmul.bf16.gmra.mxu0 %v529
  %v1086 = vpop.f32.mrf.mxu0
  %v1087 = vadd.f32 %v240, %v1086
  %v1088 = vpop.f32.mrf.mxu0
  %v1089 = vadd.f32 %v240, %v1088
  %1090 = vdwg.mxu0
  %1091 = vmatpush.bf16.msra.mxu0 %v913
  %1092 = vmatpush.bf16.msra.mxu0 %v912
  %1093 = vmatpush.bf16.msra.mxu0 %v911
  %1094 = vmatpush.bf16.msra.mxu0 %v910
  %1095 = vmatpush.bf16.msra.mxu0 %v909
  %1096 = vmatpush.bf16.msra.mxu0 %v908
  %1097 = vmatpush.bf16.msra.mxu0 %v907
  %1098 = vmatpush.bf16.msra.mxu0 %v906
  %1099 = vmatmul.bf16.gmra.mxu0 %v467
  %v1100 = vpop.f32.mrf.mxu0
  %v1101 = vadd.f32 %v1052, %v1100
  %v1102 = vpop.f32.mrf.mxu0
  %v1103 = vadd.f32 %v1054, %v1102
  %1104 = vmatmul.bf16.gmra.mxu0 %v476
  %v1105 = vpop.f32.mrf.mxu0
  %v1106 = vadd.f32 %v1057, %v1105
  %v1107 = vpop.f32.mrf.mxu0
  %v1108 = vadd.f32 %v1059, %v1107
  %1109 = vmatmul.bf16.gmra.mxu0 %v485
  %v1110 = vpop.f32.mrf.mxu0
  %v1111 = vadd.f32 %v1062, %v1110
  %v1112 = vpop.f32.mrf.mxu0
  %v1113 = vadd.f32 %v1064, %v1112
  %1114 = vmatmul.bf16.gmra.mxu0 %v494
  %v1115 = vpop.f32.mrf.mxu0
  %v1116 = vadd.f32 %v1067, %v1115
  %v1117 = vpop.f32.mrf.mxu0
  %v1118 = vadd.f32 %v1069, %v1117
  %1119 = vmatmul.bf16.gmra.mxu0 %v503
  %v1120 = vpop.f32.mrf.mxu0
  %v1121 = vadd.f32 %v1072, %v1120
  %v1122 = vpop.f32.mrf.mxu0
  %v1123 = vadd.f32 %v1074, %v1122
  %1124 = vmatmul.bf16.gmra.mxu0 %v512
  %v1125 = vpop.f32.mrf.mxu0
  %v1126 = vadd.f32 %v1077, %v1125
  %v1127 = vpop.f32.mrf.mxu0
  %v1128 = vadd.f32 %v1079, %v1127
  %1129 = vmatmul.bf16.gmra.mxu0 %v521
  %v1130 = vpop.f32.mrf.mxu0
  %v1131 = vadd.f32 %v1082, %v1130
  %v1132 = vpop.f32.mrf.mxu0
  %v1133 = vadd.f32 %v1084, %v1132
  %1134 = vmatmul.bf16.gmra.mxu0 %v530
  %v1135 = vpop.f32.mrf.mxu0
  %v1136 = vadd.f32 %v1087, %v1135
  %v1137 = vpop.f32.mrf.mxu0
  %v1138 = vadd.f32 %v1089, %v1137
  %1139 = vdwg.mxu0
  %1140 = vmatpush.bf16.msra.mxu0 %v921
  %1141 = vmatpush.bf16.msra.mxu0 %v920
  %1142 = vmatpush.bf16.msra.mxu0 %v919
  %1143 = vmatpush.bf16.msra.mxu0 %v918
  %1144 = vmatpush.bf16.msra.mxu0 %v917
  %1145 = vmatpush.bf16.msra.mxu0 %v916
  %1146 = vmatpush.bf16.msra.mxu0 %v915
  %1147 = vmatpush.bf16.msra.mxu0 %v914
  %1148 = vmatmul.bf16.gmra.mxu0 %v468
  %v1149 = vpop.f32.mrf.mxu0
  %v1150 = vadd.f32 %v1101, %v1149
  %v1151 = vpop.f32.mrf.mxu0
  %v1152 = vadd.f32 %v1103, %v1151
  %1153 = vmatmul.bf16.gmra.mxu0 %v477
  %v1154 = vpop.f32.mrf.mxu0
  %v1155 = vadd.f32 %v1106, %v1154
  %v1156 = vpop.f32.mrf.mxu0
  %v1157 = vadd.f32 %v1108, %v1156
  %1158 = vmatmul.bf16.gmra.mxu0 %v486
  %v1159 = vpop.f32.mrf.mxu0
  %v1160 = vadd.f32 %v1111, %v1159
  %v1161 = vpop.f32.mrf.mxu0
  %v1162 = vadd.f32 %v1113, %v1161
  %1163 = vmatmul.bf16.gmra.mxu0 %v495
  %v1164 = vpop.f32.mrf.mxu0
  %v1165 = vadd.f32 %v1116, %v1164
  %v1166 = vpop.f32.mrf.mxu0
  %v1167 = vadd.f32 %v1118, %v1166
  %1168 = vmatmul.bf16.gmra.mxu0 %v504
  %v1169 = vpop.f32.mrf.mxu0
  %v1170 = vadd.f32 %v1121, %v1169
  %v1171 = vpop.f32.mrf.mxu0
  %v1172 = vadd.f32 %v1123, %v1171
  %1173 = vmatmul.bf16.gmra.mxu0 %v513
  %v1174 = vpop.f32.mrf.mxu0
  %v1175 = vadd.f32 %v1126, %v1174
  %v1176 = vpop.f32.mrf.mxu0
  %v1177 = vadd.f32 %v1128, %v1176
  %1178 = vmatmul.bf16.gmra.mxu0 %v522
  %v1179 = vpop.f32.mrf.mxu0
  %v1180 = vadd.f32 %v1131, %v1179
  %v1181 = vpop.f32.mrf.mxu0
  %v1182 = vadd.f32 %v1133, %v1181
  %1183 = vmatmul.bf16.gmra.mxu0 %v531
  %v1184 = vpop.f32.mrf.mxu0
  %v1185 = vadd.f32 %v1136, %v1184
  %v1186 = vpop.f32.mrf.mxu0
  %v1187 = vadd.f32 %v1138, %v1186
  %1188 = vdwg.mxu0
  %1189 = vmatpush.bf16.msra.mxu0 %v929
  %1190 = vmatpush.bf16.msra.mxu0 %v928
  %1191 = vmatpush.bf16.msra.mxu0 %v927
  %1192 = vmatpush.bf16.msra.mxu0 %v926
  %1193 = vmatpush.bf16.msra.mxu0 %v925
  %1194 = vmatpush.bf16.msra.mxu0 %v924
  %1195 = vmatpush.bf16.msra.mxu0 %v923
  %1196 = vmatpush.bf16.msra.mxu0 %v922
  %1197 = vmatmul.bf16.gmra.mxu0 %v469
  %v1198 = vpop.f32.mrf.mxu0
  %v1199 = vadd.f32 %v1150, %v1198
  %v1200 = vpop.f32.mrf.mxu0
  %v1201 = vadd.f32 %v1152, %v1200
  %1202 = vmatmul.bf16.gmra.mxu0 %v478
  %v1203 = vpop.f32.mrf.mxu0
  %v1204 = vadd.f32 %v1155, %v1203
  %v1205 = vpop.f32.mrf.mxu0
  %v1206 = vadd.f32 %v1157, %v1205
  %1207 = vmatmul.bf16.gmra.mxu0 %v487
  %v1208 = vpop.f32.mrf.mxu0
  %v1209 = vadd.f32 %v1160, %v1208
  %v1210 = vpop.f32.mrf.mxu0
  %v1211 = vadd.f32 %v1162, %v1210
  %1212 = vmatmul.bf16.gmra.mxu0 %v496
  %v1213 = vpop.f32.mrf.mxu0
  %v1214 = vadd.f32 %v1165, %v1213
  %v1215 = vpop.f32.mrf.mxu0
  %v1216 = vadd.f32 %v1167, %v1215
  %1217 = vmatmul.bf16.gmra.mxu0 %v505
  %v1218 = vpop.f32.mrf.mxu0
  %v1219 = vadd.f32 %v1170, %v1218
  %v1220 = vpop.f32.mrf.mxu0
  %v1221 = vadd.f32 %v1172, %v1220
  %1222 = vmatmul.bf16.gmra.mxu0 %v514
  %v1223 = vpop.f32.mrf.mxu0
  %v1224 = vadd.f32 %v1175, %v1223
  %v1225 = vpop.f32.mrf.mxu0
  %v1226 = vadd.f32 %v1177, %v1225
  %1227 = vmatmul.bf16.gmra.mxu0 %v523
  %v1228 = vpop.f32.mrf.mxu0
  %v1229 = vadd.f32 %v1180, %v1228
  %v1230 = vpop.f32.mrf.mxu0
  %v1231 = vadd.f32 %v1182, %v1230
  %1232 = vmatmul.bf16.gmra.mxu0 %v532
  %v1233 = vpop.f32.mrf.mxu0
  %v1234 = vadd.f32 %v1185, %v1233
  %v1235 = vpop.f32.mrf.mxu0
  %v1236 = vadd.f32 %v1187, %v1235
  %1237 = vdwg.mxu0
  %1238 = vmatpush.bf16.msra.mxu0 %v937
  %1239 = vmatpush.bf16.msra.mxu0 %v936
  %1240 = vmatpush.bf16.msra.mxu0 %v935
  %1241 = vmatpush.bf16.msra.mxu0 %v934
  %1242 = vmatpush.bf16.msra.mxu0 %v933
  %1243 = vmatpush.bf16.msra.mxu0 %v932
  %1244 = vmatpush.bf16.msra.mxu0 %v931
  %1245 = vmatpush.bf16.msra.mxu0 %v930
  %1246 = vmatmul.bf16.gmra.mxu0 %v470
  %v1247 = vpop.f32.mrf.mxu0
  %v1248 = vadd.f32 %v1199, %v1247
  %v1249 = vpop.f32.mrf.mxu0
  %v1250 = vadd.f32 %v1201, %v1249
  %1251 = vmatmul.bf16.gmra.mxu0 %v479
  %v1252 = vpop.f32.mrf.mxu0
  %v1253 = vadd.f32 %v1204, %v1252
  %v1254 = vpop.f32.mrf.mxu0
  %v1255 = vadd.f32 %v1206, %v1254
  %1256 = vmatmul.bf16.gmra.mxu0 %v488
  %v1257 = vpop.f32.mrf.mxu0
  %v1258 = vadd.f32 %v1209, %v1257
  %v1259 = vpop.f32.mrf.mxu0
  %v1260 = vadd.f32 %v1211, %v1259
  %1261 = vmatmul.bf16.gmra.mxu0 %v497
  %v1262 = vpop.f32.mrf.mxu0
  %v1263 = vadd.f32 %v1214, %v1262
  %v1264 = vpop.f32.mrf.mxu0
  %v1265 = vadd.f32 %v1216, %v1264
  %1266 = vmatmul.bf16.gmra.mxu0 %v506
  %v1267 = vpop.f32.mrf.mxu0
  %v1268 = vadd.f32 %v1219, %v1267
  %v1269 = vpop.f32.mrf.mxu0
  %v1270 = vadd.f32 %v1221, %v1269
  %1271 = vmatmul.bf16.gmra.mxu0 %v515
  %v1272 = vpop.f32.mrf.mxu0
  %v1273 = vadd.f32 %v1224, %v1272
  %v1274 = vpop.f32.mrf.mxu0
  %v1275 = vadd.f32 %v1226, %v1274
  %1276 = vmatmul.bf16.gmra.mxu0 %v524
  %v1277 = vpop.f32.mrf.mxu0
  %v1278 = vadd.f32 %v1229, %v1277
  %v1279 = vpop.f32.mrf.mxu0
  %v1280 = vadd.f32 %v1231, %v1279
  %1281 = vmatmul.bf16.gmra.mxu0 %v533
  %v1282 = vpop.f32.mrf.mxu0
  %v1283 = vadd.f32 %v1234, %v1282
  %v1284 = vpop.f32.mrf.mxu0
  %v1285 = vadd.f32 %v1236, %v1284
  %1286 = vdwg.mxu0
  %1287 = vmatpush.bf16.msra.mxu0 %v945
  %1288 = vmatpush.bf16.msra.mxu0 %v944
  %1289 = vmatpush.bf16.msra.mxu0 %v943
  %1290 = vmatpush.bf16.msra.mxu0 %v942
  %1291 = vmatpush.bf16.msra.mxu0 %v941
  %1292 = vmatpush.bf16.msra.mxu0 %v940
  %1293 = vmatpush.bf16.msra.mxu0 %v939
  %1294 = vmatpush.bf16.msra.mxu0 %v938
  %1295 = vmatmul.bf16.gmra.mxu0 %v471
  %v1296 = vpop.f32.mrf.mxu0
  %v1297 = vadd.f32 %v1248, %v1296
  %v1298 = vpop.f32.mrf.mxu0
  %v1299 = vadd.f32 %v1250, %v1298
  %1300 = vmatmul.bf16.gmra.mxu0 %v480
  %v1301 = vpop.f32.mrf.mxu0
  %v1302 = vadd.f32 %v1253, %v1301
  %v1303 = vpop.f32.mrf.mxu0
  %v1304 = vadd.f32 %v1255, %v1303
  %1305 = vmatmul.bf16.gmra.mxu0 %v489
  %v1306 = vpop.f32.mrf.mxu0
  %v1307 = vadd.f32 %v1258, %v1306
  %v1308 = vpop.f32.mrf.mxu0
  %v1309 = vadd.f32 %v1260, %v1308
  %1310 = vmatmul.bf16.gmra.mxu0 %v498
  %v1311 = vpop.f32.mrf.mxu0
  %v1312 = vadd.f32 %v1263, %v1311
  %v1313 = vpop.f32.mrf.mxu0
  %v1314 = vadd.f32 %v1265, %v1313
  %1315 = vmatmul.bf16.gmra.mxu0 %v507
  %v1316 = vpop.f32.mrf.mxu0
  %v1317 = vadd.f32 %v1268, %v1316
  %v1318 = vpop.f32.mrf.mxu0
  %v1319 = vadd.f32 %v1270, %v1318
  %1320 = vmatmul.bf16.gmra.mxu0 %v516
  %v1321 = vpop.f32.mrf.mxu0
  %v1322 = vadd.f32 %v1273, %v1321
  %v1323 = vpop.f32.mrf.mxu0
  %v1324 = vadd.f32 %v1275, %v1323
  %1325 = vmatmul.bf16.gmra.mxu0 %v525
  %v1326 = vpop.f32.mrf.mxu0
  %v1327 = vadd.f32 %v1278, %v1326
  %v1328 = vpop.f32.mrf.mxu0
  %v1329 = vadd.f32 %v1280, %v1328
  %1330 = vmatmul.bf16.gmra.mxu0 %v534
  %v1331 = vpop.f32.mrf.mxu0
  %v1332 = vadd.f32 %v1283, %v1331
  %v1333 = vpop.f32.mrf.mxu0
  %v1334 = vadd.f32 %v1285, %v1333
  %1335 = vdwg.mxu0
  %1336 = vmatpush.bf16.msra.mxu0 %v953
  %1337 = vmatpush.bf16.msra.mxu0 %v952
  %1338 = vmatpush.bf16.msra.mxu0 %v951
  %1339 = vmatpush.bf16.msra.mxu0 %v950
  %1340 = vmatpush.bf16.msra.mxu0 %v949
  %1341 = vmatpush.bf16.msra.mxu0 %v948
  %1342 = vmatpush.bf16.msra.mxu0 %v947
  %1343 = vmatpush.bf16.msra.mxu0 %v946
  %1344 = vmatmul.bf16.gmra.mxu0 %v472
  %v1345 = vpop.f32.mrf.mxu0
  %v1346 = vadd.f32 %v1297, %v1345
  %v1347 = vpop.f32.mrf.mxu0
  %v1348 = vadd.f32 %v1299, %v1347
  %1349 = vmatmul.bf16.gmra.mxu0 %v481
  %v1350 = vpop.f32.mrf.mxu0
  %v1351 = vadd.f32 %v1302, %v1350
  %v1352 = vpop.f32.mrf.mxu0
  %v1353 = vadd.f32 %v1304, %v1352
  %1354 = vmatmul.bf16.gmra.mxu0 %v490
  %v1355 = vpop.f32.mrf.mxu0
  %v1356 = vadd.f32 %v1307, %v1355
  %v1357 = vpop.f32.mrf.mxu0
  %v1358 = vadd.f32 %v1309, %v1357
  %1359 = vmatmul.bf16.gmra.mxu0 %v499
  %v1360 = vpop.f32.mrf.mxu0
  %v1361 = vadd.f32 %v1312, %v1360
  %v1362 = vpop.f32.mrf.mxu0
  %v1363 = vadd.f32 %v1314, %v1362
  %1364 = vmatmul.bf16.gmra.mxu0 %v508
  %v1365 = vpop.f32.mrf.mxu0
  %v1366 = vadd.f32 %v1317, %v1365
  %v1367 = vpop.f32.mrf.mxu0
  %v1368 = vadd.f32 %v1319, %v1367
  %1369 = vmatmul.bf16.gmra.mxu0 %v517
  %v1370 = vpop.f32.mrf.mxu0
  %v1371 = vadd.f32 %v1322, %v1370
  %v1372 = vpop.f32.mrf.mxu0
  %v1373 = vadd.f32 %v1324, %v1372
  %1374 = vmatmul.bf16.gmra.mxu0 %v526
  %v1375 = vpop.f32.mrf.mxu0
  %v1376 = vadd.f32 %v1327, %v1375
  %v1377 = vpop.f32.mrf.mxu0
  %v1378 = vadd.f32 %v1329, %v1377
  %1379 = vmatmul.bf16.gmra.mxu0 %v535
  %v1380 = vpop.f32.mrf.mxu0
  %v1381 = vadd.f32 %v1332, %v1380
  %v1382 = vpop.f32.mrf.mxu0
  %v1383 = vadd.f32 %v1334, %v1382
  %1384 = vdwg.mxu0
  %1385 = vmatpush.bf16.msra.mxu0 %v961
  %1386 = vmatpush.bf16.msra.mxu0 %v960
  %1387 = vmatpush.bf16.msra.mxu0 %v959
  %1388 = vmatpush.bf16.msra.mxu0 %v958
  %1389 = vmatpush.bf16.msra.mxu0 %v957
  %1390 = vmatpush.bf16.msra.mxu0 %v956
  %1391 = vmatpush.bf16.msra.mxu0 %v955
  %1392 = vmatpush.bf16.msra.mxu0 %v954
  %1393 = vmatmul.bf16.gmra.mxu0 %v473
  %v1394 = vpop.f32.mrf.mxu0
  %v1395 = vadd.f32 %v1346, %v1394
  %v1396 = vpop.f32.mrf.mxu0
  %v1397 = vadd.f32 %v1348, %v1396
  %1398 = vmatmul.bf16.gmra.mxu0 %v482
  %v1399 = vpop.f32.mrf.mxu0
  %v1400 = vadd.f32 %v1351, %v1399
  %v1401 = vpop.f32.mrf.mxu0
  %v1402 = vadd.f32 %v1353, %v1401
  %1403 = vmatmul.bf16.gmra.mxu0 %v491
  %v1404 = vpop.f32.mrf.mxu0
  %v1405 = vadd.f32 %v1356, %v1404
  %v1406 = vpop.f32.mrf.mxu0
  %v1407 = vadd.f32 %v1358, %v1406
  %1408 = vmatmul.bf16.gmra.mxu0 %v500
  %v1409 = vpop.f32.mrf.mxu0
  %v1410 = vadd.f32 %v1361, %v1409
  %v1411 = vpop.f32.mrf.mxu0
  %v1412 = vadd.f32 %v1363, %v1411
  %1413 = vmatmul.bf16.gmra.mxu0 %v509
  %v1414 = vpop.f32.mrf.mxu0
  %v1415 = vadd.f32 %v1366, %v1414
  %v1416 = vpop.f32.mrf.mxu0
  %v1417 = vadd.f32 %v1368, %v1416
  %1418 = vmatmul.bf16.gmra.mxu0 %v518
  %v1419 = vpop.f32.mrf.mxu0
  %v1420 = vadd.f32 %v1371, %v1419
  %v1421 = vpop.f32.mrf.mxu0
  %v1422 = vadd.f32 %v1373, %v1421
  %1423 = vmatmul.bf16.gmra.mxu0 %v527
  %v1424 = vpop.f32.mrf.mxu0
  %v1425 = vadd.f32 %v1376, %v1424
  %v1426 = vpop.f32.mrf.mxu0
  %v1427 = vadd.f32 %v1378, %v1426
  %1428 = vmatmul.bf16.gmra.mxu0 %v536
  %v1429 = vpop.f32.mrf.mxu0
  %v1430 = vadd.f32 %v1381, %v1429
  %v1431 = vpop.f32.mrf.mxu0
  %v1432 = vadd.f32 %v1383, %v1431
  %1433 = vdwg.mxu0
  %1434 = vmatpush.bf16.msra.mxu0 %v969
  %1435 = vmatpush.bf16.msra.mxu0 %v968
  %1436 = vmatpush.bf16.msra.mxu0 %v967
  %1437 = vmatpush.bf16.msra.mxu0 %v966
  %1438 = vmatpush.bf16.msra.mxu0 %v965
  %1439 = vmatpush.bf16.msra.mxu0 %v964
  %1440 = vmatpush.bf16.msra.mxu0 %v963
  %1441 = vmatpush.bf16.msra.mxu0 %v962
  %1442 = vmatmul.bf16.gmra.mxu0 %v474
  %v1443 = vpop.f32.mrf.mxu0
  %v1444 = vadd.f32 %v1395, %v1443
  %v1445 = vpop.f32.mrf.mxu0
  %v1446 = vadd.f32 %v1397, %v1445
  %1447 = vmatmul.bf16.gmra.mxu0 %v483
  %v1448 = vpop.f32.mrf.mxu0
  %v1449 = vadd.f32 %v1400, %v1448
  %v1450 = vpop.f32.mrf.mxu0
  %v1451 = vadd.f32 %v1402, %v1450
  %1452 = vmatmul.bf16.gmra.mxu0 %v492
  %v1453 = vpop.f32.mrf.mxu0
  %v1454 = vadd.f32 %v1405, %v1453
  %v1455 = vpop.f32.mrf.mxu0
  %v1456 = vadd.f32 %v1407, %v1455
  %1457 = vmatmul.bf16.gmra.mxu0 %v501
  %v1458 = vpop.f32.mrf.mxu0
  %v1459 = vadd.f32 %v1410, %v1458
  %v1460 = vpop.f32.mrf.mxu0
  %v1461 = vadd.f32 %v1412, %v1460
  %1462 = vmatmul.bf16.gmra.mxu0 %v510
  %v1463 = vpop.f32.mrf.mxu0
  %v1464 = vadd.f32 %v1415, %v1463
  %v1465 = vpop.f32.mrf.mxu0
  %v1466 = vadd.f32 %v1417, %v1465
  %1467 = vmatmul.bf16.gmra.mxu0 %v519
  %v1468 = vpop.f32.mrf.mxu0
  %v1469 = vadd.f32 %v1420, %v1468
  %v1470 = vpop.f32.mrf.mxu0
  %v1471 = vadd.f32 %v1422, %v1470
  %1472 = vmatmul.bf16.gmra.mxu0 %v528
  %v1473 = vpop.f32.mrf.mxu0
  %v1474 = vadd.f32 %v1425, %v1473
  %v1475 = vpop.f32.mrf.mxu0
  %v1476 = vadd.f32 %v1427, %v1475
  %1477 = vmatmul.bf16.gmra.mxu0 %v537
  %v1478 = vpop.f32.mrf.mxu0
  %v1479 = vadd.f32 %v1430, %v1478
  %v1480 = vpop.f32.mrf.mxu0
  %v1481 = vadd.f32 %v1432, %v1480
  %1482 = vdwg.mxu0
  %1483 = vst [vmem:[%s3] sm:$0xff] %v1444
  %1484 = vst [vmem:[%s3 + $0x8] sm:$0xff] %v1446
  %1485 = vst [vmem:[%s3 + $0x10] sm:$0xff] %v1449
  %1486 = vst [vmem:[%s3 + $0x18] sm:$0xff] %v1451
  %1487 = vst [vmem:[%s3 + $0x20] sm:$0xff] %v1454
  %1488 = vst [vmem:[%s3 + $0x28] sm:$0xff] %v1456
  %1489 = vst [vmem:[%s3 + $0x30] sm:$0xff] %v1459
  %1490 = vst [vmem:[%s3 + $0x38] sm:$0xff] %v1461
  %1491 = vst [vmem:[%s3 + $0x40] sm:$0xff] %v1464
  %1492 = vst [vmem:[%s3 + $0x48] sm:$0xff] %v1466
  %1493 = vst [vmem:[%s3 + $0x50] sm:$0xff] %v1469
  %1494 = vst [vmem:[%s3 + $0x58] sm:$0xff] %v1471
  %1495 = vst [vmem:[%s3 + $0x60] sm:$0xff] %v1474
  %1496 = vst [vmem:[%s3 + $0x68] sm:$0xff] %v1476
  %1497 = vst [vmem:[%s3 + $0x70] sm:$0xff] %v1479
  %1498 = vst [vmem:[%s3 + $0x78] sm:$0xff] %v1481
  // Predicated region
  $region14: #{down_fwd.4} parent=0 // pred_check
    _
  $region15: #{down_fwd.4} parent=0 // pred_check_branch
    %1500 = sbr.rel (0) target = $region17
  $region16: #{down_fwd.4} parent=0 // pred_region
    _
  $region17: #{down_fwd.4} parent=0 // pred_fallthru
    _
  // Predicated region
  $region18: #{down_fwd.4} parent=0 // pred_check
    _
  $region19: #{down_fwd.4} parent=0 // pred_check_branch
    %1502 = sbr.rel (0) target = $region21
  $region20: #{down_fwd.4} parent=0 // pred_region
    _
  $region21: #{down_fwd.4} parent=0 // pred_fallthru
    _

// kernel: down_fwd.5
$region0: #{down_fwd.5}
  #allocation0 [shape = 'u32[]', space=smem, size = 0x4, offset = 0x4, fixed_abs, tag = 'smem constant byte address 0x4 - core index']
  #allocation1 [shape = 'u32[72,128]{1,0:T(1,128)}', space=vmem, size = 0x9000, scoped, tag = 'internal scratch']
  %s0 = inlined_call_operand.vmem [shape: bf16[128,1152], index: 0, kind: input, shape index: {}]
  %s1 = inlined_call_operand.vmem [shape: bf16[1152,128], index: 1, kind: input, shape index: {}]
  %s2 = inlined_call_operand.vmem [shape: f32[1,128], index: 2, kind: input, shape index: {}]
  %s3 = inlined_call_operand.vmem [shape: f32[128,128], index: 3, kind: input, shape index: {}]
  %s4 = inlined_call_operand.hbm [shape: f32[128,128], index: 4, kind: output, shape index: {}]
  %s5 = sld [smem:[#allocation0]]
  $region26: #{down_fwd.5} parent=0
    _
  %s7 = ssub.s32 1, %s5
  %s8 = scalar_select 0, %s7, %s5
  $region1: #{down_fwd.5} parent=0
    #allocation2 [shape = 'u8[65536]{0}', space=vmem, size = 0x10000, scoped, tag = 'output window, operand 0, single buffered']
    #allocation3 [shape = 's32[1]{0}', space=sflag, size = 0x4, scoped, tag = 'scoped memory for down_fwd.5']
    %9 = vsyncpa [#allocation3], 0
    // Predicated region
    $region2: #{down_fwd.5} parent=1 // pred_check
      _
    $region3: #{down_fwd.5} parent=1 // pred_check_branch
      %11 = sbr.rel (0) target = $region5
    $region4: #{down_fwd.5} parent=1 // pred_region
      _
    $region5: #{down_fwd.5} parent=1 // pred_fallthru
      _
    // Predicated region
    $region6: #{down_fwd.5} parent=1 // pred_check
      _
    $region7: #{down_fwd.5} parent=1 // pred_check_branch
      %13 = sbr.rel (0) target = $region9
    $region8: #{down_fwd.5} parent=1 // pred_region
      _
    $region9: #{down_fwd.5} parent=1 // pred_fallthru
      _
    // Predicated region
    $region10: #{down_fwd.5} parent=1 // pred_check
      _
    $region11: #{down_fwd.5} parent=1 // pred_check_branch
      %15 = sbr.rel (0) target = $region13
    $region12: #{down_fwd.5} parent=1 // pred_region
      _
    $region13: #{down_fwd.5} parent=1 // pred_fallthru
      _
    // Predicated region
    $region14: #{down_fwd.5} parent=1 // pred_check
      _
    $region15: #{down_fwd.5} parent=1 // pred_check_branch
      %17 = sbr.rel (0) target = $region17
    $region16: #{down_fwd.5} parent=1 // pred_region
      _
    $region17: #{down_fwd.5} parent=1 // pred_fallthru
      _
    %v18 = vld [vmem:[%s0] sm:$0xff]
    %v19 = vld [vmem:[%s0 + $0x8] sm:$0xff]
    %v20 = vld [vmem:[%s0 + $0x10] sm:$0xff]
    %v21 = vld [vmem:[%s0 + $0x18] sm:$0xff]
    %v22 = vld [vmem:[%s0 + $0x20] sm:$0xf]
    %v23 = vld [vmem:[%s0 + $0x24] sm:$0xff]
    %v24 = vld [vmem:[%s0 + $0x2c] sm:$0xff]
    %v25 = vld [vmem:[%s0 + $0x34] sm:$0xff]
    %v26 = vld [vmem:[%s0 + $0x3c] sm:$0xff]
    %v27 = vld [vmem:[%s0 + $0x44] sm:$0xf]
    %v28 = vld [vmem:[%s0 + $0x48] sm:$0xff]
    %v29 = vld [vmem:[%s0 + $0x50] sm:$0xff]
    %v30 = vld [vmem:[%s0 + $0x58] sm:$0xff]
    %v31 = vld [vmem:[%s0 + $0x60] sm:$0xff]
    %v32 = vld [vmem:[%s0 + $0x68] sm:$0xf]
    %v33 = vld [vmem:[%s0 + $0x6c] sm:$0xff]
    %v34 = vld [vmem:[%s0 + $0x74] sm:$0xff]
    %v35 = vld [vmem:[%s0 + $0x7c] sm:$0xff]
    %v36 = vld [vmem:[%s0 + $0x84] sm:$0xff]
    %v37 = vld [vmem:[%s0 + $0x8c] sm:$0xf]
    %v38 = vld [vmem:[%s0 + $0x90] sm:$0xff]
    %v39 = vld [vmem:[%s0 + $0x98] sm:$0xff]
    %v40 = vld [vmem:[%s0 + $0xa0] sm:$0xff]
    %v41 = vld [vmem:[%s0 + $0xa8] sm:$0xff]
    %v42 = vld [vmem:[%s0 + $0xb0] sm:$0xf]
    %v43 = vld [vmem:[%s0 + $0xb4] sm:$0xff]
    %v44 = vld [vmem:[%s0 + $0xbc] sm:$0xff]
    %v45 = vld [vmem:[%s0 + $0xc4] sm:$0xff]
    %v46 = vld [vmem:[%s0 + $0xcc] sm:$0xff]
    %v47 = vld [vmem:[%s0 + $0xd4] sm:$0xf]
    %v48 = vld [vmem:[%s0 + $0xd8] sm:$0xff]
    %v49 = vld [vmem:[%s0 + $0xe0] sm:$0xff]
    %v50 = vld [vmem:[%s0 + $0xe8] sm:$0xff]
    %v51 = vld [vmem:[%s0 + $0xf0] sm:$0xff]
    %v52 = vld [vmem:[%s0 + $0xf8] sm:$0xf]
    %v53 = vld [vmem:[%s0 + $0xfc] sm:$0xff]
    %v54 = vld [vmem:[%s0 + $0x104] sm:$0xff]
    %v55 = vld [vmem:[%s0 + $0x10c] sm:$0xff]
    %v56 = vld [vmem:[%s0 + $0x114] sm:$0xff]
    %v57 = vld [vmem:[%s0 + $0x11c] sm:$0xf]
    %v58 = vld [vmem:[%s0 + $0x120] sm:$0xff]
    %v59 = vld [vmem:[%s0 + $0x128] sm:$0xff]
    %v60 = vld [vmem:[%s0 + $0x130] sm:$0xff]
    %v61 = vld [vmem:[%s0 + $0x138] sm:$0xff]
    %v62 = vld [vmem:[%s0 + $0x140] sm:$0xf]
    %v63 = vld [vmem:[%s0 + $0x144] sm:$0xff]
    %v64 = vld [vmem:[%s0 + $0x14c] sm:$0xff]
    %v65 = vld [vmem:[%s0 + $0x154] sm:$0xff]
    %v66 = vld [vmem:[%s0 + $0x15c] sm:$0xff]
    %v67 = vld [vmem:[%s0 + $0x164] sm:$0xf]
    %v68 = vld [vmem:[%s0 + $0x168] sm:$0xff]
    %v69 = vld [vmem:[%s0 + $0x170] sm:$0xff]
    %v70 = vld [vmem:[%s0 + $0x178] sm:$0xff]
    %v71 = vld [vmem:[%s0 + $0x180] sm:$0xff]
    %v72 = vld [vmem:[%s0 + $0x188] sm:$0xf]
    %v73 = vld [vmem:[%s0 + $0x18c] sm:$0xff]
    %v74 = vld [vmem:[%s0 + $0x194] sm:$0xff]
    %v75 = vld [vmem:[%s0 + $0x19c] sm:$0xff]
    %v76 = vld [vmem:[%s0 + $0x1a4] sm:$0xff]
    %v77 = vld [vmem:[%s0 + $0x1ac] sm:$0xf]
    %v78 = vld [vmem:[%s0 + $0x1b0] sm:$0xff]
    %v79 = vld [vmem:[%s0 + $0x1b8] sm:$0xff]
    %v80 = vld [vmem:[%s0 + $0x1c0] sm:$0xff]
    %v81 = vld [vmem:[%s0 + $0x1c8] sm:$0xff]
    %v82 = vld [vmem:[%s0 + $0x1d0] sm:$0xf]
    %v83 = vld [vmem:[%s0 + $0x1d4] sm:$0xff]
    %v84 = vld [vmem:[%s0 + $0x1dc] sm:$0xff]
    %v85 = vld [vmem:[%s0 + $0x1e4] sm:$0xff]
    %v86 = vld [vmem:[%s0 + $0x1ec] sm:$0xff]
    %v87 = vld [vmem:[%s0 + $0x1f4] sm:$0xf]
    %v88 = vld [vmem:[%s0 + $0x1f8] sm:$0xff]
    %v89 = vld [vmem:[%s0 + $0x200] sm:$0xff]
    %v90 = vld [vmem:[%s0 + $0x208] sm:$0xff]
    %v91 = vld [vmem:[%s0 + $0x210] sm:$0xff]
    %v92 = vld [vmem:[%s0 + $0x218] sm:$0xf]
    %v93 = vld [vmem:[%s0 + $0x21c] sm:$0xff]
    %v94 = vld [vmem:[%s0 + $0x224] sm:$0xff]
    %v95 = vld [vmem:[%s0 + $0x22c] sm:$0xff]
    %v96 = vld [vmem:[%s0 + $0x234] sm:$0xff]
    %v97 = vld [vmem:[%s0 + $0x23c] sm:$0xf]
    %v98 = vld [vmem:[%s1] sm:$0xf]
    %v99 = vld [vmem:[%s1 + $0x4] sm:$0xf]
    %v100 = vld [vmem:[%s1 + $0x8] sm:$0xf]
    %v101 = vld [vmem:[%s1 + $0xc] sm:$0xf]
    %v102 = vld [vmem:[%s1 + $0x10] sm:$0xf]
    %v103 = vld [vmem:[%s1 + $0x14] sm:$0xf]
    %v104 = vld [vmem:[%s1 + $0x18] sm:$0xf]
    %v105 = vld [vmem:[%s1 + $0x1c] sm:$0xf]
    %v106 = vld [vmem:[%s1 + $0x20] sm:$0xf]
    %v107 = vld [vmem:[%s1 + $0x24] sm:$0xf]
    %v108 = vld [vmem:[%s1 + $0x28] sm:$0xf]
    %v109 = vld [vmem:[%s1 + $0x2c] sm:$0xf]
    %v110 = vld [vmem:[%s1 + $0x30] sm:$0xf]
    %v111 = vld [vmem:[%s1 + $0x34] sm:$0xf]
    %v112 = vld [vmem:[%s1 + $0x38] sm:$0xf]
    %v113 = vld [vmem:[%s1 + $0x3c] sm:$0xf]
    %v114 = vld [vmem:[%s1 + $0x40] sm:$0xf]
    %v115 = vld [vmem:[%s1 + $0x44] sm:$0xf]
    %v116 = vld [vmem:[%s1 + $0x48] sm:$0xf]
    %v117 = vld [vmem:[%s1 + $0x4c] sm:$0xf]
    %v118 = vld [vmem:[%s1 + $0x50] sm:$0xf]
    %v119 = vld [vmem:[%s1 + $0x54] sm:$0xf]
    %v120 = vld [vmem:[%s1 + $0x58] sm:$0xf]
    %v121 = vld [vmem:[%s1 + $0x5c] sm:$0xf]
    %v122 = vld [vmem:[%s1 + $0x60] sm:$0xf]
    %v123 = vld [vmem:[%s1 + $0x64] sm:$0xf]
    %v124 = vld [vmem:[%s1 + $0x68] sm:$0xf]
    %v125 = vld [vmem:[%s1 + $0x6c] sm:$0xf]
    %v126 = vld [vmem:[%s1 + $0x70] sm:$0xf]
    %v127 = vld [vmem:[%s1 + $0x74] sm:$0xf]
    %v128 = vld [vmem:[%s1 + $0x78] sm:$0xf]
    %v129 = vld [vmem:[%s1 + $0x7c] sm:$0xf]
    %v130 = vld [vmem:[%s1 + $0x80] sm:$0xf]
    %v131 = vld [vmem:[%s1 + $0x84] sm:$0xf]
    %v132 = vld [vmem:[%s1 + $0x88] sm:$0xf]
    %v133 = vld [vmem:[%s1 + $0x8c] sm:$0xf]
    %v134 = vld [vmem:[%s1 + $0x90] sm:$0xf]
    %v135 = vld [vmem:[%s1 + $0x94] sm:$0xf]
    %v136 = vld [vmem:[%s1 + $0x98] sm:$0xf]
    %v137 = vld [vmem:[%s1 + $0x9c] sm:$0xf]
    %v138 = vld [vmem:[%s1 + $0xa0] sm:$0xf]
    %v139 = vld [vmem:[%s1 + $0xa4] sm:$0xf]
    %v140 = vld [vmem:[%s1 + $0xa8] sm:$0xf]
    %v141 = vld [vmem:[%s1 + $0xac] sm:$0xf]
    %v142 = vld [vmem:[%s1 + $0xb0] sm:$0xf]
    %v143 = vld [vmem:[%s1 + $0xb4] sm:$0xf]
    %v144 = vld [vmem:[%s1 + $0xb8] sm:$0xf]
    %v145 = vld [vmem:[%s1 + $0xbc] sm:$0xf]
    %v146 = vld [vmem:[%s1 + $0xc0] sm:$0xf]
    %v147 = vld [vmem:[%s1 + $0xc4] sm:$0xf]
    %v148 = vld [vmem:[%s1 + $0xc8] sm:$0xf]
    %v149 = vld [vmem:[%s1 + $0xcc] sm:$0xf]
    %v150 = vld [vmem:[%s1 + $0xd0] sm:$0xf]
    %v151 = vld [vmem:[%s1 + $0xd4] sm:$0xf]
    %v152 = vld [vmem:[%s1 + $0xd8] sm:$0xf]
    %v153 = vld [vmem:[%s1 + $0xdc] sm:$0xf]
    %v154 = vld [vmem:[%s1 + $0xe0] sm:$0xf]
    %v155 = vld [vmem:[%s1 + $0xe4] sm:$0xf]
    %v156 = vld [vmem:[%s1 + $0xe8] sm:$0xf]
    %v157 = vld [vmem:[%s1 + $0xec] sm:$0xf]
    %v158 = vld [vmem:[%s1 + $0xf0] sm:$0xf]
    %v159 = vld [vmem:[%s1 + $0xf4] sm:$0xf]
    %v160 = vld [vmem:[%s1 + $0xf8] sm:$0xf]
    %v161 = vld [vmem:[%s1 + $0xfc] sm:$0xf]
    %v162 = vld [vmem:[%s1 + $0x100] sm:$0xf]
    %v163 = vld [vmem:[%s1 + $0x104] sm:$0xf]
    %v164 = vld [vmem:[%s1 + $0x108] sm:$0xf]
    %v165 = vld [vmem:[%s1 + $0x10c] sm:$0xf]
    %v166 = vld [vmem:[%s1 + $0x110] sm:$0xf]
    %v167 = vld [vmem:[%s1 + $0x114] sm:$0xf]
    %v168 = vld [vmem:[%s1 + $0x118] sm:$0xf]
    %v169 = vld [vmem:[%s1 + $0x11c] sm:$0xf]
    %v170 = vld [vmem:[%s1 + $0x120] sm:$0xf]
    %v171 = vld [vmem:[%s1 + $0x124] sm:$0xf]
    %v172 = vld [vmem:[%s1 + $0x128] sm:$0xf]
    %v173 = vld [vmem:[%s1 + $0x12c] sm:$0xf]
    %v174 = vld [vmem:[%s1 + $0x130] sm:$0xf]
    %v175 = vld [vmem:[%s1 + $0x134] sm:$0xf]
    %v176 = vld [vmem:[%s1 + $0x138] sm:$0xf]
    %v177 = vld [vmem:[%s1 + $0x13c] sm:$0xf]
    %v178 = vld [vmem:[%s1 + $0x140] sm:$0xf]
    %v179 = vld [vmem:[%s1 + $0x144] sm:$0xf]
    %v180 = vld [vmem:[%s1 + $0x148] sm:$0xf]
    %v181 = vld [vmem:[%s1 + $0x14c] sm:$0xf]
    %v182 = vld [vmem:[%s1 + $0x150] sm:$0xf]
    %v183 = vld [vmem:[%s1 + $0x154] sm:$0xf]
    %v184 = vld [vmem:[%s1 + $0x158] sm:$0xf]
    %v185 = vld [vmem:[%s1 + $0x15c] sm:$0xf]
    %v186 = vld [vmem:[%s1 + $0x160] sm:$0xf]
    %v187 = vld [vmem:[%s1 + $0x164] sm:$0xf]
    %v188 = vld [vmem:[%s1 + $0x168] sm:$0xf]
    %v189 = vld [vmem:[%s1 + $0x16c] sm:$0xf]
    %v190 = vld [vmem:[%s1 + $0x170] sm:$0xf]
    %v191 = vld [vmem:[%s1 + $0x174] sm:$0xf]
    %v192 = vld [vmem:[%s1 + $0x178] sm:$0xf]
    %v193 = vld [vmem:[%s1 + $0x17c] sm:$0xf]
    %v194 = vld [vmem:[%s1 + $0x180] sm:$0xf]
    %v195 = vld [vmem:[%s1 + $0x184] sm:$0xf]
    %v196 = vld [vmem:[%s1 + $0x188] sm:$0xf]
    %v197 = vld [vmem:[%s1 + $0x18c] sm:$0xf]
    %v198 = vld [vmem:[%s1 + $0x190] sm:$0xf]
    %v199 = vld [vmem:[%s1 + $0x194] sm:$0xf]
    %v200 = vld [vmem:[%s1 + $0x198] sm:$0xf]
    %v201 = vld [vmem:[%s1 + $0x19c] sm:$0xf]
    %v202 = vld [vmem:[%s1 + $0x1a0] sm:$0xf]
    %v203 = vld [vmem:[%s1 + $0x1a4] sm:$0xf]
    %v204 = vld [vmem:[%s1 + $0x1a8] sm:$0xf]
    %v205 = vld [vmem:[%s1 + $0x1ac] sm:$0xf]
    %v206 = vld [vmem:[%s1 + $0x1b0] sm:$0xf]
    %v207 = vld [vmem:[%s1 + $0x1b4] sm:$0xf]
    %v208 = vld [vmem:[%s1 + $0x1b8] sm:$0xf]
    %v209 = vld [vmem:[%s1 + $0x1bc] sm:$0xf]
    %v210 = vld [vmem:[%s1 + $0x1c0] sm:$0xf]
    %v211 = vld [vmem:[%s1 + $0x1c4] sm:$0xf]
    %v212 = vld [vmem:[%s1 + $0x1c8] sm:$0xf]
    %v213 = vld [vmem:[%s1 + $0x1cc] sm:$0xf]
    %v214 = vld [vmem:[%s1 + $0x1d0] sm:$0xf]
    %v215 = vld [vmem:[%s1 + $0x1d4] sm:$0xf]
    %v216 = vld [vmem:[%s1 + $0x1d8] sm:$0xf]
    %v217 = vld [vmem:[%s1 + $0x1dc] sm:$0xf]
    %v218 = vld [vmem:[%s1 + $0x1e0] sm:$0xf]
    %v219 = vld [vmem:[%s1 + $0x1e4] sm:$0xf]
    %v220 = vld [vmem:[%s1 + $0x1e8] sm:$0xf]
    %v221 = vld [vmem:[%s1 + $0x1ec] sm:$0xf]
    %v222 = vld [vmem:[%s1 + $0x1f0] sm:$0xf]
    %v223 = vld [vmem:[%s1 + $0x1f4] sm:$0xf]
    %v224 = vld [vmem:[%s1 + $0x1f8] sm:$0xf]
    %v225 = vld [vmem:[%s1 + $0x1fc] sm:$0xf]
    %v226 = vld [vmem:[%s1 + $0x200] sm:$0xf]
    %v227 = vld [vmem:[%s1 + $0x204] sm:$0xf]
    %v228 = vld [vmem:[%s1 + $0x208] sm:$0xf]
    %v229 = vld [vmem:[%s1 + $0x20c] sm:$0xf]
    %v230 = vld [vmem:[%s1 + $0x210] sm:$0xf]
    %v231 = vld [vmem:[%s1 + $0x214] sm:$0xf]
    %v232 = vld [vmem:[%s1 + $0x218] sm:$0xf]
    %v233 = vld [vmem:[%s1 + $0x21c] sm:$0xf]
    %v234 = vld [vmem:[%s1 + $0x220] sm:$0xf]
    %v235 = vld [vmem:[%s1 + $0x224] sm:$0xf]
    %v236 = vld [vmem:[%s1 + $0x228] sm:$0xf]
    %v237 = vld [vmem:[%s1 + $0x22c] sm:$0xf]
    %v238 = vld [vmem:[%s1 + $0x230] sm:$0xf]
    %v239 = vld [vmem:[%s1 + $0x234] sm:$0xf]
    %v240 = vld [vmem:[%s1 + $0x238] sm:$0xf]
    %v241 = vld [vmem:[%s1 + $0x23c] sm:$0xf]
    %v242 = vld [vmem:[%s2] sm:$0x1]
    %v244 = vperm.slane %v242, 0
    %v326 = vunpack.c.l.b16 %v18
    %v327 = vunpack.c.h.b16 %v18
    %v328 = vunpack.c.l.b16 %v19
    %v329 = vunpack.c.h.b16 %v19
    %v330 = vunpack.c.l.b16 %v20
    %v331 = vunpack.c.h.b16 %v20
    %v332 = vunpack.c.l.b16 %v21
    %v333 = vunpack.c.h.b16 %v21
    %v334 = vunpack.c.l.b16 %v22
    %v335 = vunpack.c.l.b16 %v23
    %v336 = vunpack.c.h.b16 %v23
    %v337 = vunpack.c.l.b16 %v24
    %v338 = vunpack.c.h.b16 %v24
    %v339 = vunpack.c.l.b16 %v25
    %v340 = vunpack.c.h.b16 %v25
    %v341 = vunpack.c.l.b16 %v26
    %v342 = vunpack.c.h.b16 %v26
    %v343 = vunpack.c.l.b16 %v27
    %v344 = vunpack.c.l.b16 %v28
    %v345 = vunpack.c.h.b16 %v28
    %v346 = vunpack.c.l.b16 %v29
    %v347 = vunpack.c.h.b16 %v29
    %v348 = vunpack.c.l.b16 %v30
    %v349 = vunpack.c.h.b16 %v30
    %v350 = vunpack.c.l.b16 %v31
    %v351 = vunpack.c.h.b16 %v31
    %v352 = vunpack.c.l.b16 %v32
    %v353 = vunpack.c.l.b16 %v33
    %v354 = vunpack.c.h.b16 %v33
    %v355 = vunpack.c.l.b16 %v34
    %v356 = vunpack.c.h.b16 %v34
    %v357 = vunpack.c.l.b16 %v35
    %v358 = vunpack.c.h.b16 %v35
    %v359 = vunpack.c.l.b16 %v36
    %v360 = vunpack.c.h.b16 %v36
    %v361 = vunpack.c.l.b16 %v37
    %v362 = vunpack.c.l.b16 %v38
    %v363 = vunpack.c.h.b16 %v38
    %v364 = vunpack.c.l.b16 %v39
    %v365 = vunpack.c.h.b16 %v39
    %v366 = vunpack.c.l.b16 %v40
    %v367 = vunpack.c.h.b16 %v40
    %v368 = vunpack.c.l.b16 %v41
    %v369 = vunpack.c.h.b16 %v41
    %v370 = vunpack.c.l.b16 %v42
    %v371 = vunpack.c.l.b16 %v43
    %v372 = vunpack.c.h.b16 %v43
    %v373 = vunpack.c.l.b16 %v44
    %v374 = vunpack.c.h.b16 %v44
    %v375 = vunpack.c.l.b16 %v45
    %v376 = vunpack.c.h.b16 %v45
    %v377 = vunpack.c.l.b16 %v46
    %v378 = vunpack.c.h.b16 %v46
    %v379 = vunpack.c.l.b16 %v47
    %v380 = vunpack.c.l.b16 %v48
    %v381 = vunpack.c.h.b16 %v48
    %v382 = vunpack.c.l.b16 %v49
    %v383 = vunpack.c.h.b16 %v49
    %v384 = vunpack.c.l.b16 %v50
    %v385 = vunpack.c.h.b16 %v50
    %v386 = vunpack.c.l.b16 %v51
    %v387 = vunpack.c.h.b16 %v51
    %v388 = vunpack.c.l.b16 %v52
    %v389 = vunpack.c.l.b16 %v53
    %v390 = vunpack.c.h.b16 %v53
    %v391 = vunpack.c.l.b16 %v54
    %v392 = vunpack.c.h.b16 %v54
    %v393 = vunpack.c.l.b16 %v55
    %v394 = vunpack.c.h.b16 %v55
    %v395 = vunpack.c.l.b16 %v56
    %v396 = vunpack.c.h.b16 %v56
    %v397 = vunpack.c.l.b16 %v57
    %v398 = vunpack.c.l.b16 %v58
    %v399 = vunpack.c.h.b16 %v58
    %v400 = vunpack.c.l.b16 %v59
    %v401 = vunpack.c.h.b16 %v59
    %v402 = vunpack.c.l.b16 %v60
    %v403 = vunpack.c.h.b16 %v60
    %v404 = vunpack.c.l.b16 %v61
    %v405 = vunpack.c.h.b16 %v61
    %v406 = vunpack.c.l.b16 %v62
    %v407 = vunpack.c.l.b16 %v63
    %v408 = vunpack.c.h.b16 %v63
    %v409 = vunpack.c.l.b16 %v64
    %v410 = vunpack.c.h.b16 %v64
    %v411 = vunpack.c.l.b16 %v65
    %v412 = vunpack.c.h.b16 %v65
    %v413 = vunpack.c.l.b16 %v66
    %v414 = vunpack.c.h.b16 %v66
    %v415 = vunpack.c.l.b16 %v67
    %v416 = vunpack.c.l.b16 %v68
    %v417 = vunpack.c.h.b16 %v68
    %v418 = vunpack.c.l.b16 %v69
    %v419 = vunpack.c.h.b16 %v69
    %v420 = vunpack.c.l.b16 %v70
    %v421 = vunpack.c.h.b16 %v70
    %v422 = vunpack.c.l.b16 %v71
    %v423 = vunpack.c.h.b16 %v71
    %v424 = vunpack.c.l.b16 %v72
    %v425 = vunpack.c.l.b16 %v73
    %v426 = vunpack.c.h.b16 %v73
    %v427 = vunpack.c.l.b16 %v74
    %v428 = vunpack.c.h.b16 %v74
    %v429 = vunpack.c.l.b16 %v75
    %v430 = vunpack.c.h.b16 %v75
    %v431 = vunpack.c.l.b16 %v76
    %v432 = vunpack.c.h.b16 %v76
    %v433 = vunpack.c.l.b16 %v77
    %v434 = vunpack.c.l.b16 %v78
    %v435 = vunpack.c.h.b16 %v78
    %v436 = vunpack.c.l.b16 %v79
    %v437 = vunpack.c.h.b16 %v79
    %v438 = vunpack.c.l.b16 %v80
    %v439 = vunpack.c.h.b16 %v80
    %v440 = vunpack.c.l.b16 %v81
    %v441 = vunpack.c.h.b16 %v81
    %v442 = vunpack.c.l.b16 %v82
    %v443 = vunpack.c.l.b16 %v83
    %v444 = vunpack.c.h.b16 %v83
    %v445 = vunpack.c.l.b16 %v84
    %v446 = vunpack.c.h.b16 %v84
    %v447 = vunpack.c.l.b16 %v85
    %v448 = vunpack.c.h.b16 %v85
    %v449 = vunpack.c.l.b16 %v86
    %v450 = vunpack.c.h.b16 %v86
    %v451 = vunpack.c.l.b16 %v87
    %v452 = vunpack.c.l.b16 %v88
    %v453 = vunpack.c.h.b16 %v88
    %v454 = vunpack.c.l.b16 %v89
    %v455 = vunpack.c.h.b16 %v89
    %v456 = vunpack.c.l.b16 %v90
    %v457 = vunpack.c.h.b16 %v90
    %v458 = vunpack.c.l.b16 %v91
    %v459 = vunpack.c.h.b16 %v91
    %v460 = vunpack.c.l.b16 %v92
    %v461 = vunpack.c.l.b16 %v93
    %v462 = vunpack.c.h.b16 %v93
    %v463 = vunpack.c.l.b16 %v94
    %v464 = vunpack.c.h.b16 %v94
    %v465 = vunpack.c.l.b16 %v95
    %v466 = vunpack.c.h.b16 %v95
    %v467 = vunpack.c.l.b16 %v96
    %v468 = vunpack.c.h.b16 %v96
    %v469 = vunpack.c.l.b16 %v97
    %v470 = vpack.c.b16 %v335, %v326
    %v471 = vpack.c.b16 %v336, %v327
    %v472 = vpack.c.b16 %v337, %v328
    %v473 = vpack.c.b16 %v338, %v329
    %v474 = vpack.c.b16 %v339, %v330
    %v475 = vpack.c.b16 %v340, %v331
    %v476 = vpack.c.b16 %v341, %v332
    %v477 = vpack.c.b16 %v342, %v333
    %v478 = vpack.c.b16 %v343, %v334
    %v479 = vpack.c.b16 %v353, %v344
    %v480 = vpack.c.b16 %v354, %v345
    %v481 = vpack.c.b16 %v355, %v346
    %v482 = vpack.c.b16 %v356, %v347
    %v483 = vpack.c.b16 %v357, %v348
    %v484 = vpack.c.b16 %v358, %v349
    %v485 = vpack.c.b16 %v359, %v350
    %v486 = vpack.c.b16 %v360, %v351
    %v487 = vpack.c.b16 %v361, %v352
    %v488 = vpack.c.b16 %v371, %v362
    %v489 = vpack.c.b16 %v372, %v363
    %v490 = vpack.c.b16 %v373, %v364
    %v491 = vpack.c.b16 %v374, %v365
    %v492 = vpack.c.b16 %v375, %v366
    %v493 = vpack.c.b16 %v376, %v367
    %v494 = vpack.c.b16 %v377, %v368
    %v495 = vpack.c.b16 %v378, %v369
    %v496 = vpack.c.b16 %v379, %v370
    %v497 = vpack.c.b16 %v389, %v380
    %v498 = vpack.c.b16 %v390, %v381
    %v499 = vpack.c.b16 %v391, %v382
    %v500 = vpack.c.b16 %v392, %v383
    %v501 = vpack.c.b16 %v393, %v384
    %v502 = vpack.c.b16 %v394, %v385
    %v503 = vpack.c.b16 %v395, %v386
    %v504 = vpack.c.b16 %v396, %v387
    %v505 = vpack.c.b16 %v397, %v388
    %v506 = vpack.c.b16 %v407, %v398
    %v507 = vpack.c.b16 %v408, %v399
    %v508 = vpack.c.b16 %v409, %v400
    %v509 = vpack.c.b16 %v410, %v401
    %v510 = vpack.c.b16 %v411, %v402
    %v511 = vpack.c.b16 %v412, %v403
    %v512 = vpack.c.b16 %v413, %v404
    %v513 = vpack.c.b16 %v414, %v405
    %v514 = vpack.c.b16 %v415, %v406
    %v515 = vpack.c.b16 %v425, %v416
    %v516 = vpack.c.b16 %v426, %v417
    %v517 = vpack.c.b16 %v427, %v418
    %v518 = vpack.c.b16 %v428, %v419
    %v519 = vpack.c.b16 %v429, %v420
    %v520 = vpack.c.b16 %v430, %v421
    %v521 = vpack.c.b16 %v431, %v422
    %v522 = vpack.c.b16 %v432, %v423
    %v523 = vpack.c.b16 %v433, %v424
    %v524 = vpack.c.b16 %v443, %v434
    %v525 = vpack.c.b16 %v444, %v435
    %v526 = vpack.c.b16 %v445, %v436
    %v527 = vpack.c.b16 %v446, %v437
    %v528 = vpack.c.b16 %v447, %v438
    %v529 = vpack.c.b16 %v448, %v439
    %v530 = vpack.c.b16 %v449, %v440
    %v531 = vpack.c.b16 %v450, %v441
    %v532 = vpack.c.b16 %v451, %v442
    %v533 = vpack.c.b16 %v461, %v452
    %v534 = vpack.c.b16 %v462, %v453
    %v535 = vpack.c.b16 %v463, %v454
    %v536 = vpack.c.b16 %v464, %v455
    %v537 = vpack.c.b16 %v465, %v456
    %v538 = vpack.c.b16 %v466, %v457
    %v539 = vpack.c.b16 %v467, %v458
    %v540 = vpack.c.b16 %v468, %v459
    %v541 = vpack.c.b16 %v469, %v460
    %v758 = vunpack.c.l.b16 %v98
    %v759 = vunpack.c.l.b16 %v99
    %v760 = vunpack.c.l.b16 %v100
    %v761 = vunpack.c.l.b16 %v101
    %v762 = vunpack.c.l.b16 %v102
    %v763 = vunpack.c.l.b16 %v103
    %v764 = vunpack.c.l.b16 %v104
    %v765 = vunpack.c.l.b16 %v105
    %v766 = vunpack.c.l.b16 %v106
    %v767 = vunpack.c.l.b16 %v107
    %v768 = vunpack.c.l.b16 %v108
    %v769 = vunpack.c.l.b16 %v109
    %v770 = vunpack.c.l.b16 %v110
    %v771 = vunpack.c.l.b16 %v111
    %v772 = vunpack.c.l.b16 %v112
    %v773 = vunpack.c.l.b16 %v113
    %v774 = vunpack.c.l.b16 %v114
    %v775 = vunpack.c.l.b16 %v115
    %v776 = vunpack.c.l.b16 %v116
    %v777 = vunpack.c.l.b16 %v117
    %v778 = vunpack.c.l.b16 %v118
    %v779 = vunpack.c.l.b16 %v119
    %v780 = vunpack.c.l.b16 %v120
    %v781 = vunpack.c.l.b16 %v121
    %v782 = vunpack.c.l.b16 %v122
    %v783 = vunpack.c.l.b16 %v123
    %v784 = vunpack.c.l.b16 %v124
    %v785 = vunpack.c.l.b16 %v125
    %v786 = vunpack.c.l.b16 %v126
    %v787 = vunpack.c.l.b16 %v127
    %v788 = vunpack.c.l.b16 %v128
    %v789 = vunpack.c.l.b16 %v129
    %v790 = vunpack.c.l.b16 %v130
    %v791 = vunpack.c.l.b16 %v131
    %v792 = vunpack.c.l.b16 %v132
    %v793 = vunpack.c.l.b16 %v133
    %v794 = vunpack.c.l.b16 %v134
    %v795 = vunpack.c.l.b16 %v135
    %v796 = vunpack.c.l.b16 %v136
    %v797 = vunpack.c.l.b16 %v137
    %v798 = vunpack.c.l.b16 %v138
    %v799 = vunpack.c.l.b16 %v139
    %v800 = vunpack.c.l.b16 %v140
    %v801 = vunpack.c.l.b16 %v141
    %v802 = vunpack.c.l.b16 %v142
    %v803 = vunpack.c.l.b16 %v143
    %v804 = vunpack.c.l.b16 %v144
    %v805 = vunpack.c.l.b16 %v145
    %v806 = vunpack.c.l.b16 %v146
    %v807 = vunpack.c.l.b16 %v147
    %v808 = vunpack.c.l.b16 %v148
    %v809 = vunpack.c.l.b16 %v149
    %v810 = vunpack.c.l.b16 %v150
    %v811 = vunpack.c.l.b16 %v151
    %v812 = vunpack.c.l.b16 %v152
    %v813 = vunpack.c.l.b16 %v153
    %v814 = vunpack.c.l.b16 %v154
    %v815 = vunpack.c.l.b16 %v155
    %v816 = vunpack.c.l.b16 %v156
    %v817 = vunpack.c.l.b16 %v157
    %v818 = vunpack.c.l.b16 %v158
    %v819 = vunpack.c.l.b16 %v159
    %v820 = vunpack.c.l.b16 %v160
    %v821 = vunpack.c.l.b16 %v161
    %v822 = vunpack.c.l.b16 %v162
    %v823 = vunpack.c.l.b16 %v163
    %v824 = vunpack.c.l.b16 %v164
    %v825 = vunpack.c.l.b16 %v165
    %v826 = vunpack.c.l.b16 %v166
    %v827 = vunpack.c.l.b16 %v167
    %v828 = vunpack.c.l.b16 %v168
    %v829 = vunpack.c.l.b16 %v169
    %v830 = vunpack.c.l.b16 %v170
    %v831 = vunpack.c.l.b16 %v171
    %v832 = vunpack.c.l.b16 %v172
    %v833 = vunpack.c.l.b16 %v173
    %v834 = vunpack.c.l.b16 %v174
    %v835 = vunpack.c.l.b16 %v175
    %v836 = vunpack.c.l.b16 %v176
    %v837 = vunpack.c.l.b16 %v177
    %v838 = vunpack.c.l.b16 %v178
    %v839 = vunpack.c.l.b16 %v179
    %v840 = vunpack.c.l.b16 %v180
    %v841 = vunpack.c.l.b16 %v181
    %v842 = vunpack.c.l.b16 %v182
    %v843 = vunpack.c.l.b16 %v183
    %v844 = vunpack.c.l.b16 %v184
    %v845 = vunpack.c.l.b16 %v185
    %v846 = vunpack.c.l.b16 %v186
    %v847 = vunpack.c.l.b16 %v187
    %v848 = vunpack.c.l.b16 %v188
    %v849 = vunpack.c.l.b16 %v189
    %v850 = vunpack.c.l.b16 %v190
    %v851 = vunpack.c.l.b16 %v191
    %v852 = vunpack.c.l.b16 %v192
    %v853 = vunpack.c.l.b16 %v193
    %v854 = vunpack.c.l.b16 %v194
    %v855 = vunpack.c.l.b16 %v195
    %v856 = vunpack.c.l.b16 %v196
    %v857 = vunpack.c.l.b16 %v197
    %v858 = vunpack.c.l.b16 %v198
    %v859 = vunpack.c.l.b16 %v199
    %v860 = vunpack.c.l.b16 %v200
    %v861 = vunpack.c.l.b16 %v201
    %v862 = vunpack.c.l.b16 %v202
    %v863 = vunpack.c.l.b16 %v203
    %v864 = vunpack.c.l.b16 %v204
    %v865 = vunpack.c.l.b16 %v205
    %v866 = vunpack.c.l.b16 %v206
    %v867 = vunpack.c.l.b16 %v207
    %v868 = vunpack.c.l.b16 %v208
    %v869 = vunpack.c.l.b16 %v209
    %v870 = vunpack.c.l.b16 %v210
    %v871 = vunpack.c.l.b16 %v211
    %v872 = vunpack.c.l.b16 %v212
    %v873 = vunpack.c.l.b16 %v213
    %v874 = vunpack.c.l.b16 %v214
    %v875 = vunpack.c.l.b16 %v215
    %v876 = vunpack.c.l.b16 %v216
    %v877 = vunpack.c.l.b16 %v217
    %v878 = vunpack.c.l.b16 %v218
    %v879 = vunpack.c.l.b16 %v219
    %v880 = vunpack.c.l.b16 %v220
    %v881 = vunpack.c.l.b16 %v221
    %v882 = vunpack.c.l.b16 %v222
    %v883 = vunpack.c.l.b16 %v223
    %v884 = vunpack.c.l.b16 %v224
    %v885 = vunpack.c.l.b16 %v225
    %v886 = vunpack.c.l.b16 %v226
    %v887 = vunpack.c.l.b16 %v227
    %v888 = vunpack.c.l.b16 %v228
    %v889 = vunpack.c.l.b16 %v229
    %v890 = vunpack.c.l.b16 %v230
    %v891 = vunpack.c.l.b16 %v231
    %v892 = vunpack.c.l.b16 %v232
    %v893 = vunpack.c.l.b16 %v233
    %v894 = vunpack.c.l.b16 %v234
    %v895 = vunpack.c.l.b16 %v235
    %v896 = vunpack.c.l.b16 %v236
    %v897 = vunpack.c.l.b16 %v237
    %v898 = vunpack.c.l.b16 %v238
    %v899 = vunpack.c.l.b16 %v239
    %v900 = vunpack.c.l.b16 %v240
    %v901 = vunpack.c.l.b16 %v241
    %v902 = vpack.c.b16 %v759, %v758
    %v903 = vpack.c.b16 %v761, %v760
    %v904 = vpack.c.b16 %v763, %v762
    %v905 = vpack.c.b16 %v765, %v764
    %v906 = vpack.c.b16 %v767, %v766
    %v907 = vpack.c.b16 %v769, %v768
    %v908 = vpack.c.b16 %v771, %v770
    %v909 = vpack.c.b16 %v773, %v772
    %v910 = vpack.c.b16 %v775, %v774
    %v911 = vpack.c.b16 %v777, %v776
    %v912 = vpack.c.b16 %v779, %v778
    %v913 = vpack.c.b16 %v781, %v780
    %v914 = vpack.c.b16 %v783, %v782
    %v915 = vpack.c.b16 %v785, %v784
    %v916 = vpack.c.b16 %v787, %v786
    %v917 = vpack.c.b16 %v789, %v788
    %v918 = vpack.c.b16 %v791, %v790
    %v919 = vpack.c.b16 %v793, %v792
    %v920 = vpack.c.b16 %v795, %v794
    %v921 = vpack.c.b16 %v797, %v796
    %v922 = vpack.c.b16 %v799, %v798
    %v923 = vpack.c.b16 %v801, %v800
    %v924 = vpack.c.b16 %v803, %v802
    %v925 = vpack.c.b16 %v805, %v804
    %v926 = vpack.c.b16 %v807, %v806
    %v927 = vpack.c.b16 %v809, %v808
    %v928 = vpack.c.b16 %v811, %v810
    %v929 = vpack.c.b16 %v813, %v812
    %v930 = vpack.c.b16 %v815, %v814
    %v931 = vpack.c.b16 %v817, %v816
    %v932 = vpack.c.b16 %v819, %v818
    %v933 = vpack.c.b16 %v821, %v820
    %v934 = vpack.c.b16 %v823, %v822
    %v935 = vpack.c.b16 %v825, %v824
    %v936 = vpack.c.b16 %v827, %v826
    %v937 = vpack.c.b16 %v829, %v828
    %v938 = vpack.c.b16 %v831, %v830
    %v939 = vpack.c.b16 %v833, %v832
    %v940 = vpack.c.b16 %v835, %v834
    %v941 = vpack.c.b16 %v837, %v836
    %v942 = vpack.c.b16 %v839, %v838
    %v943 = vpack.c.b16 %v841, %v840
    %v944 = vpack.c.b16 %v843, %v842
    %v945 = vpack.c.b16 %v845, %v844
    %v946 = vpack.c.b16 %v847, %v846
    %v947 = vpack.c.b16 %v849, %v848
    %v948 = vpack.c.b16 %v851, %v850
    %v949 = vpack.c.b16 %v853, %v852
    %v950 = vpack.c.b16 %v855, %v854
    %v951 = vpack.c.b16 %v857, %v856
    %v952 = vpack.c.b16 %v859, %v858
    %v953 = vpack.c.b16 %v861, %v860
    %v954 = vpack.c.b16 %v863, %v862
    %v955 = vpack.c.b16 %v865, %v864
    %v956 = vpack.c.b16 %v867, %v866
    %v957 = vpack.c.b16 %v869, %v868
    %v958 = vpack.c.b16 %v871, %v870
    %v959 = vpack.c.b16 %v873, %v872
    %v960 = vpack.c.b16 %v875, %v874
    %v961 = vpack.c.b16 %v877, %v876
    %v962 = vpack.c.b16 %v879, %v878
    %v963 = vpack.c.b16 %v881, %v880
    %v964 = vpack.c.b16 %v883, %v882
    %v965 = vpack.c.b16 %v885, %v884
    %v966 = vpack.c.b16 %v887, %v886
    %v967 = vpack.c.b16 %v889, %v888
    %v968 = vpack.c.b16 %v891, %v890
    %v969 = vpack.c.b16 %v893, %v892
    %v970 = vpack.c.b16 %v895, %v894
    %v971 = vpack.c.b16 %v897, %v896
    %v972 = vpack.c.b16 %v899, %v898
    %v973 = vpack.c.b16 %v901, %v900
    %1046 = vmatpush.bf16.msra.mxu0 %v909
    %1047 = vmatpush.bf16.msra.mxu0 %v908
    %1048 = vmatpush.bf16.msra.mxu0 %v907
    %1049 = vmatpush.bf16.msra.mxu0 %v906
    %1050 = vmatpush.bf16.msra.mxu0 %v905
    %1051 = vmatpush.bf16.msra.mxu0 %v904
    %1052 = vmatpush.bf16.msra.mxu0 %v903
    %1053 = vmatpush.bf16.msra.mxu0 %v902
    %1054 = vmatmul.bf16.gmra.mxu0 %v470
    %v1055 = vpop.f32.mrf.mxu0
    %v1056 = vadd.f32 %v244, %v1055
    %v1057 = vpop.f32.mrf.mxu0
    %v1058 = vadd.f32 %v244, %v1057
    %1059 = vmatmul.bf16.gmra.mxu0 %v479
    %v1060 = vpop.f32.mrf.mxu0
    %v1061 = vadd.f32 %v244, %v1060
    %v1062 = vpop.f32.mrf.mxu0
    %v1063 = vadd.f32 %v244, %v1062
    %1064 = vmatmul.bf16.gmra.mxu0 %v488
    %v1065 = vpop.f32.mrf.mxu0
    %v1066 = vadd.f32 %v244, %v1065
    %v1067 = vpop.f32.mrf.mxu0
    %v1068 = vadd.f32 %v244, %v1067
    %1069 = vmatmul.bf16.gmra.mxu0 %v497
    %v1070 = vpop.f32.mrf.mxu0
    %v1071 = vadd.f32 %v244, %v1070
    %v1072 = vpop.f32.mrf.mxu0
    %v1073 = vadd.f32 %v244, %v1072
    %1074 = vmatmul.bf16.gmra.mxu0 %v506
    %v1075 = vpop.f32.mrf.mxu0
    %v1076 = vadd.f32 %v244, %v1075
    %v1077 = vpop.f32.mrf.mxu0
    %v1078 = vadd.f32 %v244, %v1077
    %1079 = vmatmul.bf16.gmra.mxu0 %v515
    %v1080 = vpop.f32.mrf.mxu0
    %v1081 = vadd.f32 %v244, %v1080
    %v1082 = vpop.f32.mrf.mxu0
    %v1083 = vadd.f32 %v244, %v1082
    %1084 = vmatmul.bf16.gmra.mxu0 %v524
    %v1085 = vpop.f32.mrf.mxu0
    %v1086 = vadd.f32 %v244, %v1085
    %v1087 = vpop.f32.mrf.mxu0
    %v1088 = vadd.f32 %v244, %v1087
    %1089 = vmatmul.bf16.gmra.mxu0 %v533
    %v1090 = vpop.f32.mrf.mxu0
    %v1091 = vadd.f32 %v244, %v1090
    %v1092 = vpop.f32.mrf.mxu0
    %v1093 = vadd.f32 %v244, %v1092
    %1094 = vdwg.mxu0
    %1095 = vmatpush.bf16.msra.mxu0 %v917
    %1096 = vmatpush.bf16.msra.mxu0 %v916
    %1097 = vmatpush.bf16.msra.mxu0 %v915
    %1098 = vmatpush.bf16.msra.mxu0 %v914
    %1099 = vmatpush.bf16.msra.mxu0 %v913
    %1100 = vmatpush.bf16.msra.mxu0 %v912
    %1101 = vmatpush.bf16.msra.mxu0 %v911
    %1102 = vmatpush.bf16.msra.mxu0 %v910
    %1103 = vmatmul.bf16.gmra.mxu0 %v471
    %v1104 = vpop.f32.mrf.mxu0
    %v1105 = vadd.f32 %v1056, %v1104
    %v1106 = vpop.f32.mrf.mxu0
    %v1107 = vadd.f32 %v1058, %v1106
    %1108 = vmatmul.bf16.gmra.mxu0 %v480
    %v1109 = vpop.f32.mrf.mxu0
    %v1110 = vadd.f32 %v1061, %v1109
    %v1111 = vpop.f32.mrf.mxu0
    %v1112 = vadd.f32 %v1063, %v1111
    %1113 = vmatmul.bf16.gmra.mxu0 %v489
    %v1114 = vpop.f32.mrf.mxu0
    %v1115 = vadd.f32 %v1066, %v1114
    %v1116 = vpop.f32.mrf.mxu0
    %v1117 = vadd.f32 %v1068, %v1116
    %1118 = vmatmul.bf16.gmra.mxu0 %v498
    %v1119 = vpop.f32.mrf.mxu0
    %v1120 = vadd.f32 %v1071, %v1119
    %v1121 = vpop.f32.mrf.mxu0
    %v1122 = vadd.f32 %v1073, %v1121
    %1123 = vmatmul.bf16.gmra.mxu0 %v507
    %v1124 = vpop.f32.mrf.mxu0
    %v1125 = vadd.f32 %v1076, %v1124
    %v1126 = vpop.f32.mrf.mxu0
    %v1127 = vadd.f32 %v1078, %v1126
    %1128 = vmatmul.bf16.gmra.mxu0 %v516
    %v1129 = vpop.f32.mrf.mxu0
    %v1130 = vadd.f32 %v1081, %v1129
    %v1131 = vpop.f32.mrf.mxu0
    %v1132 = vadd.f32 %v1083, %v1131
    %1133 = vmatmul.bf16.gmra.mxu0 %v525
    %v1134 = vpop.f32.mrf.mxu0
    %v1135 = vadd.f32 %v1086, %v1134
    %v1136 = vpop.f32.mrf.mxu0
    %v1137 = vadd.f32 %v1088, %v1136
    %1138 = vmatmul.bf16.gmra.mxu0 %v534
    %v1139 = vpop.f32.mrf.mxu0
    %v1140 = vadd.f32 %v1091, %v1139
    %v1141 = vpop.f32.mrf.mxu0
    %v1142 = vadd.f32 %v1093, %v1141
    %1143 = vdwg.mxu0
    %1144 = vmatpush.bf16.msra.mxu0 %v925
    %1145 = vmatpush.bf16.msra.mxu0 %v924
    %1146 = vmatpush.bf16.msra.mxu0 %v923
    %1147 = vmatpush.bf16.msra.mxu0 %v922
    %1148 = vmatpush.bf16.msra.mxu0 %v921
    %1149 = vmatpush.bf16.msra.mxu0 %v920
    %1150 = vmatpush.bf16.msra.mxu0 %v919
    %1151 = vmatpush.bf16.msra.mxu0 %v918
    %1152 = vmatmul.bf16.gmra.mxu0 %v472
    %v1153 = vpop.f32.mrf.mxu0
    %v1154 = vadd.f32 %v1105, %v1153
    %v1155 = vpop.f32.mrf.mxu0
    %v1156 = vadd.f32 %v1107, %v1155
    %1157 = vmatmul.bf16.gmra.mxu0 %v481
    %v1158 = vpop.f32.mrf.mxu0
    %v1159 = vadd.f32 %v1110, %v1158
    %v1160 = vpop.f32.mrf.mxu0
    %v1161 = vadd.f32 %v1112, %v1160
    %1162 = vmatmul.bf16.gmra.mxu0 %v490
    %v1163 = vpop.f32.mrf.mxu0
    %v1164 = vadd.f32 %v1115, %v1163
    %v1165 = vpop.f32.mrf.mxu0
    %v1166 = vadd.f32 %v1117, %v1165
    %1167 = vmatmul.bf16.gmra.mxu0 %v499
    %v1168 = vpop.f32.mrf.mxu0
    %v1169 = vadd.f32 %v1120, %v1168
    %v1170 = vpop.f32.mrf.mxu0
    %v1171 = vadd.f32 %v1122, %v1170
    %1172 = vmatmul.bf16.gmra.mxu0 %v508
    %v1173 = vpop.f32.mrf.mxu0
    %v1174 = vadd.f32 %v1125, %v1173
    %v1175 = vpop.f32.mrf.mxu0
    %v1176 = vadd.f32 %v1127, %v1175
    %1177 = vmatmul.bf16.gmra.mxu0 %v517
    %v1178 = vpop.f32.mrf.mxu0
    %v1179 = vadd.f32 %v1130, %v1178
    %v1180 = vpop.f32.mrf.mxu0
    %v1181 = vadd.f32 %v1132, %v1180
    %1182 = vmatmul.bf16.gmra.mxu0 %v526
    %v1183 = vpop.f32.mrf.mxu0
    %v1184 = vadd.f32 %v1135, %v1183
    %v1185 = vpop.f32.mrf.mxu0
    %v1186 = vadd.f32 %v1137, %v1185
    %1187 = vmatmul.bf16.gmra.mxu0 %v535
    %v1188 = vpop.f32.mrf.mxu0
    %v1189 = vadd.f32 %v1140, %v1188
    %v1190 = vpop.f32.mrf.mxu0
    %v1191 = vadd.f32 %v1142, %v1190
    %1192 = vdwg.mxu0
    %1193 = vmatpush.bf16.msra.mxu0 %v933
    %1194 = vmatpush.bf16.msra.mxu0 %v932
    %1195 = vmatpush.bf16.msra.mxu0 %v931
    %1196 = vmatpush.bf16.msra.mxu0 %v930
    %1197 = vmatpush.bf16.msra.mxu0 %v929
    %1198 = vmatpush.bf16.msra.mxu0 %v928
    %1199 = vmatpush.bf16.msra.mxu0 %v927
    %1200 = vmatpush.bf16.msra.mxu0 %v926
    %1201 = vmatmul.bf16.gmra.mxu0 %v473
    %v1202 = vpop.f32.mrf.mxu0
    %v1203 = vadd.f32 %v1154, %v1202
    %v1204 = vpop.f32.mrf.mxu0
    %v1205 = vadd.f32 %v1156, %v1204
    %1206 = vmatmul.bf16.gmra.mxu0 %v482
    %v1207 = vpop.f32.mrf.mxu0
    %v1208 = vadd.f32 %v1159, %v1207
    %v1209 = vpop.f32.mrf.mxu0
    %v1210 = vadd.f32 %v1161, %v1209
    %1211 = vmatmul.bf16.gmra.mxu0 %v491
    %v1212 = vpop.f32.mrf.mxu0
    %v1213 = vadd.f32 %v1164, %v1212
    %v1214 = vpop.f32.mrf.mxu0
    %v1215 = vadd.f32 %v1166, %v1214
    %1216 = vmatmul.bf16.gmra.mxu0 %v500
    %v1217 = vpop.f32.mrf.mxu0
    %v1218 = vadd.f32 %v1169, %v1217
    %v1219 = vpop.f32.mrf.mxu0
    %v1220 = vadd.f32 %v1171, %v1219
    %1221 = vmatmul.bf16.gmra.mxu0 %v509
    %v1222 = vpop.f32.mrf.mxu0
    %v1223 = vadd.f32 %v1174, %v1222
    %v1224 = vpop.f32.mrf.mxu0
    %v1225 = vadd.f32 %v1176, %v1224
    %1226 = vmatmul.bf16.gmra.mxu0 %v518
    %v1227 = vpop.f32.mrf.mxu0
    %v1228 = vadd.f32 %v1179, %v1227
    %v1229 = vpop.f32.mrf.mxu0
    %v1230 = vadd.f32 %v1181, %v1229
    %1231 = vmatmul.bf16.gmra.mxu0 %v527
    %v1232 = vpop.f32.mrf.mxu0
    %v1233 = vadd.f32 %v1184, %v1232
    %v1234 = vpop.f32.mrf.mxu0
    %v1235 = vadd.f32 %v1186, %v1234
    %1236 = vmatmul.bf16.gmra.mxu0 %v536
    %v1237 = vpop.f32.mrf.mxu0
    %v1238 = vadd.f32 %v1189, %v1237
    %v1239 = vpop.f32.mrf.mxu0
    %v1240 = vadd.f32 %v1191, %v1239
    %1241 = vdwg.mxu0
    %1242 = vmatpush.bf16.msra.mxu0 %v941
    %1243 = vmatpush.bf16.msra.mxu0 %v940
    %1244 = vmatpush.bf16.msra.mxu0 %v939
    %1245 = vmatpush.bf16.msra.mxu0 %v938
    %1246 = vmatpush.bf16.msra.mxu0 %v937
    %1247 = vmatpush.bf16.msra.mxu0 %v936
    %1248 = vmatpush.bf16.msra.mxu0 %v935
    %1249 = vmatpush.bf16.msra.mxu0 %v934
    %1250 = vmatmul.bf16.gmra.mxu0 %v474
    %v1251 = vpop.f32.mrf.mxu0
    %v1252 = vadd.f32 %v1203, %v1251
    %v1253 = vpop.f32.mrf.mxu0
    %v1254 = vadd.f32 %v1205, %v1253
    %1255 = vmatmul.bf16.gmra.mxu0 %v483
    %v1256 = vpop.f32.mrf.mxu0
    %v1257 = vadd.f32 %v1208, %v1256
    %v1258 = vpop.f32.mrf.mxu0
    %v1259 = vadd.f32 %v1210, %v1258
    %1260 = vmatmul.bf16.gmra.mxu0 %v492
    %v1261 = vpop.f32.mrf.mxu0
    %v1262 = vadd.f32 %v1213, %v1261
    %v1263 = vpop.f32.mrf.mxu0
    %v1264 = vadd.f32 %v1215, %v1263
    %1265 = vmatmul.bf16.gmra.mxu0 %v501
    %v1266 = vpop.f32.mrf.mxu0
    %v1267 = vadd.f32 %v1218, %v1266
    %v1268 = vpop.f32.mrf.mxu0
    %v1269 = vadd.f32 %v1220, %v1268
    %1270 = vmatmul.bf16.gmra.mxu0 %v510
    %v1271 = vpop.f32.mrf.mxu0
    %v1272 = vadd.f32 %v1223, %v1271
    %v1273 = vpop.f32.mrf.mxu0
    %v1274 = vadd.f32 %v1225, %v1273
    %1275 = vmatmul.bf16.gmra.mxu0 %v519
    %v1276 = vpop.f32.mrf.mxu0
    %v1277 = vadd.f32 %v1228, %v1276
    %v1278 = vpop.f32.mrf.mxu0
    %v1279 = vadd.f32 %v1230, %v1278
    %1280 = vmatmul.bf16.gmra.mxu0 %v528
    %v1281 = vpop.f32.mrf.mxu0
    %v1282 = vadd.f32 %v1233, %v1281
    %v1283 = vpop.f32.mrf.mxu0
    %v1284 = vadd.f32 %v1235, %v1283
    %1285 = vmatmul.bf16.gmra.mxu0 %v537
    %v1286 = vpop.f32.mrf.mxu0
    %v1287 = vadd.f32 %v1238, %v1286
    %v1288 = vpop.f32.mrf.mxu0
    %v1289 = vadd.f32 %v1240, %v1288
    %1290 = vdwg.mxu0
    %1291 = vmatpush.bf16.msra.mxu0 %v949
    %1292 = vmatpush.bf16.msra.mxu0 %v948
    %1293 = vmatpush.bf16.msra.mxu0 %v947
    %1294 = vmatpush.bf16.msra.mxu0 %v946
    %1295 = vmatpush.bf16.msra.mxu0 %v945
    %1296 = vmatpush.bf16.msra.mxu0 %v944
    %1297 = vmatpush.bf16.msra.mxu0 %v943
    %1298 = vmatpush.bf16.msra.mxu0 %v942
    %1299 = vmatmul.bf16.gmra.mxu0 %v475
    %v1300 = vpop.f32.mrf.mxu0
    %v1301 = vadd.f32 %v1252, %v1300
    %v1302 = vpop.f32.mrf.mxu0
    %v1303 = vadd.f32 %v1254, %v1302
    %1304 = vmatmul.bf16.gmra.mxu0 %v484
    %v1305 = vpop.f32.mrf.mxu0
    %v1306 = vadd.f32 %v1257, %v1305
    %v1307 = vpop.f32.mrf.mxu0
    %v1308 = vadd.f32 %v1259, %v1307
    %1309 = vmatmul.bf16.gmra.mxu0 %v493
    %v1310 = vpop.f32.mrf.mxu0
    %v1311 = vadd.f32 %v1262, %v1310
    %v1312 = vpop.f32.mrf.mxu0
    %v1313 = vadd.f32 %v1264, %v1312
    %1314 = vmatmul.bf16.gmra.mxu0 %v502
    %v1315 = vpop.f32.mrf.mxu0
    %v1316 = vadd.f32 %v1267, %v1315
    %v1317 = vpop.f32.mrf.mxu0
    %v1318 = vadd.f32 %v1269, %v1317
    %1319 = vmatmul.bf16.gmra.mxu0 %v511
    %v1320 = vpop.f32.mrf.mxu0
    %v1321 = vadd.f32 %v1272, %v1320
    %v1322 = vpop.f32.mrf.mxu0
    %v1323 = vadd.f32 %v1274, %v1322
    %1324 = vmatmul.bf16.gmra.mxu0 %v520
    %v1325 = vpop.f32.mrf.mxu0
    %v1326 = vadd.f32 %v1277, %v1325
    %v1327 = vpop.f32.mrf.mxu0
    %v1328 = vadd.f32 %v1279, %v1327
    %1329 = vmatmul.bf16.gmra.mxu0 %v529
    %v1330 = vpop.f32.mrf.mxu0
    %v1331 = vadd.f32 %v1282, %v1330
    %v1332 = vpop.f32.mrf.mxu0
    %v1333 = vadd.f32 %v1284, %v1332
    %1334 = vmatmul.bf16.gmra.mxu0 %v538
    %v1335 = vpop.f32.mrf.mxu0
    %v1336 = vadd.f32 %v1287, %v1335
    %v1337 = vpop.f32.mrf.mxu0
    %v1338 = vadd.f32 %v1289, %v1337
    %1339 = vdwg.mxu0
    %1340 = vmatpush.bf16.msra.mxu0 %v957
    %1341 = vmatpush.bf16.msra.mxu0 %v956
    %1342 = vmatpush.bf16.msra.mxu0 %v955
    %1343 = vmatpush.bf16.msra.mxu0 %v954
    %1344 = vmatpush.bf16.msra.mxu0 %v953
    %1345 = vmatpush.bf16.msra.mxu0 %v952
    %1346 = vmatpush.bf16.msra.mxu0 %v951
    %1347 = vmatpush.bf16.msra.mxu0 %v950
    %1348 = vmatmul.bf16.gmra.mxu0 %v476
    %v1349 = vpop.f32.mrf.mxu0
    %v1350 = vadd.f32 %v1301, %v1349
    %v1351 = vpop.f32.mrf.mxu0
    %v1352 = vadd.f32 %v1303, %v1351
    %1353 = vmatmul.bf16.gmra.mxu0 %v485
    %v1354 = vpop.f32.mrf.mxu0
    %v1355 = vadd.f32 %v1306, %v1354
    %v1356 = vpop.f32.mrf.mxu0
    %v1357 = vadd.f32 %v1308, %v1356
    %1358 = vmatmul.bf16.gmra.mxu0 %v494
    %v1359 = vpop.f32.mrf.mxu0
    %v1360 = vadd.f32 %v1311, %v1359
    %v1361 = vpop.f32.mrf.mxu0
    %v1362 = vadd.f32 %v1313, %v1361
    %1363 = vmatmul.bf16.gmra.mxu0 %v503
    %v1364 = vpop.f32.mrf.mxu0
    %v1365 = vadd.f32 %v1316, %v1364
    %v1366 = vpop.f32.mrf.mxu0
    %v1367 = vadd.f32 %v1318, %v1366
    %1368 = vmatmul.bf16.gmra.mxu0 %v512
    %v1369 = vpop.f32.mrf.mxu0
    %v1370 = vadd.f32 %v1321, %v1369
    %v1371 = vpop.f32.mrf.mxu0
    %v1372 = vadd.f32 %v1323, %v1371
    %1373 = vmatmul.bf16.gmra.mxu0 %v521
    %v1374 = vpop.f32.mrf.mxu0
    %v1375 = vadd.f32 %v1326, %v1374
    %v1376 = vpop.f32.mrf.mxu0
    %v1377 = vadd.f32 %v1328, %v1376
    %1378 = vmatmul.bf16.gmra.mxu0 %v530
    %v1379 = vpop.f32.mrf.mxu0
    %v1380 = vadd.f32 %v1331, %v1379
    %v1381 = vpop.f32.mrf.mxu0
    %v1382 = vadd.f32 %v1333, %v1381
    %1383 = vmatmul.bf16.gmra.mxu0 %v539
    %v1384 = vpop.f32.mrf.mxu0
    %v1385 = vadd.f32 %v1336, %v1384
    %v1386 = vpop.f32.mrf.mxu0
    %v1387 = vadd.f32 %v1338, %v1386
    %1388 = vdwg.mxu0
    %1389 = vmatpush.bf16.msra.mxu0 %v965
    %1390 = vmatpush.bf16.msra.mxu0 %v964
    %1391 = vmatpush.bf16.msra.mxu0 %v963
    %1392 = vmatpush.bf16.msra.mxu0 %v962
    %1393 = vmatpush.bf16.msra.mxu0 %v961
    %1394 = vmatpush.bf16.msra.mxu0 %v960
    %1395 = vmatpush.bf16.msra.mxu0 %v959
    %1396 = vmatpush.bf16.msra.mxu0 %v958
    %1397 = vmatmul.bf16.gmra.mxu0 %v477
    %v1398 = vpop.f32.mrf.mxu0
    %v1399 = vadd.f32 %v1350, %v1398
    %v1400 = vpop.f32.mrf.mxu0
    %v1401 = vadd.f32 %v1352, %v1400
    %1402 = vmatmul.bf16.gmra.mxu0 %v486
    %v1403 = vpop.f32.mrf.mxu0
    %v1404 = vadd.f32 %v1355, %v1403
    %v1405 = vpop.f32.mrf.mxu0
    %v1406 = vadd.f32 %v1357, %v1405
    %1407 = vmatmul.bf16.gmra.mxu0 %v495
    %v1408 = vpop.f32.mrf.mxu0
    %v1409 = vadd.f32 %v1360, %v1408
    %v1410 = vpop.f32.mrf.mxu0
    %v1411 = vadd.f32 %v1362, %v1410
    %1412 = vmatmul.bf16.gmra.mxu0 %v504
    %v1413 = vpop.f32.mrf.mxu0
    %v1414 = vadd.f32 %v1365, %v1413
    %v1415 = vpop.f32.mrf.mxu0
    %v1416 = vadd.f32 %v1367, %v1415
    %1417 = vmatmul.bf16.gmra.mxu0 %v513
    %v1418 = vpop.f32.mrf.mxu0
    %v1419 = vadd.f32 %v1370, %v1418
    %v1420 = vpop.f32.mrf.mxu0
    %v1421 = vadd.f32 %v1372, %v1420
    %1422 = vmatmul.bf16.gmra.mxu0 %v522
    %v1423 = vpop.f32.mrf.mxu0
    %v1424 = vadd.f32 %v1375, %v1423
    %v1425 = vpop.f32.mrf.mxu0
    %v1426 = vadd.f32 %v1377, %v1425
    %1427 = vmatmul.bf16.gmra.mxu0 %v531
    %v1428 = vpop.f32.mrf.mxu0
    %v1429 = vadd.f32 %v1380, %v1428
    %v1430 = vpop.f32.mrf.mxu0
    %v1431 = vadd.f32 %v1382, %v1430
    %1432 = vmatmul.bf16.gmra.mxu0 %v540
    %v1433 = vpop.f32.mrf.mxu0
    %v1434 = vadd.f32 %v1385, %v1433
    %v1435 = vpop.f32.mrf.mxu0
    %v1436 = vadd.f32 %v1387, %v1435
    %1437 = vdwg.mxu0
    %1438 = vmatpush.bf16.msra.mxu0 %v973
    %1439 = vmatpush.bf16.msra.mxu0 %v972
    %1440 = vmatpush.bf16.msra.mxu0 %v971
    %1441 = vmatpush.bf16.msra.mxu0 %v970
    %1442 = vmatpush.bf16.msra.mxu0 %v969
    %1443 = vmatpush.bf16.msra.mxu0 %v968
    %1444 = vmatpush.bf16.msra.mxu0 %v967
    %1445 = vmatpush.bf16.msra.mxu0 %v966
    %1446 = vmatmul.bf16.gmra.mxu0 %v478
    %v1447 = vpop.f32.mrf.mxu0
    %v1448 = vadd.f32 %v1399, %v1447
    %v1449 = vpop.f32.mrf.mxu0
    %v1450 = vadd.f32 %v1401, %v1449
    %1451 = vmatmul.bf16.gmra.mxu0 %v487
    %v1452 = vpop.f32.mrf.mxu0
    %v1453 = vadd.f32 %v1404, %v1452
    %v1454 = vpop.f32.mrf.mxu0
    %v1455 = vadd.f32 %v1406, %v1454
    %1456 = vmatmul.bf16.gmra.mxu0 %v496
    %v1457 = vpop.f32.mrf.mxu0
    %v1458 = vadd.f32 %v1409, %v1457
    %v1459 = vpop.f32.mrf.mxu0
    %v1460 = vadd.f32 %v1411, %v1459
    %1461 = vmatmul.bf16.gmra.mxu0 %v505
    %v1462 = vpop.f32.mrf.mxu0
    %v1463 = vadd.f32 %v1414, %v1462
    %v1464 = vpop.f32.mrf.mxu0
    %v1465 = vadd.f32 %v1416, %v1464
    %1466 = vmatmul.bf16.gmra.mxu0 %v514
    %v1467 = vpop.f32.mrf.mxu0
    %v1468 = vadd.f32 %v1419, %v1467
    %v1469 = vpop.f32.mrf.mxu0
    %v1470 = vadd.f32 %v1421, %v1469
    %1471 = vmatmul.bf16.gmra.mxu0 %v523
    %v1472 = vpop.f32.mrf.mxu0
    %v1473 = vadd.f32 %v1424, %v1472
    %v1474 = vpop.f32.mrf.mxu0
    %v1475 = vadd.f32 %v1426, %v1474
    %1476 = vmatmul.bf16.gmra.mxu0 %v532
    %v1477 = vpop.f32.mrf.mxu0
    %v1478 = vadd.f32 %v1429, %v1477
    %v1479 = vpop.f32.mrf.mxu0
    %v1480 = vadd.f32 %v1431, %v1479
    %1481 = vmatmul.bf16.gmra.mxu0 %v541
    %v1482 = vpop.f32.mrf.mxu0
    %v1483 = vadd.f32 %v1434, %v1482
    %v1484 = vpop.f32.mrf.mxu0
    %v1485 = vadd.f32 %v1436, %v1484
    %1486 = vdwg.mxu0
    %v1487 = vld [vmem:[%s3] sm:$0xff]
    %v1488 = vld [vmem:[%s3 + $0x8] sm:$0xff]
    %v1489 = vld [vmem:[%s3 + $0x10] sm:$0xff]
    %v1490 = vld [vmem:[%s3 + $0x18] sm:$0xff]
    %v1491 = vld [vmem:[%s3 + $0x20] sm:$0xff]
    %v1492 = vld [vmem:[%s3 + $0x28] sm:$0xff]
    %v1493 = vld [vmem:[%s3 + $0x30] sm:$0xff]
    %v1494 = vld [vmem:[%s3 + $0x38] sm:$0xff]
    %v1495 = vld [vmem:[%s3 + $0x40] sm:$0xff]
    %v1496 = vld [vmem:[%s3 + $0x48] sm:$0xff]
    %v1497 = vld [vmem:[%s3 + $0x50] sm:$0xff]
    %v1498 = vld [vmem:[%s3 + $0x58] sm:$0xff]
    %v1499 = vld [vmem:[%s3 + $0x60] sm:$0xff]
    %v1500 = vld [vmem:[%s3 + $0x68] sm:$0xff]
    %v1501 = vld [vmem:[%s3 + $0x70] sm:$0xff]
    %v1502 = vld [vmem:[%s3 + $0x78] sm:$0xff]
    %v1503 = vadd.f32 %v1448, %v1487
    %v1504 = vadd.f32 %v1450, %v1488
    %v1505 = vadd.f32 %v1453, %v1489
    %v1506 = vadd.f32 %v1455, %v1490
    %v1507 = vadd.f32 %v1458, %v1491
    %v1508 = vadd.f32 %v1460, %v1492
    %v1509 = vadd.f32 %v1463, %v1493
    %v1510 = vadd.f32 %v1465, %v1494
    %v1511 = vadd.f32 %v1468, %v1495
    %v1512 = vadd.f32 %v1470, %v1496
    %v1513 = vadd.f32 %v1473, %v1497
    %v1514 = vadd.f32 %v1475, %v1498
    %v1515 = vadd.f32 %v1478, %v1499
    %v1516 = vadd.f32 %v1480, %v1500
    %v1517 = vadd.f32 %v1483, %v1501
    %v1518 = vadd.f32 %v1485, %v1502
    %v1519 = vmul.f32 %v1503, 0.70710677
    %v1520 = vmul.f32 %v1504, 0.70710677
    %v1521 = vmul.f32 %v1505, 0.70710677
    %v1522 = vmul.f32 %v1506, 0.70710677
    %v1523 = vmul.f32 %v1507, 0.70710677
    %v1524 = vmul.f32 %v1508, 0.70710677
    %v1525 = vmul.f32 %v1509, 0.70710677
    %v1526 = vmul.f32 %v1510, 0.70710677
    %v1527 = vmul.f32 %v1511, 0.70710677
    %v1528 = vmul.f32 %v1512, 0.70710677
    %v1529 = vmul.f32 %v1513, 0.70710677
    %v1530 = vmul.f32 %v1514, 0.70710677
    %v1531 = vmul.f32 %v1515, 0.70710677
    %v1532 = vmul.f32 %v1516, 0.70710677
    %v1533 = vmul.f32 %v1517, 0.70710677
    %v1534 = vmul.f32 %v1518, 0.70710677
    %1535 = vst [vmem:[#allocation2] sm:$0xff] %v1519
    %1536 = vst [vmem:[#allocation2 + $0x8] sm:$0xff] %v1520
    %1537 = vst [vmem:[#allocation2 + $0x10] sm:$0xff] %v1521
    %1538 = vst [vmem:[#allocation2 + $0x18] sm:$0xff] %v1522
    %1539 = vst [vmem:[#allocation2 + $0x20] sm:$0xff] %v1523
    %1540 = vst [vmem:[#allocation2 + $0x28] sm:$0xff] %v1524
    %1541 = vst [vmem:[#allocation2 + $0x30] sm:$0xff] %v1525
    %1542 = vst [vmem:[#allocation2 + $0x38] sm:$0xff] %v1526
    %1543 = vst [vmem:[#allocation2 + $0x40] sm:$0xff] %v1527
    %1544 = vst [vmem:[#allocation2 + $0x48] sm:$0xff] %v1528
    %1545 = vst [vmem:[#allocation2 + $0x50] sm:$0xff] %v1529
    %1546 = vst [vmem:[#allocation2 + $0x58] sm:$0xff] %v1530
    %1547 = vst [vmem:[#allocation2 + $0x60] sm:$0xff] %v1531
    %1548 = vst [vmem:[#allocation2 + $0x68] sm:$0xff] %v1532
    %1549 = vst [vmem:[#allocation2 + $0x70] sm:$0xff] %v1533
    %1550 = vst [vmem:[#allocation2 + $0x78] sm:$0xff] %v1534
    // Predicated region
    $region18: #{down_fwd.5} parent=1 // pred_check
      _
    $region19: #{down_fwd.5} parent=1 // pred_check_branch
      %1552 = sbr.rel (0) target = $region21
    $region20: #{down_fwd.5} parent=1 // pred_region
      %1554 = vsyncadd [#allocation3], 0
      %s1555 = sshll.u32 [#allocation2], 4
      %s1556 = int_to_ptr.vmem [resolvable:$true] %s1555
      %s1557 = sshll.u32 %s4, 4
      %s1558 = int_to_ptr.hbm [resolvable:$true] %s1557
      %1563 = dma.vmem_to_hbm [thread:$0]  %s1556, 2048, %s1558, [#allocation3], 128, 128, 8
    $region21: #{down_fwd.5} parent=1 // pred_fallthru
      _
    // Predicated region
    $region22: #{down_fwd.5} parent=1 // pred_check
      _
    $region23: #{down_fwd.5} parent=1 // pred_check_branch
      %1565 = sbr.rel (0) target = $region25
    $region24: #{down_fwd.5} parent=1 // pred_region
      %1567 = dma.done [#allocation3], 2048
    $region25: #{down_fwd.5} parent=1 // pred_fallthru
      _
    %1568 = vsyncpa [#allocation3], 1

</llo_original>
